<compile_context>
chip_gen: v7x
topology: tpu7x:2x2x1
jax: 0.10.0
libtpu: 0.0.40
codegen_flags: <defaults>
</compile_context>

<pallas_src>
import math
import numpy as np
import jax
import jax.numpy as jnp
from jax.experimental import pallas as pl
from jax.experimental.pallas import tpu as pltpu


def _out_pad(e):
    return ((e + 127) // 128) * 128   # lane-dense output width


# ----------------------------- Pallas kernel --------------------------------
# Per grid step the kernel processes one block of BB patients:
#   x_ref    : (T, BB, 2E)   time-major, features [stream1 | stream2]
#   wih_ref  : (2E, 6H)      block-diagonal input weights, cols [r1 r2 | z1 z2 | n1 n2]
#   whh_ref  : (2H, 6H)      block-diagonal recurrent weights, same column layout
#   bih_ref  : (1, 6H)       input bias with r/z recurrent biases folded in
#   bhhn_ref : (1, 2H)       n-gate recurrent bias (must stay inside the r* term)
#   wa_ref   : (2, 2H)       row0 = wa1 masked to stream-1 lanes, row1 = wa2 masked
#   ba_ref   : (1, 2)        [ba1, ba2]
#   mask_ref : (1, 2H)       1.0 on stream-1 lanes, 0.0 on stream-2 lanes
#   wf_ref   : (2H, OUT_PAD) final linear, zero-padded to 128 lanes
#   bf_ref   : (1, OUT_PAD)
#   out_ref  : (BB, OUT_PAD)
#   o_scr    : VMEM (T, BB, 2H) scratch holding both GRU output streams.
def codenet_kernel(x_ref, wih_ref, whh_ref, bih_ref, bhhn_ref,
                   wa_ref, ba_ref, mask_ref, wf_ref, bf_ref,
                   out_ref, o_scr):
    T, BB, H2 = o_scr.shape            # H2 = 2H (both hidden states stacked on lanes)

    whh = whh_ref[...]                 # (2H, 6H)
    bhh_n = bhhn_ref[...]              # (1, 2H)

    # (1) Input-side GEMM hoisted out of the recurrence: one (T*BB, 2E) @ (2E, 6H)
    #     MXU push instead of T serialized pushes.  Leading-dim merge is tile-aligned.
    e2 = x_ref.shape[-1]
    x_flat = x_ref[...].reshape(T * BB, e2)                               # (T*BB, 2E)
    gi_all = jnp.dot(x_flat, wih_ref[...],
                     preferred_element_type=jnp.float32) + bih_ref[...]   # (T*BB, 6H)

    # (2) Fused GRU recurrence for both encoders (block-diagonal weights, K = 2H).
    #     Fully unrolled: static slices, one MXU push + EUP sigmoid/tanh per step.
    h = jnp.zeros((BB, H2), jnp.float32)
    for t in range(T):
        gi = gi_all[t * BB:(t + 1) * BB, :]                               # (BB, 6H)
        gh = jnp.dot(h, whh, preferred_element_type=jnp.float32)          # (BB, 6H)
        # Gate slices are 128-lane aligned: [0:2H)=r, [2H:4H)=z, [4H:6H)=n.
        r = jax.nn.sigmoid(gi[:, 0:H2] + gh[:, 0:H2])
        z = jax.nn.sigmoid(gi[:, H2:2 * H2] + gh[:, H2:2 * H2])
        n = jnp.tanh(gi[:, 2 * H2:3 * H2] + r * (gh[:, 2 * H2:3 * H2] + bhh_n))
        h = (1.0 - z) * n + z * h
        o_scr[t] = h                                                      # full-vreg store

    # (3) Attention pooling for both streams (softmax over time, per patient).
    #     Logits via host-premasked weights -> plain lane reductions, no iota/selects.
    o = o_scr[...]                                                        # (T, BB, 2H)
    ba = ba_ref[...]                                                      # (1, 2)
    logit1 = jnp.sum(o * wa_ref[0:1, :], axis=2, keepdims=True) + ba[:, 0:1]
    logit2 = jnp.sum(o * wa_ref[1:2, :], axis=2, keepdims=True) + ba[:, 1:2]

    def softmax_time(logit):                                              # softmax over axis 0
        m = jnp.max(logit, axis=0, keepdims=True)
        e = jnp.exp(logit - m)
        s = jnp.sum(e, axis=0, keepdims=True)
        inv = pl.reciprocal(s, approx=True)                               # EUP path
        inv = inv * (2.0 - s * inv)                                       # one Newton step
        return e * inv

    a1 = softmax_time(logit1)                                             # (T, BB, 1)
    a2 = softmax_time(logit2)
    mask = mask_ref[...]                                                  # (1, 2H)
    a = a2 + (a1 - a2) * mask                                             # per-stream weights
    pooled = jnp.sum(o * a, axis=0)                                       # (BB, 2H) = [f1|f2]

    # (4) feature1 = Sequential(ReLU, Linear(4E -> E)); ReLU(cat) == cat(ReLU).
    #     wf/bf are zero-padded to 128 lanes -> unmasked lane-dense store.
    f = jnp.maximum(pooled, 0.0)
    out_ref[...] = (jnp.dot(f, wf_ref[...], preferred_element_type=jnp.float32)
                    + bf_ref[...])


# ----------------------------- weight packing --------------------------------

def pack_params(p, emb_dim):
    """Repack the per-stream GRU/attention/linear weights into the fused layout."""
    E = emb_dim
    H = 2 * E            # per-stream hidden
    H2 = 2 * H           # fused hidden (both streams on lanes)

    def block_diag(w1, w2):
        # w*: (in_k, 3H), gate columns [r|z|n] -> (in1+in2, 6H),
        # columns [r1 r2 | z1 z2 | n1 n2] so every gate pair is 128-lane aligned.
        in1, in2 = w1.shape[0], w2.shape[0]
        out = jnp.zeros((in1 + in2, 6 * H), jnp.float32)
        for g in range(3):
            out = out.at[:in1, (2 * g) * H:(2 * g + 1) * H].set(w1[:, g * H:(g + 1) * H])
            out = out.at[in1:, (2 * g + 1) * H:(2 * g + 2) * H].set(w2[:, g * H:(g + 1) * H])
        return out

    def interleave_bias(b1, b2):
        parts = []
        for g in range(3):
            parts.append(b1[:, g * H:(g + 1) * H])
            parts.append(b2[:, g * H:(g + 1) * H])
        return jnp.concatenate(parts, axis=1)

    bih = interleave_bias(p["bih1"], p["bih2"])       # (1, 6H)
    bhh = interleave_bias(p["bhh1"], p["bhh2"])       # (1, 6H)
    # Fold r/z recurrent biases into the input-side bias (exact: they are plain adds
    # inside the sigmoids).  The n-gate recurrent bias must stay inside the r* term.
    bih_fused = bih.at[:, :2 * H2].add(bhh[:, :2 * H2])
    bhh_n = bhh[:, 2 * H2:]                           # (1, 2H)

    zeros_h = jnp.zeros((1, H), jnp.float32)
    wa1m = jnp.concatenate([p["wa1"], zeros_h], axis=1)   # stream-2 lanes zeroed
    wa2m = jnp.concatenate([zeros_h, p["wa2"]], axis=1)   # stream-1 lanes zeroed
    mask1 = jnp.concatenate([jnp.ones((1, H), jnp.float32), zeros_h], axis=1)

    out_pad = _out_pad(E)
    wf_pad = jnp.zeros((H2, out_pad), jnp.float32).at[:, :E].set(p["wf"])
    bf_pad = jnp.zeros((1, out_pad), jnp.float32).at[:, :E].set(p["bf"])

    return {
        "wih": block_diag(p["wih1"], p["wih2"]),      # (2E, 6H)
        "whh": block_diag(p["whh1"], p["whh2"]),      # (2H, 6H)
        "bih": bih_fused,                             # (1, 6H)
        "bhh_n": bhh_n,                               # (1, 2H)
        "wa": jnp.concatenate([wa1m, wa2m], axis=0),  # (2, 2H)
        "ba": jnp.concatenate([p["ba1"], p["ba2"]], axis=1),   # (1, 2)
        "mask1": mask1,                               # (1, 2H)
        "wf": wf_pad,                                 # (2H, OUT_PAD)
        "bf": bf_pad,                                 # (1, OUT_PAD)
    }


# ----------------------------- wrapper ---------------------------------------

def codenet_pallas(x1_seq, x2_seq, p, *, block_b=None):
    """x1_seq, x2_seq: (B, T, E) mean-embedded admission sequences -> (B, E) features.

    block_b defaults to the full batch (nb = 1, best for single-TC v5e/v6e);
    on v7x pass block_b = B // 2 to put one block on each TensorCore.
    """
    B, T, E = x1_seq.shape
    H = 2 * E
    if block_b is None:
        block_b = B
    assert B % block_b == 0 and block_b % 8 == 0
    nb = B // block_b
    out_pad = _out_pad(E)
    w = pack_params(p, E)

    # Time-major, streams concatenated on the feature axis; batch split into blocks
    # along a squeezed leading axis (pure reshape, no extra transpose/copy).
    x_tm = jnp.transpose(jnp.concatenate([x1_seq, x2_seq], axis=-1), (1, 0, 2))  # (T, B, 2E)
    x_blk = x_tm.reshape(T, nb, block_b, 2 * E)                                  # (T, nb, BB, 2E)

    out_padded = pl.pallas_call(
        codenet_kernel,
        out_shape=jax.ShapeDtypeStruct((B, out_pad), jnp.float32),
        grid_spec=pltpu.PrefetchScalarGridSpec(
            num_scalar_prefetch=0,
            grid=(nb,),
            in_specs=[
                pl.BlockSpec((T, None, block_b, 2 * E), lambda i: (0, i, 0, 0)),  # x block
                pl.BlockSpec((2 * E, 6 * H), lambda i: (0, 0)),                   # wih
                pl.BlockSpec((2 * H, 6 * H), lambda i: (0, 0)),                   # whh
                pl.BlockSpec((1, 6 * H), lambda i: (0, 0)),                       # bih (fused)
                pl.BlockSpec((1, 2 * H), lambda i: (0, 0)),                       # bhh_n
                pl.BlockSpec((2, 2 * H), lambda i: (0, 0)),                       # wa (masked)
                pl.BlockSpec((1, 2), lambda i: (0, 0)),                           # ba
                pl.BlockSpec((1, 2 * H), lambda i: (0, 0)),                       # stream mask
                pl.BlockSpec((2 * H, out_pad), lambda i: (0, 0)),                 # wf (padded)
                pl.BlockSpec((1, out_pad), lambda i: (0, 0)),                     # bf (padded)
            ],
            out_specs=pl.BlockSpec((block_b, out_pad), lambda i: (i, 0)),
            scratch_shapes=[pltpu.VMEM((T, block_b, 2 * H), jnp.float32)],
        ),
        compiler_params=pltpu.CompilerParams(
            dimension_semantics=("parallel",)),   # batch blocks shard across TCs on v7x
    )(x_blk, w["wih"], w["whh"], w["bih"], w["bhh_n"],
      w["wa"], w["ba"], w["mask1"], w["wf"], w["bf"])

    return out_padded[:, :E]


# ---------------- parameters / glue ----------------

def init_params(key, vocab_size, emb_dim):
    E = emb_dim
    H = 2 * E
    ks = jax.random.split(key, 16)
    s = 1.0 / math.sqrt(H)

    def u(k, shape, scale):
        return jax.random.uniform(k, shape, jnp.float32, -scale, scale)

    return {
        "emb1": u(ks[0], (vocab_size[0], E), 0.1),
        "emb2": u(ks[1], (vocab_size[1], E), 0.1),
        "wih1": u(ks[2], (E, 3 * H), s), "whh1": u(ks[3], (H, 3 * H), s),
        "bih1": u(ks[4], (1, 3 * H), s), "bhh1": u(ks[5], (1, 3 * H), s),
        "wih2": u(ks[6], (E, 3 * H), s), "whh2": u(ks[7], (H, 3 * H), s),
        "bih2": u(ks[8], (1, 3 * H), s), "bhh2": u(ks[9], (1, 3 * H), s),
        "wa1": u(ks[10], (1, H), s), "ba1": u(ks[11], (1, 1), s),
        "wa2": u(ks[12], (1, H), s), "ba2": u(ks[13], (1, 1), s),
        "wf": u(ks[14], (2 * H, E), 1.0 / math.sqrt(2 * H)),
        "bf": u(ks[15], (1, E), 1.0 / math.sqrt(2 * H)),
    }


def build_sequences(key, params, vocab_size, B, T, n1, n2):
    k1, k2 = jax.random.split(key)
    codes1 = jax.random.randint(k1, (B, T, n1), 0, vocab_size[0])
    codes2 = jax.random.randint(k2, (B, T, n2), 0, vocab_size[1])
    # TODO(synk): nn.Dropout(p=0.4) is stochastic in train mode; implemented as eval-mode identity.
    i1_seq = jnp.mean(jnp.take(params["emb1"], codes1, axis=0), axis=2)  # (B, T, E)
    i2_seq = jnp.mean(jnp.take(params["emb2"], codes2, axis=0), axis=2)  # (B, T, E)
    return i1_seq, i2_seq


# ---------------- pure-JAX reference (for correctness check) ----------------

def reference_forward(x1_all, x2_all, p):
    B, T, E = x1_all.shape
    H = 2 * E

    def gru(x, wih, whh, bih, bhh):
        h = jnp.zeros((1, H), jnp.float32)
        outs = []
        for t in range(T):
            gi = x[t:t + 1] @ wih + bih
            gh = h @ whh + bhh
            r = jax.nn.sigmoid(gi[:, :H] + gh[:, :H])
            z = jax.nn.sigmoid(gi[:, H:2 * H] + gh[:, H:2 * H])
            n = jnp.tanh(gi[:, 2 * H:] + r * gh[:, 2 * H:])
            h = (1.0 - z) * n + z * h
            outs.append(h)
        return jnp.concatenate(outs, axis=0)                    # (T, H)

    def attend(o, wa, ba):
        logits = jnp.sum(o * wa, axis=-1, keepdims=True) + ba   # (T, 1)
        a = jax.nn.softmax(logits, axis=0)
        return jnp.sum(o * a, axis=0, keepdims=True)            # (1, H)

    def single(x1, x2):
        o1 = gru(x1, p["wih1"], p["whh1"], p["bih1"], p["bhh1"])
        o2 = gru(x2, p["wih2"], p["whh2"], p["bih2"], p["bhh2"])
        f1 = attend(o1, p["wa1"], p["ba1"])
        f2 = attend(o2, p["wa2"], p["ba2"])
        codes = jnp.maximum(jnp.concatenate([f1, f2], axis=-1), 0.0)
        return codes @ p["wf"] + p["bf"]                        # (1, E)

    return jnp.concatenate([single(x1_all[b], x2_all[b]) for b in range(B)], axis=0)


if __name__ == "__main__":
    vocab_size = (50, 40, 30)   # K = 3  -> 2 embeddings / 2 GRU encoders
    emb_dim = 32                # E; per-stream hidden H = 64, fused hidden 2H = 128
    T, n1, n2 = 8, 5, 4         # 8 admissions, 5 diag codes + 4 proc codes each
    B = 16                      # patients, processed in one grid step (nb = 1)

    key = jax.random.PRNGKey(0)
    k_param, k_data = jax.random.split(key)
    params = init_params(k_param, vocab_size, emb_dim)
    x1_seq, x2_seq = build_sequences(k_data, params, vocab_size, B, T, n1, n2)

    out = codenet_pallas(x1_seq, x2_seq, params)
    jax.block_until_ready(out)

    ref = reference_forward(x1_seq, x2_seq, params)
    assert out.shape == (B, emb_dim)
    np.testing.assert_allclose(np.asarray(out), np.asarray(ref), rtol=2e-4, atol=5e-5)

    print("KERNEL_OK")
</pallas_src>

<mosaic_0001>
module attributes {stable_mosaic.version = 11 : i64} {
  func.func @codenet_kernel(%arg0: i32, %arg1: memref<8x1x16x64xf32, #tpu.memory_space<vmem>>, %arg2: memref<64x384xf32, #tpu.memory_space<vmem>>, %arg3: memref<128x384xf32, #tpu.memory_space<vmem>>, %arg4: memref<1x384xf32, #tpu.memory_space<vmem>>, %arg5: memref<1x128xf32, #tpu.memory_space<vmem>>, %arg6: memref<2x128xf32, #tpu.memory_space<vmem>>, %arg7: memref<1x2xf32, #tpu.memory_space<vmem>>, %arg8: memref<1x128xf32, #tpu.memory_space<vmem>>, %arg9: memref<128x128xf32, #tpu.memory_space<vmem>>, %arg10: memref<1x128xf32, #tpu.memory_space<vmem>>, %arg11: memref<16x128xf32, #tpu.memory_space<vmem>>, %arg12: memref<8x16x128xf32, #tpu.memory_space<vmem>>) attributes {dimension_semantics = [#tpu.dimension_semantics<parallel>], iteration_bounds = array<i64: 1>, scalar_prefetch = 0 : i64, scratch_operands = 1 : i64, tpu.core_type = #tpu.core_type<tc>, window_params = [{transform_indices = @transform_0, window_bounds = array<i64: 8, 1, 16, 64>}, {pipeline_mode = #tpu.pipeline_mode<synchronous>, transform_indices = @transform_1, window_bounds = array<i64: 64, 384>}, {pipeline_mode = #tpu.pipeline_mode<synchronous>, transform_indices = @transform_2, window_bounds = array<i64: 128, 384>}, {pipeline_mode = #tpu.pipeline_mode<synchronous>, transform_indices = @transform_3, window_bounds = array<i64: 1, 384>}, {pipeline_mode = #tpu.pipeline_mode<synchronous>, transform_indices = @transform_4, window_bounds = array<i64: 1, 128>}, {pipeline_mode = #tpu.pipeline_mode<synchronous>, transform_indices = @transform_5, window_bounds = array<i64: 2, 128>}, {pipeline_mode = #tpu.pipeline_mode<synchronous>, transform_indices = @transform_6, window_bounds = array<i64: 1, 2>}, {pipeline_mode = #tpu.pipeline_mode<synchronous>, transform_indices = @transform_7, window_bounds = array<i64: 1, 128>}, {pipeline_mode = #tpu.pipeline_mode<synchronous>, transform_indices = @transform_8, window_bounds = array<i64: 128, 128>}, {pipeline_mode = #tpu.pipeline_mode<synchronous>, transform_indices = @transform_9, window_bounds = array<i64: 1, 128>}, {transform_indices = @transform_10, window_bounds = array<i64: 16, 128>}]} {
    %c0 = arith.constant 0 : index
    %c0_0 = arith.constant 0 : index
    %0 = vector.load %arg3[%c0, %c0_0] : memref<128x384xf32, #tpu.memory_space<vmem>>, vector<128x384xf32>
    %c0_1 = arith.constant 0 : index
    %c0_2 = arith.constant 0 : index
    %1 = vector.load %arg5[%c0_1, %c0_2] : memref<1x128xf32, #tpu.memory_space<vmem>>, vector<1x128xf32>
    %c0_3 = arith.constant 0 : index
    %c0_4 = arith.constant 0 : index
    %c0_5 = arith.constant 0 : index
    %c0_6 = arith.constant 0 : index
    %2 = vector.load %arg1[%c0_3, %c0_4, %c0_5, %c0_6] : memref<8x1x16x64xf32, #tpu.memory_space<vmem>>, vector<8x1x16x64xf32>
    %3 = vector.shape_cast %2 : vector<8x1x16x64xf32> to vector<8x16x64xf32>
    %4 = vector.shape_cast %3 : vector<8x16x64xf32> to vector<128x64xf32>
    %c0_7 = arith.constant 0 : index
    %c0_8 = arith.constant 0 : index
    %5 = vector.load %arg2[%c0_7, %c0_8] : memref<64x384xf32, #tpu.memory_space<vmem>>, vector<64x384xf32>
    %cst = arith.constant dense<0.000000e+00> : vector<128x384xf32>
    %6 = tpu.matmul %4, %5, %cst {dimension_numbers = #tpu.dot_dimension_numbers<[1], [0], [0], [1], [0, 0, 1, 1], [], []>} : vector<128x64xf32>, vector<64x384xf32>, vector<128x384xf32> -> vector<128x384xf32>
    %c0_9 = arith.constant 0 : index
    %c0_10 = arith.constant 0 : index
    %7 = vector.load %arg4[%c0_9, %c0_10] : memref<1x384xf32, #tpu.memory_space<vmem>>, vector<1x384xf32>
    %8 = vector.broadcast %7 : vector<1x384xf32> to vector<128x384xf32>
    %9 = arith.addf %6, %8 : vector<128x384xf32>
    %cst_11 = arith.constant 0.000000e+00 : f32
    %10 = vector.broadcast %cst_11 : f32 to vector<16x128xf32>
    %11 = vector.extract_strided_slice %9 {offsets = [0, 0], sizes = [16, 384], strides = [1, 1]} : vector<128x384xf32> to vector<16x384xf32>
    %cst_12 = arith.constant dense<0.000000e+00> : vector<16x384xf32>
    %12 = tpu.matmul %10, %0, %cst_12 {dimension_numbers = #tpu.dot_dimension_numbers<[1], [0], [0], [1], [0, 0, 1, 1], [], []>} : vector<16x128xf32>, vector<128x384xf32>, vector<16x384xf32> -> vector<16x384xf32>
    %13 = vector.extract_strided_slice %11 {offsets = [0, 0], sizes = [16, 128], strides = [1, 1]} : vector<16x384xf32> to vector<16x128xf32>
    %14 = vector.extract_strided_slice %12 {offsets = [0, 0], sizes = [16, 128], strides = [1, 1]} : vector<16x384xf32> to vector<16x128xf32>
    %15 = arith.addf %13, %14 : vector<16x128xf32>
    %16 = arith.negf %15 : vector<16x128xf32>
    %17 = math.exp %16 : vector<16x128xf32>
    %cst_13 = arith.constant 1.000000e+00 : f32
    %18 = vector.broadcast %cst_13 : f32 to vector<16x128xf32>
    %19 = arith.addf %18, %17 : vector<16x128xf32>
    %20 = arith.divf %18, %19 : vector<16x128xf32>
    %21 = vector.extract_strided_slice %11 {offsets = [0, 128], sizes = [16, 128], strides = [1, 1]} : vector<16x384xf32> to vector<16x128xf32>
    %22 = vector.extract_strided_slice %12 {offsets = [0, 128], sizes = [16, 128], strides = [1, 1]} : vector<16x384xf32> to vector<16x128xf32>
    %23 = arith.addf %21, %22 : vector<16x128xf32>
    %24 = arith.negf %23 : vector<16x128xf32>
    %25 = math.exp %24 : vector<16x128xf32>
    %cst_14 = arith.constant 1.000000e+00 : f32
    %26 = vector.broadcast %cst_14 : f32 to vector<16x128xf32>
    %27 = arith.addf %26, %25 : vector<16x128xf32>
    %28 = arith.divf %26, %27 : vector<16x128xf32>
    %29 = vector.extract_strided_slice %11 {offsets = [0, 256], sizes = [16, 128], strides = [1, 1]} : vector<16x384xf32> to vector<16x128xf32>
    %30 = vector.extract_strided_slice %12 {offsets = [0, 256], sizes = [16, 128], strides = [1, 1]} : vector<16x384xf32> to vector<16x128xf32>
    %31 = vector.broadcast %1 : vector<1x128xf32> to vector<16x128xf32>
    %32 = arith.addf %30, %31 : vector<16x128xf32>
    %33 = arith.mulf %20, %32 : vector<16x128xf32>
    %34 = arith.addf %29, %33 : vector<16x128xf32>
    %35 = math.tanh %34 : vector<16x128xf32>
    %cst_15 = arith.constant 1.000000e+00 : f32
    %36 = vector.broadcast %cst_15 : f32 to vector<16x128xf32>
    %37 = arith.subf %36, %28 : vector<16x128xf32>
    %38 = arith.mulf %37, %35 : vector<16x128xf32>
    %39 = arith.mulf %28, %10 : vector<16x128xf32>
    %40 = arith.addf %38, %39 : vector<16x128xf32>
    %c0_16 = arith.constant 0 : index
    %c0_17 = arith.constant 0 : index
    %c0_18 = arith.constant 0 : index
    %41 = vector.load %arg12[%c0_16, %c0_17, %c0_18] : memref<8x16x128xf32, #tpu.memory_space<vmem>>, vector<1x16x128xf32>
    %42 = vector.shape_cast %41 : vector<1x16x128xf32> to vector<16x128xf32>
    %43 = vector.shape_cast %40 : vector<16x128xf32> to vector<1x16x128xf32>
    tpu.vector_store %arg12[%c0_16, %c0_17, %c0_18], %43 {strides = array<i32>} : memref<8x16x128xf32, #tpu.memory_space<vmem>>, vector<1x16x128xf32>,
    %44 = vector.extract_strided_slice %9 {offsets = [16, 0], sizes = [16, 384], strides = [1, 1]} : vector<128x384xf32> to vector<16x384xf32>
    %cst_19 = arith.constant dense<0.000000e+00> : vector<16x384xf32>
    %45 = tpu.matmul %40, %0, %cst_19 {dimension_numbers = #tpu.dot_dimension_numbers<[1], [0], [0], [1], [0, 0, 1, 1], [], []>} : vector<16x128xf32>, vector<128x384xf32>, vector<16x384xf32> -> vector<16x384xf32>
    %46 = vector.extract_strided_slice %44 {offsets = [0, 0], sizes = [16, 128], strides = [1, 1]} : vector<16x384xf32> to vector<16x128xf32>
    %47 = vector.extract_strided_slice %45 {offsets = [0, 0], sizes = [16, 128], strides = [1, 1]} : vector<16x384xf32> to vector<16x128xf32>
    %48 = arith.addf %46, %47 : vector<16x128xf32>
    %49 = arith.negf %48 : vector<16x128xf32>
    %50 = math.exp %49 : vector<16x128xf32>
    %cst_20 = arith.constant 1.000000e+00 : f32
    %51 = vector.broadcast %cst_20 : f32 to vector<16x128xf32>
    %52 = arith.addf %51, %50 : vector<16x128xf32>
    %53 = arith.divf %51, %52 : vector<16x128xf32>
    %54 = vector.extract_strided_slice %44 {offsets = [0, 128], sizes = [16, 128], strides = [1, 1]} : vector<16x384xf32> to vector<16x128xf32>
    %55 = vector.extract_strided_slice %45 {offsets = [0, 128], sizes = [16, 128], strides = [1, 1]} : vector<16x384xf32> to vector<16x128xf32>
    %56 = arith.addf %54, %55 : vector<16x128xf32>
    %57 = arith.negf %56 : vector<16x128xf32>
    %58 = math.exp %57 : vector<16x128xf32>
    %cst_21 = arith.constant 1.000000e+00 : f32
    %59 = vector.broadcast %cst_21 : f32 to vector<16x128xf32>
    %60 = arith.addf %59, %58 : vector<16x128xf32>
    %61 = arith.divf %59, %60 : vector<16x128xf32>
    %62 = vector.extract_strided_slice %44 {offsets = [0, 256], sizes = [16, 128], strides = [1, 1]} : vector<16x384xf32> to vector<16x128xf32>
    %63 = vector.extract_strided_slice %45 {offsets = [0, 256], sizes = [16, 128], strides = [1, 1]} : vector<16x384xf32> to vector<16x128xf32>
    %64 = vector.broadcast %1 : vector<1x128xf32> to vector<16x128xf32>
    %65 = arith.addf %63, %64 : vector<16x128xf32>
    %66 = arith.mulf %53, %65 : vector<16x128xf32>
    %67 = arith.addf %62, %66 : vector<16x128xf32>
    %68 = math.tanh %67 : vector<16x128xf32>
    %cst_22 = arith.constant 1.000000e+00 : f32
    %69 = vector.broadcast %cst_22 : f32 to vector<16x128xf32>
    %70 = arith.subf %69, %61 : vector<16x128xf32>
    %71 = arith.mulf %70, %68 : vector<16x128xf32>
    %72 = arith.mulf %61, %40 : vector<16x128xf32>
    %73 = arith.addf %71, %72 : vector<16x128xf32>
    %c1 = arith.constant 1 : index
    %c0_23 = arith.constant 0 : index
    %c0_24 = arith.constant 0 : index
    %74 = vector.load %arg12[%c1, %c0_23, %c0_24] : memref<8x16x128xf32, #tpu.memory_space<vmem>>, vector<1x16x128xf32>
    %75 = vector.shape_cast %74 : vector<1x16x128xf32> to vector<16x128xf32>
    %76 = vector.shape_cast %73 : vector<16x128xf32> to vector<1x16x128xf32>
    tpu.vector_store %arg12[%c1, %c0_23, %c0_24], %76 {strides = array<i32>} : memref<8x16x128xf32, #tpu.memory_space<vmem>>, vector<1x16x128xf32>,
    %77 = vector.extract_strided_slice %9 {offsets = [32, 0], sizes = [16, 384], strides = [1, 1]} : vector<128x384xf32> to vector<16x384xf32>
    %cst_25 = arith.constant dense<0.000000e+00> : vector<16x384xf32>
    %78 = tpu.matmul %73, %0, %cst_25 {dimension_numbers = #tpu.dot_dimension_numbers<[1], [0], [0], [1], [0, 0, 1, 1], [], []>} : vector<16x128xf32>, vector<128x384xf32>, vector<16x384xf32> -> vector<16x384xf32>
    %79 = vector.extract_strided_slice %77 {offsets = [0, 0], sizes = [16, 128], strides = [1, 1]} : vector<16x384xf32> to vector<16x128xf32>
    %80 = vector.extract_strided_slice %78 {offsets = [0, 0], sizes = [16, 128], strides = [1, 1]} : vector<16x384xf32> to vector<16x128xf32>
    %81 = arith.addf %79, %80 : vector<16x128xf32>
    %82 = arith.negf %81 : vector<16x128xf32>
    %83 = math.exp %82 : vector<16x128xf32>
    %cst_26 = arith.constant 1.000000e+00 : f32
    %84 = vector.broadcast %cst_26 : f32 to vector<16x128xf32>
    %85 = arith.addf %84, %83 : vector<16x128xf32>
    %86 = arith.divf %84, %85 : vector<16x128xf32>
    %87 = vector.extract_strided_slice %77 {offsets = [0, 128], sizes = [16, 128], strides = [1, 1]} : vector<16x384xf32> to vector<16x128xf32>
    %88 = vector.extract_strided_slice %78 {offsets = [0, 128], sizes = [16, 128], strides = [1, 1]} : vector<16x384xf32> to vector<16x128xf32>
    %89 = arith.addf %87, %88 : vector<16x128xf32>
    %90 = arith.negf %89 : vector<16x128xf32>
    %91 = math.exp %90 : vector<16x128xf32>
    %cst_27 = arith.constant 1.000000e+00 : f32
    %92 = vector.broadcast %cst_27 : f32 to vector<16x128xf32>
    %93 = arith.addf %92, %91 : vector<16x128xf32>
    %94 = arith.divf %92, %93 : vector<16x128xf32>
    %95 = vector.extract_strided_slice %77 {offsets = [0, 256], sizes = [16, 128], strides = [1, 1]} : vector<16x384xf32> to vector<16x128xf32>
    %96 = vector.extract_strided_slice %78 {offsets = [0, 256], sizes = [16, 128], strides = [1, 1]} : vector<16x384xf32> to vector<16x128xf32>
    %97 = vector.broadcast %1 : vector<1x128xf32> to vector<16x128xf32>
    %98 = arith.addf %96, %97 : vector<16x128xf32>
    %99 = arith.mulf %86, %98 : vector<16x128xf32>
    %100 = arith.addf %95, %99 : vector<16x128xf32>
    %101 = math.tanh %100 : vector<16x128xf32>
    %cst_28 = arith.constant 1.000000e+00 : f32
    %102 = vector.broadcast %cst_28 : f32 to vector<16x128xf32>
    %103 = arith.subf %102, %94 : vector<16x128xf32>
    %104 = arith.mulf %103, %101 : vector<16x128xf32>
    %105 = arith.mulf %94, %73 : vector<16x128xf32>
    %106 = arith.addf %104, %105 : vector<16x128xf32>
    %c2 = arith.constant 2 : index
    %c0_29 = arith.constant 0 : index
    %c0_30 = arith.constant 0 : index
    %107 = vector.load %arg12[%c2, %c0_29, %c0_30] : memref<8x16x128xf32, #tpu.memory_space<vmem>>, vector<1x16x128xf32>
    %108 = vector.shape_cast %107 : vector<1x16x128xf32> to vector<16x128xf32>
    %109 = vector.shape_cast %106 : vector<16x128xf32> to vector<1x16x128xf32>
    tpu.vector_store %arg12[%c2, %c0_29, %c0_30], %109 {strides = array<i32>} : memref<8x16x128xf32, #tpu.memory_space<vmem>>, vector<1x16x128xf32>,
    %110 = vector.extract_strided_slice %9 {offsets = [48, 0], sizes = [16, 384], strides = [1, 1]} : vector<128x384xf32> to vector<16x384xf32>
    %cst_31 = arith.constant dense<0.000000e+00> : vector<16x384xf32>
    %111 = tpu.matmul %106, %0, %cst_31 {dimension_numbers = #tpu.dot_dimension_numbers<[1], [0], [0], [1], [0, 0, 1, 1], [], []>} : vector<16x128xf32>, vector<128x384xf32>, vector<16x384xf32> -> vector<16x384xf32>
    %112 = vector.extract_strided_slice %110 {offsets = [0, 0], sizes = [16, 128], strides = [1, 1]} : vector<16x384xf32> to vector<16x128xf32>
    %113 = vector.extract_strided_slice %111 {offsets = [0, 0], sizes = [16, 128], strides = [1, 1]} : vector<16x384xf32> to vector<16x128xf32>
    %114 = arith.addf %112, %113 : vector<16x128xf32>
    %115 = arith.negf %114 : vector<16x128xf32>
    %116 = math.exp %115 : vector<16x128xf32>
    %cst_32 = arith.constant 1.000000e+00 : f32
    %117 = vector.broadcast %cst_32 : f32 to vector<16x128xf32>
    %118 = arith.addf %117, %116 : vector<16x128xf32>
    %119 = arith.divf %117, %118 : vector<16x128xf32>
    %120 = vector.extract_strided_slice %110 {offsets = [0, 128], sizes = [16, 128], strides = [1, 1]} : vector<16x384xf32> to vector<16x128xf32>
    %121 = vector.extract_strided_slice %111 {offsets = [0, 128], sizes = [16, 128], strides = [1, 1]} : vector<16x384xf32> to vector<16x128xf32>
    %122 = arith.addf %120, %121 : vector<16x128xf32>
    %123 = arith.negf %122 : vector<16x128xf32>
    %124 = math.exp %123 : vector<16x128xf32>
    %cst_33 = arith.constant 1.000000e+00 : f32
    %125 = vector.broadcast %cst_33 : f32 to vector<16x128xf32>
    %126 = arith.addf %125, %124 : vector<16x128xf32>
    %127 = arith.divf %125, %126 : vector<16x128xf32>
    %128 = vector.extract_strided_slice %110 {offsets = [0, 256], sizes = [16, 128], strides = [1, 1]} : vector<16x384xf32> to vector<16x128xf32>
    %129 = vector.extract_strided_slice %111 {offsets = [0, 256], sizes = [16, 128], strides = [1, 1]} : vector<16x384xf32> to vector<16x128xf32>
    %130 = vector.broadcast %1 : vector<1x128xf32> to vector<16x128xf32>
    %131 = arith.addf %129, %130 : vector<16x128xf32>
    %132 = arith.mulf %119, %131 : vector<16x128xf32>
    %133 = arith.addf %128, %132 : vector<16x128xf32>
    %134 = math.tanh %133 : vector<16x128xf32>
    %cst_34 = arith.constant 1.000000e+00 : f32
    %135 = vector.broadcast %cst_34 : f32 to vector<16x128xf32>
    %136 = arith.subf %135, %127 : vector<16x128xf32>
    %137 = arith.mulf %136, %134 : vector<16x128xf32>
    %138 = arith.mulf %127, %106 : vector<16x128xf32>
    %139 = arith.addf %137, %138 : vector<16x128xf32>
    %c3 = arith.constant 3 : index
    %c0_35 = arith.constant 0 : index
    %c0_36 = arith.constant 0 : index
    %140 = vector.load %arg12[%c3, %c0_35, %c0_36] : memref<8x16x128xf32, #tpu.memory_space<vmem>>, vector<1x16x128xf32>
    %141 = vector.shape_cast %140 : vector<1x16x128xf32> to vector<16x128xf32>
    %142 = vector.shape_cast %139 : vector<16x128xf32> to vector<1x16x128xf32>
    tpu.vector_store %arg12[%c3, %c0_35, %c0_36], %142 {strides = array<i32>} : memref<8x16x128xf32, #tpu.memory_space<vmem>>, vector<1x16x128xf32>,
    %143 = vector.extract_strided_slice %9 {offsets = [64, 0], sizes = [16, 384], strides = [1, 1]} : vector<128x384xf32> to vector<16x384xf32>
    %cst_37 = arith.constant dense<0.000000e+00> : vector<16x384xf32>
    %144 = tpu.matmul %139, %0, %cst_37 {dimension_numbers = #tpu.dot_dimension_numbers<[1], [0], [0], [1], [0, 0, 1, 1], [], []>} : vector<16x128xf32>, vector<128x384xf32>, vector<16x384xf32> -> vector<16x384xf32>
    %145 = vector.extract_strided_slice %143 {offsets = [0, 0], sizes = [16, 128], strides = [1, 1]} : vector<16x384xf32> to vector<16x128xf32>
    %146 = vector.extract_strided_slice %144 {offsets = [0, 0], sizes = [16, 128], strides = [1, 1]} : vector<16x384xf32> to vector<16x128xf32>
    %147 = arith.addf %145, %146 : vector<16x128xf32>
    %148 = arith.negf %147 : vector<16x128xf32>
    %149 = math.exp %148 : vector<16x128xf32>
    %cst_38 = arith.constant 1.000000e+00 : f32
    %150 = vector.broadcast %cst_38 : f32 to vector<16x128xf32>
    %151 = arith.addf %150, %149 : vector<16x128xf32>
    %152 = arith.divf %150, %151 : vector<16x128xf32>
    %153 = vector.extract_strided_slice %143 {offsets = [0, 128], sizes = [16, 128], strides = [1, 1]} : vector<16x384xf32> to vector<16x128xf32>
    %154 = vector.extract_strided_slice %144 {offsets = [0, 128], sizes = [16, 128], strides = [1, 1]} : vector<16x384xf32> to vector<16x128xf32>
    %155 = arith.addf %153, %154 : vector<16x128xf32>
    %156 = arith.negf %155 : vector<16x128xf32>
    %157 = math.exp %156 : vector<16x128xf32>
    %cst_39 = arith.constant 1.000000e+00 : f32
    %158 = vector.broadcast %cst_39 : f32 to vector<16x128xf32>
    %159 = arith.addf %158, %157 : vector<16x128xf32>
    %160 = arith.divf %158, %159 : vector<16x128xf32>
    %161 = vector.extract_strided_slice %143 {offsets = [0, 256], sizes = [16, 128], strides = [1, 1]} : vector<16x384xf32> to vector<16x128xf32>
    %162 = vector.extract_strided_slice %144 {offsets = [0, 256], sizes = [16, 128], strides = [1, 1]} : vector<16x384xf32> to vector<16x128xf32>
    %163 = vector.broadcast %1 : vector<1x128xf32> to vector<16x128xf32>
    %164 = arith.addf %162, %163 : vector<16x128xf32>
    %165 = arith.mulf %152, %164 : vector<16x128xf32>
    %166 = arith.addf %161, %165 : vector<16x128xf32>
    %167 = math.tanh %166 : vector<16x128xf32>
    %cst_40 = arith.constant 1.000000e+00 : f32
    %168 = vector.broadcast %cst_40 : f32 to vector<16x128xf32>
    %169 = arith.subf %168, %160 : vector<16x128xf32>
    %170 = arith.mulf %169, %167 : vector<16x128xf32>
    %171 = arith.mulf %160, %139 : vector<16x128xf32>
    %172 = arith.addf %170, %171 : vector<16x128xf32>
    %c4 = arith.constant 4 : index
    %c0_41 = arith.constant 0 : index
    %c0_42 = arith.constant 0 : index
    %173 = vector.load %arg12[%c4, %c0_41, %c0_42] : memref<8x16x128xf32, #tpu.memory_space<vmem>>, vector<1x16x128xf32>
    %174 = vector.shape_cast %173 : vector<1x16x128xf32> to vector<16x128xf32>
    %175 = vector.shape_cast %172 : vector<16x128xf32> to vector<1x16x128xf32>
    tpu.vector_store %arg12[%c4, %c0_41, %c0_42], %175 {strides = array<i32>} : memref<8x16x128xf32, #tpu.memory_space<vmem>>, vector<1x16x128xf32>,
    %176 = vector.extract_strided_slice %9 {offsets = [80, 0], sizes = [16, 384], strides = [1, 1]} : vector<128x384xf32> to vector<16x384xf32>
    %cst_43 = arith.constant dense<0.000000e+00> : vector<16x384xf32>
    %177 = tpu.matmul %172, %0, %cst_43 {dimension_numbers = #tpu.dot_dimension_numbers<[1], [0], [0], [1], [0, 0, 1, 1], [], []>} : vector<16x128xf32>, vector<128x384xf32>, vector<16x384xf32> -> vector<16x384xf32>
    %178 = vector.extract_strided_slice %176 {offsets = [0, 0], sizes = [16, 128], strides = [1, 1]} : vector<16x384xf32> to vector<16x128xf32>
    %179 = vector.extract_strided_slice %177 {offsets = [0, 0], sizes = [16, 128], strides = [1, 1]} : vector<16x384xf32> to vector<16x128xf32>
    %180 = arith.addf %178, %179 : vector<16x128xf32>
    %181 = arith.negf %180 : vector<16x128xf32>
    %182 = math.exp %181 : vector<16x128xf32>
    %cst_44 = arith.constant 1.000000e+00 : f32
    %183 = vector.broadcast %cst_44 : f32 to vector<16x128xf32>
    %184 = arith.addf %183, %182 : vector<16x128xf32>
    %185 = arith.divf %183, %184 : vector<16x128xf32>
    %186 = vector.extract_strided_slice %176 {offsets = [0, 128], sizes = [16, 128], strides = [1, 1]} : vector<16x384xf32> to vector<16x128xf32>
    %187 = vector.extract_strided_slice %177 {offsets = [0, 128], sizes = [16, 128], strides = [1, 1]} : vector<16x384xf32> to vector<16x128xf32>
    %188 = arith.addf %186, %187 : vector<16x128xf32>
    %189 = arith.negf %188 : vector<16x128xf32>
    %190 = math.exp %189 : vector<16x128xf32>
    %cst_45 = arith.constant 1.000000e+00 : f32
    %191 = vector.broadcast %cst_45 : f32 to vector<16x128xf32>
    %192 = arith.addf %191, %190 : vector<16x128xf32>
    %193 = arith.divf %191, %192 : vector<16x128xf32>
    %194 = vector.extract_strided_slice %176 {offsets = [0, 256], sizes = [16, 128], strides = [1, 1]} : vector<16x384xf32> to vector<16x128xf32>
    %195 = vector.extract_strided_slice %177 {offsets = [0, 256], sizes = [16, 128], strides = [1, 1]} : vector<16x384xf32> to vector<16x128xf32>
    %196 = vector.broadcast %1 : vector<1x128xf32> to vector<16x128xf32>
    %197 = arith.addf %195, %196 : vector<16x128xf32>
    %198 = arith.mulf %185, %197 : vector<16x128xf32>
    %199 = arith.addf %194, %198 : vector<16x128xf32>
    %200 = math.tanh %199 : vector<16x128xf32>
    %cst_46 = arith.constant 1.000000e+00 : f32
    %201 = vector.broadcast %cst_46 : f32 to vector<16x128xf32>
    %202 = arith.subf %201, %193 : vector<16x128xf32>
    %203 = arith.mulf %202, %200 : vector<16x128xf32>
    %204 = arith.mulf %193, %172 : vector<16x128xf32>
    %205 = arith.addf %203, %204 : vector<16x128xf32>
    %c5 = arith.constant 5 : index
    %c0_47 = arith.constant 0 : index
    %c0_48 = arith.constant 0 : index
    %206 = vector.load %arg12[%c5, %c0_47, %c0_48] : memref<8x16x128xf32, #tpu.memory_space<vmem>>, vector<1x16x128xf32>
    %207 = vector.shape_cast %206 : vector<1x16x128xf32> to vector<16x128xf32>
    %208 = vector.shape_cast %205 : vector<16x128xf32> to vector<1x16x128xf32>
    tpu.vector_store %arg12[%c5, %c0_47, %c0_48], %208 {strides = array<i32>} : memref<8x16x128xf32, #tpu.memory_space<vmem>>, vector<1x16x128xf32>,
    %209 = vector.extract_strided_slice %9 {offsets = [96, 0], sizes = [16, 384], strides = [1, 1]} : vector<128x384xf32> to vector<16x384xf32>
    %cst_49 = arith.constant dense<0.000000e+00> : vector<16x384xf32>
    %210 = tpu.matmul %205, %0, %cst_49 {dimension_numbers = #tpu.dot_dimension_numbers<[1], [0], [0], [1], [0, 0, 1, 1], [], []>} : vector<16x128xf32>, vector<128x384xf32>, vector<16x384xf32> -> vector<16x384xf32>
    %211 = vector.extract_strided_slice %209 {offsets = [0, 0], sizes = [16, 128], strides = [1, 1]} : vector<16x384xf32> to vector<16x128xf32>
    %212 = vector.extract_strided_slice %210 {offsets = [0, 0], sizes = [16, 128], strides = [1, 1]} : vector<16x384xf32> to vector<16x128xf32>
    %213 = arith.addf %211, %212 : vector<16x128xf32>
    %214 = arith.negf %213 : vector<16x128xf32>
    %215 = math.exp %214 : vector<16x128xf32>
    %cst_50 = arith.constant 1.000000e+00 : f32
    %216 = vector.broadcast %cst_50 : f32 to vector<16x128xf32>
    %217 = arith.addf %216, %215 : vector<16x128xf32>
    %218 = arith.divf %216, %217 : vector<16x128xf32>
    %219 = vector.extract_strided_slice %209 {offsets = [0, 128], sizes = [16, 128], strides = [1, 1]} : vector<16x384xf32> to vector<16x128xf32>
    %220 = vector.extract_strided_slice %210 {offsets = [0, 128], sizes = [16, 128], strides = [1, 1]} : vector<16x384xf32> to vector<16x128xf32>
    %221 = arith.addf %219, %220 : vector<16x128xf32>
    %222 = arith.negf %221 : vector<16x128xf32>
    %223 = math.exp %222 : vector<16x128xf32>
    %cst_51 = arith.constant 1.000000e+00 : f32
    %224 = vector.broadcast %cst_51 : f32 to vector<16x128xf32>
    %225 = arith.addf %224, %223 : vector<16x128xf32>
    %226 = arith.divf %224, %225 : vector<16x128xf32>
    %227 = vector.extract_strided_slice %209 {offsets = [0, 256], sizes = [16, 128], strides = [1, 1]} : vector<16x384xf32> to vector<16x128xf32>
    %228 = vector.extract_strided_slice %210 {offsets = [0, 256], sizes = [16, 128], strides = [1, 1]} : vector<16x384xf32> to vector<16x128xf32>
    %229 = vector.broadcast %1 : vector<1x128xf32> to vector<16x128xf32>
    %230 = arith.addf %228, %229 : vector<16x128xf32>
    %231 = arith.mulf %218, %230 : vector<16x128xf32>
    %232 = arith.addf %227, %231 : vector<16x128xf32>
    %233 = math.tanh %232 : vector<16x128xf32>
    %cst_52 = arith.constant 1.000000e+00 : f32
    %234 = vector.broadcast %cst_52 : f32 to vector<16x128xf32>
    %235 = arith.subf %234, %226 : vector<16x128xf32>
    %236 = arith.mulf %235, %233 : vector<16x128xf32>
    %237 = arith.mulf %226, %205 : vector<16x128xf32>
    %238 = arith.addf %236, %237 : vector<16x128xf32>
    %c6 = arith.constant 6 : index
    %c0_53 = arith.constant 0 : index
    %c0_54 = arith.constant 0 : index
    %239 = vector.load %arg12[%c6, %c0_53, %c0_54] : memref<8x16x128xf32, #tpu.memory_space<vmem>>, vector<1x16x128xf32>
    %240 = vector.shape_cast %239 : vector<1x16x128xf32> to vector<16x128xf32>
    %241 = vector.shape_cast %238 : vector<16x128xf32> to vector<1x16x128xf32>
    tpu.vector_store %arg12[%c6, %c0_53, %c0_54], %241 {strides = array<i32>} : memref<8x16x128xf32, #tpu.memory_space<vmem>>, vector<1x16x128xf32>,
    %242 = vector.extract_strided_slice %9 {offsets = [112, 0], sizes = [16, 384], strides = [1, 1]} : vector<128x384xf32> to vector<16x384xf32>
    %cst_55 = arith.constant dense<0.000000e+00> : vector<16x384xf32>
    %243 = tpu.matmul %238, %0, %cst_55 {dimension_numbers = #tpu.dot_dimension_numbers<[1], [0], [0], [1], [0, 0, 1, 1], [], []>} : vector<16x128xf32>, vector<128x384xf32>, vector<16x384xf32> -> vector<16x384xf32>
    %244 = vector.extract_strided_slice %242 {offsets = [0, 0], sizes = [16, 128], strides = [1, 1]} : vector<16x384xf32> to vector<16x128xf32>
    %245 = vector.extract_strided_slice %243 {offsets = [0, 0], sizes = [16, 128], strides = [1, 1]} : vector<16x384xf32> to vector<16x128xf32>
    %246 = arith.addf %244, %245 : vector<16x128xf32>
    %247 = arith.negf %246 : vector<16x128xf32>
    %248 = math.exp %247 : vector<16x128xf32>
    %cst_56 = arith.constant 1.000000e+00 : f32
    %249 = vector.broadcast %cst_56 : f32 to vector<16x128xf32>
    %250 = arith.addf %249, %248 : vector<16x128xf32>
    %251 = arith.divf %249, %250 : vector<16x128xf32>
    %252 = vector.extract_strided_slice %242 {offsets = [0, 128], sizes = [16, 128], strides = [1, 1]} : vector<16x384xf32> to vector<16x128xf32>
    %253 = vector.extract_strided_slice %243 {offsets = [0, 128], sizes = [16, 128], strides = [1, 1]} : vector<16x384xf32> to vector<16x128xf32>
    %254 = arith.addf %252, %253 : vector<16x128xf32>
    %255 = arith.negf %254 : vector<16x128xf32>
    %256 = math.exp %255 : vector<16x128xf32>
    %cst_57 = arith.constant 1.000000e+00 : f32
    %257 = vector.broadcast %cst_57 : f32 to vector<16x128xf32>
    %258 = arith.addf %257, %256 : vector<16x128xf32>
    %259 = arith.divf %257, %258 : vector<16x128xf32>
    %260 = vector.extract_strided_slice %242 {offsets = [0, 256], sizes = [16, 128], strides = [1, 1]} : vector<16x384xf32> to vector<16x128xf32>
    %261 = vector.extract_strided_slice %243 {offsets = [0, 256], sizes = [16, 128], strides = [1, 1]} : vector<16x384xf32> to vector<16x128xf32>
    %262 = vector.broadcast %1 : vector<1x128xf32> to vector<16x128xf32>
    %263 = arith.addf %261, %262 : vector<16x128xf32>
    %264 = arith.mulf %251, %263 : vector<16x128xf32>
    %265 = arith.addf %260, %264 : vector<16x128xf32>
    %266 = math.tanh %265 : vector<16x128xf32>
    %cst_58 = arith.constant 1.000000e+00 : f32
    %267 = vector.broadcast %cst_58 : f32 to vector<16x128xf32>
    %268 = arith.subf %267, %259 : vector<16x128xf32>
    %269 = arith.mulf %268, %266 : vector<16x128xf32>
    %270 = arith.mulf %259, %238 : vector<16x128xf32>
    %271 = arith.addf %269, %270 : vector<16x128xf32>
    %c7 = arith.constant 7 : index
    %c0_59 = arith.constant 0 : index
    %c0_60 = arith.constant 0 : index
    %272 = vector.load %arg12[%c7, %c0_59, %c0_60] : memref<8x16x128xf32, #tpu.memory_space<vmem>>, vector<1x16x128xf32>
    %273 = vector.shape_cast %272 : vector<1x16x128xf32> to vector<16x128xf32>
    %274 = vector.shape_cast %271 : vector<16x128xf32> to vector<1x16x128xf32>
    tpu.vector_store %arg12[%c7, %c0_59, %c0_60], %274 {strides = array<i32>} : memref<8x16x128xf32, #tpu.memory_space<vmem>>, vector<1x16x128xf32>,
    %c0_61 = arith.constant 0 : index
    %c0_62 = arith.constant 0 : index
    %c0_63 = arith.constant 0 : index
    %275 = vector.load %arg12[%c0_61, %c0_62, %c0_63] : memref<8x16x128xf32, #tpu.memory_space<vmem>>, vector<8x16x128xf32>
    %c0_64 = arith.constant 0 : index
    %c0_65 = arith.constant 0 : index
    %276 = vector.load %arg7[%c0_64, %c0_65] : memref<1x2xf32, #tpu.memory_space<vmem>>, vector<1x2xf32>
    %c0_66 = arith.constant 0 : index
    %c0_67 = arith.constant 0 : index
    %277 = vector.load %arg6[%c0_66, %c0_67] : memref<2x128xf32, #tpu.memory_space<vmem>>, vector<1x128xf32>
    %278 = vector.shape_cast %277 : vector<1x128xf32> to vector<1x1x128xf32>
    %279 = vector.broadcast %278 : vector<1x1x128xf32> to vector<8x16x128xf32>
    %280 = arith.mulf %275, %279 : vector<8x16x128xf32>
    %cst_68 = arith.constant dense<0.000000e+00> : vector<8x16xf32>
    %281 = vector.multi_reduction <add>, %280, %cst_68 [2] : vector<8x16x128xf32> to vector<8x16xf32>
    %282 = vector.shape_cast %281 : vector<8x16xf32> to vector<8x16x1xf32>
    %283 = vector.extract_strided_slice %276 {offsets = [0, 0], sizes = [1, 1], strides = [1, 1]} : vector<1x2xf32> to vector<1x1xf32>
    %284 = vector.shape_cast %283 : vector<1x1xf32> to vector<1x1x1xf32>
    %285 = vector.broadcast %284 : vector<1x1x1xf32> to vector<8x16x1xf32>
    %286 = arith.addf %282, %285 : vector<8x16x1xf32>
    %c1_69 = arith.constant 1 : index
    %c0_70 = arith.constant 0 : index
    %287 = vector.load %arg6[%c1_69, %c0_70] : memref<2x128xf32, #tpu.memory_space<vmem>>, vector<1x128xf32>
    %288 = vector.shape_cast %287 : vector<1x128xf32> to vector<1x1x128xf32>
    %289 = vector.broadcast %288 : vector<1x1x128xf32> to vector<8x16x128xf32>
    %290 = arith.mulf %275, %289 : vector<8x16x128xf32>
    %cst_71 = arith.constant dense<0.000000e+00> : vector<8x16xf32>
    %291 = vector.multi_reduction <add>, %290, %cst_71 [2] : vector<8x16x128xf32> to vector<8x16xf32>
    %292 = vector.shape_cast %291 : vector<8x16xf32> to vector<8x16x1xf32>
    %293 = vector.extract_strided_slice %276 {offsets = [0, 1], sizes = [1, 1], strides = [1, 1]} : vector<1x2xf32> to vector<1x1xf32>
    %294 = vector.shape_cast %293 : vector<1x1xf32> to vector<1x1x1xf32>
    %295 = vector.broadcast %294 : vector<1x1x1xf32> to vector<8x16x1xf32>
    %296 = arith.addf %292, %295 : vector<8x16x1xf32>
    %cst_72 = arith.constant dense<0xFF800000> : vector<16x1xf32>
    %297 = vector.multi_reduction <maximumf>, %286, %cst_72 [0] : vector<8x16x1xf32> to vector<16x1xf32>
    %298 = vector.shape_cast %297 : vector<16x1xf32> to vector<1x16x1xf32>
    %299 = vector.broadcast %298 : vector<1x16x1xf32> to vector<8x16x1xf32>
    %300 = arith.subf %286, %299 : vector<8x16x1xf32>
    %301 = math.exp %300 : vector<8x16x1xf32>
    %cst_73 = arith.constant dense<0.000000e+00> : vector<16x1xf32>
    %302 = vector.multi_reduction <add>, %301, %cst_73 [0] : vector<8x16x1xf32> to vector<16x1xf32>
    %303 = vector.shape_cast %302 : vector<16x1xf32> to vector<1x16x1xf32>
    %304 = tpu.reciprocal %303 {approx = true} : vector<1x16x1xf32> -> vector<1x16x1xf32>
    %305 = arith.mulf %303, %304 : vector<1x16x1xf32>
    %cst_74 = arith.constant 2.000000e+00 : f32
    %306 = vector.broadcast %cst_74 : f32 to vector<1x16x1xf32>
    %307 = arith.subf %306, %305 : vector<1x16x1xf32>
    %308 = arith.mulf %304, %307 : vector<1x16x1xf32>
    %309 = vector.broadcast %308 : vector<1x16x1xf32> to vector<8x16x1xf32>
    %310 = arith.mulf %301, %309 : vector<8x16x1xf32>
    %cst_75 = arith.constant dense<0xFF800000> : vector<16x1xf32>
    %311 = vector.multi_reduction <maximumf>, %296, %cst_75 [0] : vector<8x16x1xf32> to vector<16x1xf32>
    %312 = vector.shape_cast %311 : vector<16x1xf32> to vector<1x16x1xf32>
    %313 = vector.broadcast %312 : vector<1x16x1xf32> to vector<8x16x1xf32>
    %314 = arith.subf %296, %313 : vector<8x16x1xf32>
    %315 = math.exp %314 : vector<8x16x1xf32>
    %cst_76 = arith.constant dense<0.000000e+00> : vector<16x1xf32>
    %316 = vector.multi_reduction <add>, %315, %cst_76 [0] : vector<8x16x1xf32> to vector<16x1xf32>
    %317 = vector.shape_cast %316 : vector<16x1xf32> to vector<1x16x1xf32>
    %318 = tpu.reciprocal %317 {approx = true} : vector<1x16x1xf32> -> vector<1x16x1xf32>
    %319 = arith.mulf %317, %318 : vector<1x16x1xf32>
    %cst_77 = arith.constant 2.000000e+00 : f32
    %320 = vector.broadcast %cst_77 : f32 to vector<1x16x1xf32>
    %321 = arith.subf %320, %319 : vector<1x16x1xf32>
    %322 = arith.mulf %318, %321 : vector<1x16x1xf32>
    %323 = vector.broadcast %322 : vector<1x16x1xf32> to vector<8x16x1xf32>
    %324 = arith.mulf %315, %323 : vector<8x16x1xf32>
    %c0_78 = arith.constant 0 : index
    %c0_79 = arith.constant 0 : index
    %325 = vector.load %arg8[%c0_78, %c0_79] : memref<1x128xf32, #tpu.memory_space<vmem>>, vector<1x128xf32>
    %326 = arith.subf %310, %324 : vector<8x16x1xf32>
    %327 = vector.shape_cast %325 : vector<1x128xf32> to vector<1x1x128xf32>
    %328 = vector.broadcast %326 : vector<8x16x1xf32> to vector<8x16x128xf32>
    %329 = vector.broadcast %327 : vector<1x1x128xf32> to vector<8x16x128xf32>
    %330 = arith.mulf %328, %329 : vector<8x16x128xf32>
    %331 = vector.broadcast %324 : vector<8x16x1xf32> to vector<8x16x128xf32>
    %332 = arith.addf %331, %330 : vector<8x16x128xf32>
    %333 = arith.mulf %275, %332 : vector<8x16x128xf32>
    %cst_80 = arith.constant dense<0.000000e+00> : vector<16x128xf32>
    %334 = vector.multi_reduction <add>, %333, %cst_80 [0] : vector<8x16x128xf32> to vector<16x128xf32>
    %cst_81 = arith.constant 0.000000e+00 : f32
    %335 = vector.broadcast %cst_81 : f32 to vector<16x128xf32>
    %336 = arith.maximumf %334, %335 : vector<16x128xf32>
    %c0_82 = arith.constant 0 : index
    %c0_83 = arith.constant 0 : index
    %337 = vector.load %arg9[%c0_82, %c0_83] : memref<128x128xf32, #tpu.memory_space<vmem>>, vector<128x128xf32>
    %cst_84 = arith.constant dense<0.000000e+00> : vector<16x128xf32>
    %338 = tpu.matmul %336, %337, %cst_84 {dimension_numbers = #tpu.dot_dimension_numbers<[1], [0], [0], [1], [0, 0, 1, 1], [], []>} : vector<16x128xf32>, vector<128x128xf32>, vector<16x128xf32> -> vector<16x128xf32>
    %c0_85 = arith.constant 0 : index
    %c0_86 = arith.constant 0 : index
    %339 = vector.load %arg10[%c0_85, %c0_86] : memref<1x128xf32, #tpu.memory_space<vmem>>, vector<1x128xf32>
    %340 = vector.broadcast %339 : vector<1x128xf32> to vector<16x128xf32>
    %341 = arith.addf %338, %340 : vector<16x128xf32>
    %c0_87 = arith.constant 0 : index
    %c0_88 = arith.constant 0 : index
    %342 = vector.load %arg11[%c0_87, %c0_88] : memref<16x128xf32, #tpu.memory_space<vmem>>, vector<16x128xf32>
    tpu.vector_store %arg11[%c0_87, %c0_88], %341 {strides = array<i32>} : memref<16x128xf32, #tpu.memory_space<vmem>>, vector<16x128xf32>,
    return
  }
  func.func @transform_0(%arg0: i32) -> (i32, i32, i32, i32) {
    %c0_i32 = arith.constant 0 : i32
    %c0_i32_0 = arith.constant 0 : i32
    %c0_i32_1 = arith.constant 0 : i32
    %c0_i32_2 = arith.constant 0 : i32
    return %c0_i32, %arg0, %c0_i32_0, %c0_i32_1 : i32, i32, i32, i32
  }
  func.func @transform_1(%arg0: i32) -> (i32, i32) {
    %c0_i32 = arith.constant 0 : i32
    %c0_i32_0 = arith.constant 0 : i32
    %c0_i32_1 = arith.constant 0 : i32
    return %c0_i32, %c0_i32_0 : i32, i32
  }
  func.func @transform_2(%arg0: i32) -> (i32, i32) {
    %c0_i32 = arith.constant 0 : i32
    %c0_i32_0 = arith.constant 0 : i32
    %c0_i32_1 = arith.constant 0 : i32
    return %c0_i32, %c0_i32_0 : i32, i32
  }
  func.func @transform_3(%arg0: i32) -> (i32, i32) {
    %c0_i32 = arith.constant 0 : i32
    %c0_i32_0 = arith.constant 0 : i32
    %c0_i32_1 = arith.constant 0 : i32
    return %c0_i32, %c0_i32_0 : i32, i32
  }
  func.func @transform_4(%arg0: i32) -> (i32, i32) {
    %c0_i32 = arith.constant 0 : i32
    %c0_i32_0 = arith.constant 0 : i32
    %c0_i32_1 = arith.constant 0 : i32
    return %c0_i32, %c0_i32_0 : i32, i32
  }
  func.func @transform_5(%arg0: i32) -> (i32, i32) {
    %c0_i32 = arith.constant 0 : i32
    %c0_i32_0 = arith.constant 0 : i32
    %c0_i32_1 = arith.constant 0 : i32
    return %c0_i32, %c0_i32_0 : i32, i32
  }
  func.func @transform_6(%arg0: i32) -> (i32, i32) {
    %c0_i32 = arith.constant 0 : i32
    %c0_i32_0 = arith.constant 0 : i32
    %c0_i32_1 = arith.constant 0 : i32
    return %c0_i32, %c0_i32_0 : i32, i32
  }
  func.func @transform_7(%arg0: i32) -> (i32, i32) {
    %c0_i32 = arith.constant 0 : i32
    %c0_i32_0 = arith.constant 0 : i32
    %c0_i32_1 = arith.constant 0 : i32
    return %c0_i32, %c0_i32_0 : i32, i32
  }
  func.func @transform_8(%arg0: i32) -> (i32, i32) {
    %c0_i32 = arith.constant 0 : i32
    %c0_i32_0 = arith.constant 0 : i32
    %c0_i32_1 = arith.constant 0 : i32
    return %c0_i32, %c0_i32_0 : i32, i32
  }
  func.func @transform_9(%arg0: i32) -> (i32, i32) {
    %c0_i32 = arith.constant 0 : i32
    %c0_i32_0 = arith.constant 0 : i32
    %c0_i32_1 = arith.constant 0 : i32
    return %c0_i32, %c0_i32_0 : i32, i32
  }
  func.func @transform_10(%arg0: i32) -> (i32, i32) {
    %c0_i32 = arith.constant 0 : i32
    %c0_i32_0 = arith.constant 0 : i32
    return %arg0, %c0_i32 : i32, i32
  }
}

</mosaic_0001>

<llo_original>
// kernel: tpu_custom_call.1
$region0: #{tpu_custom_call.1}
  #allocation0 [shape = 'u32[]', space=smem, size = 0x4, offset = 0x4, fixed_abs, tag = 'smem constant byte address 0x4 - core index']
  #allocation1 [shape = 'u32[144,128]{1,0:T(1,128)}', space=vmem, size = 0x12000, scoped, tag = 'internal scratch']
  #allocation2 [shape = 'f32[8,16,128]{2,1,0:T(8,128)}', space=vmem, size = 0x10000, scoped, tag = 'scratch operand']
  %s0 = inlined_call_operand.hbm [shape: f32[8,1,16,64], index: 0, kind: input, shape index: {}]
  %s1 = inlined_call_operand.hbm [shape: f32[64,384], index: 1, kind: input, shape index: {}]
  %s2 = inlined_call_operand.hbm [shape: f32[128,384], index: 2, kind: input, shape index: {}]
  %s3 = inlined_call_operand.vmem [shape: f32[1,384], index: 3, kind: input, shape index: {}]
  %s4 = inlined_call_operand.vmem [shape: f32[1,128], index: 4, kind: input, shape index: {}]
  %s5 = inlined_call_operand.vmem [shape: f32[2,128], index: 5, kind: input, shape index: {}]
  %s6 = inlined_call_operand.vmem [shape: f32[1,2], index: 6, kind: input, shape index: {}]
  %s7 = inlined_call_operand.vmem [shape: f32[1,128], index: 7, kind: input, shape index: {}]
  %s8 = inlined_call_operand.hbm [shape: f32[128,128], index: 8, kind: input, shape index: {}]
  %s9 = inlined_call_operand.vmem [shape: f32[1,128], index: 9, kind: input, shape index: {}]
  %s10 = inlined_call_operand.hbm [shape: f32[16,128], index: 10, kind: output, shape index: {}]
  %s11 = sld [smem:[#allocation0]]
  $region66: #{tpu_custom_call.1} parent=0
    _
  %s13 = ssub.s32 1, %s11
  %s14 = scalar_select 0, %s13, %s11
  $region1: #{tpu_custom_call.1} parent=0
    #allocation3 [shape = 'u8[65536]{0}', space=vmem, size = 0x10000, scoped, tag = 'input window, operand 0, single buffered']
    #allocation4 [shape = 's32[1]{0}', space=sflag, size = 0x4, scoped, tag = 'scoped memory for tpu_custom_call.1']
    #allocation5 [shape = 's32[1]{0}', space=sflag, size = 0x4, scoped, tag = 'scoped memory for tpu_custom_call.1']
    #allocation6 [shape = 'u8[98304]{0}', space=vmem, size = 0x18000, scoped, tag = 'input window, operand 1, single buffered']
    #allocation7 [shape = 's32[1]{0}', space=sflag, size = 0x4, scoped, tag = 'scoped memory for tpu_custom_call.1']
    #allocation8 [shape = 'u8[196608]{0}', space=vmem, size = 0x30000, scoped, tag = 'input window, operand 2, single buffered']
    #allocation9 [shape = 'u8[65536]{0}', space=vmem, size = 0x10000, scoped, tag = 'input window, operand 8, single buffered']
    #allocation10 [shape = 's32[1]{0}', space=sflag, size = 0x4, scoped, tag = 'scoped memory for tpu_custom_call.1']
    #allocation11 [shape = 'u8[8192]{0}', space=vmem, size = 0x2000, scoped, tag = 'output window, operand 0, single buffered']
    %15 = vsyncpa [#allocation4], 0
    %16 = vsyncpa [#allocation7], 0
    %17 = vsyncpa [#allocation10], 0
    %18 = vsyncpa [#allocation5], 0
    // Predicated region
    $region2: #{tpu_custom_call.1} parent=1 // pred_check
      _
    $region3: #{tpu_custom_call.1} parent=1 // pred_check_branch
      %20 = sbr.rel (0) target = $region5
    $region4: #{tpu_custom_call.1} parent=1 // pred_region
      %s22 = ssub.s32 2048, 2048
      %23 = vsyncadd [#allocation4], %s22
      %s24 = sshll.u32 [#allocation3], 4
      %s25 = int_to_ptr.vmem [resolvable:$true] %s24
      %30 = dma.hbm_to_vmem [thread:$0]  %s0, 2048, %s25, [#allocation4], 128, 128, 8
    $region5: #{tpu_custom_call.1} parent=1 // pred_fallthru
      _
    // Predicated region
    $region6: #{tpu_custom_call.1} parent=1 // pred_check
      _
    $region7: #{tpu_custom_call.1} parent=1 // pred_check_branch
      %32 = sbr.rel (0) target = $region9
    $region8: #{tpu_custom_call.1} parent=1 // pred_region
      %s34 = ssub.s32 3072, 3072
      %35 = vsyncadd [#allocation7], %s34
      %s36 = sshll.u32 [#allocation6], 4
      %s37 = int_to_ptr.vmem [resolvable:$true] %s36
      %42 = dma.hbm_to_vmem [thread:$0]  %s1, 3072, %s37, [#allocation7], 384, 384, 24
    $region9: #{tpu_custom_call.1} parent=1 // pred_fallthru
      _
    // Predicated region
    $region10: #{tpu_custom_call.1} parent=1 // pred_check
      _
    $region11: #{tpu_custom_call.1} parent=1 // pred_check_branch
      %44 = sbr.rel (0) target = $region13
    $region12: #{tpu_custom_call.1} parent=1 // pred_region
      %s46 = ssub.s32 6144, 6144
      %47 = vsyncadd [#allocation7], %s46
      %s48 = sshll.u32 [#allocation8], 4
      %s49 = int_to_ptr.vmem [resolvable:$true] %s48
      %54 = dma.hbm_to_vmem [thread:$0]  %s2, 6144, %s49, [#allocation7], 384, 384, 24
    $region13: #{tpu_custom_call.1} parent=1 // pred_fallthru
      _
    // Predicated region
    $region14: #{tpu_custom_call.1} parent=1 // pred_check
      _
    $region15: #{tpu_custom_call.1} parent=1 // pred_check_branch
      %56 = sbr.rel (0) target = $region17
    $region16: #{tpu_custom_call.1} parent=1 // pred_region
      _
    $region17: #{tpu_custom_call.1} parent=1 // pred_fallthru
      _
    // Predicated region
    $region18: #{tpu_custom_call.1} parent=1 // pred_check
      _
    $region19: #{tpu_custom_call.1} parent=1 // pred_check_branch
      %58 = sbr.rel (0) target = $region21
    $region20: #{tpu_custom_call.1} parent=1 // pred_region
      _
    $region21: #{tpu_custom_call.1} parent=1 // pred_fallthru
      _
    // Predicated region
    $region22: #{tpu_custom_call.1} parent=1 // pred_check
      _
    $region23: #{tpu_custom_call.1} parent=1 // pred_check_branch
      %60 = sbr.rel (0) target = $region25
    $region24: #{tpu_custom_call.1} parent=1 // pred_region
      _
    $region25: #{tpu_custom_call.1} parent=1 // pred_fallthru
      _
    // Predicated region
    $region26: #{tpu_custom_call.1} parent=1 // pred_check
      _
    $region27: #{tpu_custom_call.1} parent=1 // pred_check_branch
      %62 = sbr.rel (0) target = $region29
    $region28: #{tpu_custom_call.1} parent=1 // pred_region
      _
    $region29: #{tpu_custom_call.1} parent=1 // pred_fallthru
      _
    // Predicated region
    $region30: #{tpu_custom_call.1} parent=1 // pred_check
      _
    $region31: #{tpu_custom_call.1} parent=1 // pred_check_branch
      %64 = sbr.rel (0) target = $region33
    $region32: #{tpu_custom_call.1} parent=1 // pred_region
      _
    $region33: #{tpu_custom_call.1} parent=1 // pred_fallthru
      _
    // Predicated region
    $region34: #{tpu_custom_call.1} parent=1 // pred_check
      _
    $region35: #{tpu_custom_call.1} parent=1 // pred_check_branch
      %66 = sbr.rel (0) target = $region37
    $region36: #{tpu_custom_call.1} parent=1 // pred_region
      %s68 = ssub.s32 2048, 2048
      %69 = vsyncadd [#allocation10], %s68
      %s70 = sshll.u32 [#allocation9], 4
      %s71 = int_to_ptr.vmem [resolvable:$true] %s70
      %76 = dma.hbm_to_vmem [thread:$0]  %s8, 2048, %s71, [#allocation10], 128, 128, 8
    $region37: #{tpu_custom_call.1} parent=1 // pred_fallthru
      _
    // Predicated region
    $region38: #{tpu_custom_call.1} parent=1 // pred_check
      _
    $region39: #{tpu_custom_call.1} parent=1 // pred_check_branch
      %78 = sbr.rel (0) target = $region41
    $region40: #{tpu_custom_call.1} parent=1 // pred_region
      _
    $region41: #{tpu_custom_call.1} parent=1 // pred_fallthru
      _
    // Predicated region
    $region42: #{tpu_custom_call.1} parent=1 // pred_check
      _
    $region43: #{tpu_custom_call.1} parent=1 // pred_check_branch
      %80 = sbr.rel (0) target = $region45
    $region44: #{tpu_custom_call.1} parent=1 // pred_region
      %81 = dma.done [#allocation4], 2048
    $region45: #{tpu_custom_call.1} parent=1 // pred_fallthru
      _
    // Predicated region
    $region46: #{tpu_custom_call.1} parent=1 // pred_check
      _
    $region47: #{tpu_custom_call.1} parent=1 // pred_check_branch
      %83 = sbr.rel (0) target = $region49
    $region48: #{tpu_custom_call.1} parent=1 // pred_region
      %84 = dma.done [#allocation7], 3072
    $region49: #{tpu_custom_call.1} parent=1 // pred_fallthru
      _
    // Predicated region
    $region50: #{tpu_custom_call.1} parent=1 // pred_check
      _
    $region51: #{tpu_custom_call.1} parent=1 // pred_check_branch
      %86 = sbr.rel (0) target = $region53
    $region52: #{tpu_custom_call.1} parent=1 // pred_region
      %87 = dma.done [#allocation7], 6144
    $region53: #{tpu_custom_call.1} parent=1 // pred_fallthru
      _
    // Predicated region
    $region54: #{tpu_custom_call.1} parent=1 // pred_check
      _
    $region55: #{tpu_custom_call.1} parent=1 // pred_check_branch
      %89 = sbr.rel (0) target = $region57
    $region56: #{tpu_custom_call.1} parent=1 // pred_region
      %90 = dma.done [#allocation10], 2048
    $region57: #{tpu_custom_call.1} parent=1 // pred_fallthru
      _
    %v91 = vld [vmem:[#allocation8] sm:$0xff]
    %v92 = vld [vmem:[#allocation8 + $0x8] sm:$0xff]
    %v93 = vld [vmem:[#allocation8 + $0x10] sm:$0xff]
    %v94 = vld [vmem:[#allocation8 + $0x18] sm:$0xff]
    %v95 = vld [vmem:[#allocation8 + $0x20] sm:$0xff]
    %v96 = vld [vmem:[#allocation8 + $0x28] sm:$0xff]
    %v97 = vld [vmem:[#allocation8 + $0x30] sm:$0xff]
    %v98 = vld [vmem:[#allocation8 + $0x38] sm:$0xff]
    %v99 = vld [vmem:[#allocation8 + $0x40] sm:$0xff]
    %v100 = vld [vmem:[#allocation8 + $0x48] sm:$0xff]
    %v101 = vld [vmem:[#allocation8 + $0x50] sm:$0xff]
    %v102 = vld [vmem:[#allocation8 + $0x58] sm:$0xff]
    %v103 = vld [vmem:[#allocation8 + $0x60] sm:$0xff]
    %v104 = vld [vmem:[#allocation8 + $0x68] sm:$0xff]
    %v105 = vld [vmem:[#allocation8 + $0x70] sm:$0xff]
    %v106 = vld [vmem:[#allocation8 + $0x78] sm:$0xff]
    %v107 = vld [vmem:[#allocation8 + $0x80] sm:$0xff]
    %v108 = vld [vmem:[#allocation8 + $0x88] sm:$0xff]
    %v109 = vld [vmem:[#allocation8 + $0x90] sm:$0xff]
    %v110 = vld [vmem:[#allocation8 + $0x98] sm:$0xff]
    %v111 = vld [vmem:[#allocation8 + $0xa0] sm:$0xff]
    %v112 = vld [vmem:[#allocation8 + $0xa8] sm:$0xff]
    %v113 = vld [vmem:[#allocation8 + $0xb0] sm:$0xff]
    %v114 = vld [vmem:[#allocation8 + $0xb8] sm:$0xff]
    %v115 = vld [vmem:[#allocation8 + $0xc0] sm:$0xff]
    %v116 = vld [vmem:[#allocation8 + $0xc8] sm:$0xff]
    %v117 = vld [vmem:[#allocation8 + $0xd0] sm:$0xff]
    %v118 = vld [vmem:[#allocation8 + $0xd8] sm:$0xff]
    %v119 = vld [vmem:[#allocation8 + $0xe0] sm:$0xff]
    %v120 = vld [vmem:[#allocation8 + $0xe8] sm:$0xff]
    %v121 = vld [vmem:[#allocation8 + $0xf0] sm:$0xff]
    %v122 = vld [vmem:[#allocation8 + $0xf8] sm:$0xff]
    %v123 = vld [vmem:[#allocation8 + $0x100] sm:$0xff]
    %v124 = vld [vmem:[#allocation8 + $0x108] sm:$0xff]
    %v125 = vld [vmem:[#allocation8 + $0x110] sm:$0xff]
    %v126 = vld [vmem:[#allocation8 + $0x118] sm:$0xff]
    %v127 = vld [vmem:[#allocation8 + $0x120] sm:$0xff]
    %v128 = vld [vmem:[#allocation8 + $0x128] sm:$0xff]
    %v129 = vld [vmem:[#allocation8 + $0x130] sm:$0xff]
    %v130 = vld [vmem:[#allocation8 + $0x138] sm:$0xff]
    %v131 = vld [vmem:[#allocation8 + $0x140] sm:$0xff]
    %v132 = vld [vmem:[#allocation8 + $0x148] sm:$0xff]
    %v133 = vld [vmem:[#allocation8 + $0x150] sm:$0xff]
    %v134 = vld [vmem:[#allocation8 + $0x158] sm:$0xff]
    %v135 = vld [vmem:[#allocation8 + $0x160] sm:$0xff]
    %v136 = vld [vmem:[#allocation8 + $0x168] sm:$0xff]
    %v137 = vld [vmem:[#allocation8 + $0x170] sm:$0xff]
    %v138 = vld [vmem:[#allocation8 + $0x178] sm:$0xff]
    %v139 = vld [vmem:[%s4] sm:$0x1]
    %v140 = vld [vmem:[#allocation3] sm:$0xff]
    %v141 = vld [vmem:[#allocation3 + $0x8] sm:$0xff]
    %v142 = vld [vmem:[#allocation3 + $0x10] sm:$0xff]
    %v143 = vld [vmem:[#allocation3 + $0x18] sm:$0xff]
    %v144 = vld [vmem:[#allocation3 + $0x20] sm:$0xff]
    %v145 = vld [vmem:[#allocation3 + $0x28] sm:$0xff]
    %v146 = vld [vmem:[#allocation3 + $0x30] sm:$0xff]
    %v147 = vld [vmem:[#allocation3 + $0x38] sm:$0xff]
    %v148 = vld [vmem:[#allocation3 + $0x40] sm:$0xff]
    %v149 = vld [vmem:[#allocation3 + $0x48] sm:$0xff]
    %v150 = vld [vmem:[#allocation3 + $0x50] sm:$0xff]
    %v151 = vld [vmem:[#allocation3 + $0x58] sm:$0xff]
    %v152 = vld [vmem:[#allocation3 + $0x60] sm:$0xff]
    %v153 = vld [vmem:[#allocation3 + $0x68] sm:$0xff]
    %v154 = vld [vmem:[#allocation3 + $0x70] sm:$0xff]
    %v155 = vld [vmem:[#allocation3 + $0x78] sm:$0xff]
    %v156 = vld [vmem:[#allocation6] sm:$0xff]
    %v157 = vld [vmem:[#allocation6 + $0x8] sm:$0xff]
    %v158 = vld [vmem:[#allocation6 + $0x10] sm:$0xff]
    %v159 = vld [vmem:[#allocation6 + $0x18] sm:$0xff]
    %v160 = vld [vmem:[#allocation6 + $0x20] sm:$0xff]
    %v161 = vld [vmem:[#allocation6 + $0x28] sm:$0xff]
    %v162 = vld [vmem:[#allocation6 + $0x30] sm:$0xff]
    %v163 = vld [vmem:[#allocation6 + $0x38] sm:$0xff]
    %v164 = vld [vmem:[#allocation6 + $0x40] sm:$0xff]
    %v165 = vld [vmem:[#allocation6 + $0x48] sm:$0xff]
    %v166 = vld [vmem:[#allocation6 + $0x50] sm:$0xff]
    %v167 = vld [vmem:[#allocation6 + $0x58] sm:$0xff]
    %v168 = vld [vmem:[#allocation6 + $0x60] sm:$0xff]
    %v169 = vld [vmem:[#allocation6 + $0x68] sm:$0xff]
    %v170 = vld [vmem:[#allocation6 + $0x70] sm:$0xff]
    %v171 = vld [vmem:[#allocation6 + $0x78] sm:$0xff]
    %v172 = vld [vmem:[#allocation6 + $0x80] sm:$0xff]
    %v173 = vld [vmem:[#allocation6 + $0x88] sm:$0xff]
    %v174 = vld [vmem:[#allocation6 + $0x90] sm:$0xff]
    %v175 = vld [vmem:[#allocation6 + $0x98] sm:$0xff]
    %v176 = vld [vmem:[#allocation6 + $0xa0] sm:$0xff]
    %v177 = vld [vmem:[#allocation6 + $0xa8] sm:$0xff]
    %v178 = vld [vmem:[#allocation6 + $0xb0] sm:$0xff]
    %v179 = vld [vmem:[#allocation6 + $0xb8] sm:$0xff]
    %v180 = vld [vmem:[%s3] sm:$0x7]
    %v182 = vlaneseq
    %v183 = vshrl.u32 %v182, 7
    %v184 = vsub.s32 0, %v183
    %v185 = vrot.slane %v180, %v184
    %v186 = vlaneseq
    %v187 = vshrl.u32 %v186, 7
    %v188 = vsub.s32 1, %v187
    %v189 = vrot.slane %v180, %v188
    %v190 = vlaneseq
    %v191 = vshrl.u32 %v190, 7
    %v192 = vsub.s32 2, %v191
    %v193 = vrot.slane %v180, %v192
    %vm197 = vcmask 523264
    %v199 = vsel %vm197, %v140, 0
    %v202 = vsel %vm197, %v141, 0
    %v205 = vsel %vm197, %v142, 0
    %v208 = vsel %vm197, %v143, 0
    %v211 = vsel %vm197, %v144, 0
    %v214 = vsel %vm197, %v145, 0
    %v217 = vsel %vm197, %v146, 0
    %v220 = vsel %vm197, %v147, 0
    %v223 = vsel %vm197, %v148, 0
    %v226 = vsel %vm197, %v149, 0
    %v229 = vsel %vm197, %v150, 0
    %v232 = vsel %vm197, %v151, 0
    %v235 = vsel %vm197, %v152, 0
    %v238 = vsel %vm197, %v153, 0
    %v241 = vsel %vm197, %v154, 0
    %v244 = vsel %vm197, %v155, 0
    %246 = vmatprep.subr.mxu0 %v157
    %247 = vmatpush1.msra.mxu0 %v156
    %248 = vmatprep.subr.mxu0 %v160
    %249 = vmatpush1.msra.mxu0 %v159
    %250 = vmatprep.subr.mxu0 %v163
    %251 = vmatpush1.msra.mxu0 %v162
    %252 = vmatprep.subr.mxu0 %v166
    %253 = vmatpush1.msra.mxu0 %v165
    %254 = vmatprep.subr.mxu0 %v169
    %255 = vmatpush1.msra.mxu0 %v168
    %256 = vmatprep.subr.mxu0 %v172
    %257 = vmatpush1.msra.mxu0 %v171
    %258 = vmatprep.subr.mxu0 %v175
    %259 = vmatpush1.msra.mxu0 %v174
    %260 = vmatprep.subr.mxu0 %v178
    %261 = vmatpush1.msra.mxu0 %v177
    %262 = vmatprep.subr.mxu0 0.0
    %263 = vmatpush1.msra.mxu0 0.0
    %264 = vmatprep.subr.mxu0 0.0
    %265 = vmatpush1.msra.mxu0 0.0
    %266 = vmatprep.subr.mxu0 0.0
    %267 = vmatpush1.msra.mxu0 0.0
    %268 = vmatprep.subr.mxu0 0.0
    %269 = vmatpush1.msra.mxu0 0.0
    %270 = vmatprep.subr.mxu0 0.0
    %271 = vmatpush1.msra.mxu0 0.0
    %272 = vmatprep.subr.mxu0 0.0
    %273 = vmatpush1.msra.mxu0 0.0
    %274 = vmatprep.subr.mxu0 0.0
    %275 = vmatpush1.msra.mxu0 0.0
    %276 = vmatprep.subr.mxu0 0.0
    %277 = vmatpush1.msra.mxu0 0.0
    %278 = vmatprep.subr.mxu0 0.0
    %279 = vmatpush1.msra.mxu0 0.0
    %280 = vmatprep.subr.mxu0 0.0
    %281 = vmatpush1.msra.mxu0 0.0
    %282 = vmatprep.subr.mxu0 0.0
    %283 = vmatpush1.msra.mxu0 0.0
    %284 = vmatprep.subr.mxu0 0.0
    %285 = vmatpush1.msra.mxu0 0.0
    %286 = vmatprep.subr.mxu0 0.0
    %287 = vmatpush1.msra.mxu0 0.0
    %288 = vmatprep.subr.mxu0 0.0
    %289 = vmatpush1.msra.mxu0 0.0
    %290 = vmatprep.subr.mxu0 0.0
    %291 = vmatpush1.msra.mxu0 0.0
    %292 = vmatprep.subr.mxu0 0.0
    %293 = vmatpush1.msra.mxu0 0.0
    %294 = vmatprep.subr.mxu0 0.0
    %295 = vmatpush1.msra.mxu0 0.0
    %296 = vmatprep.subr.mxu0 0.0
    %297 = vmatpush1.msra.mxu0 0.0
    %298 = vmatprep.subr.mxu0 0.0
    %299 = vmatpush1.msra.mxu0 0.0
    %300 = vmatprep.subr.mxu0 0.0
    %301 = vmatpush1.msra.mxu0 0.0
    %302 = vmatprep.subr.mxu0 0.0
    %303 = vmatpush1.msra.mxu0 0.0
    %304 = vmatprep.subr.mxu0 0.0
    %305 = vmatpush1.msra.mxu0 0.0
    %306 = vmatprep.subr.mxu0 0.0
    %307 = vmatpush1.msra.mxu0 0.0
    %308 = vmatprep.subr.mxu0 0.0
    %309 = vmatpush1.msra.mxu0 0.0
    %310 = vmatprep.mubr.f32.mxu0 0.0
    %311 = vmatmul.mubr.f32.gmra.mrb[0].mxu0 %v199
    %v312 = vpop.f32.mrb[0].mxu0
    %v313 = vadd.f32 %v185, %v312
    %v314 = vpop.f32.mrb[0].mxu0
    %v315 = vadd.f32 %v189, %v314
    %316 = vmatprep.mubr.f32.mxu0 0.0
    %317 = vmatmul.mubr.f32.gmra.mrb[0].mxu0 %v202
    %v318 = vpop.f32.mrb[0].mxu0
    %v319 = vadd.f32 %v185, %v318
    %v320 = vpop.f32.mrb[0].mxu0
    %v321 = vadd.f32 %v189, %v320
    %322 = vmatprep.mubr.f32.mxu0 0.0
    %323 = vmatmul.mubr.f32.gmra.mrb[0].mxu0 %v205
    %v324 = vpop.f32.mrb[0].mxu0
    %v325 = vadd.f32 %v185, %v324
    %v326 = vpop.f32.mrb[0].mxu0
    %v327 = vadd.f32 %v189, %v326
    %328 = vmatprep.mubr.f32.mxu0 0.0
    %329 = vmatmul.mubr.f32.gmra.mrb[0].mxu0 %v208
    %v330 = vpop.f32.mrb[0].mxu0
    %v331 = vadd.f32 %v185, %v330
    %v332 = vpop.f32.mrb[0].mxu0
    %v333 = vadd.f32 %v189, %v332
    %334 = vmatprep.mubr.f32.mxu0 0.0
    %335 = vmatmul.mubr.f32.gmra.mrb[0].mxu0 %v211
    %v336 = vpop.f32.mrb[0].mxu0
    %v337 = vadd.f32 %v185, %v336
    %v338 = vpop.f32.mrb[0].mxu0
    %v339 = vadd.f32 %v189, %v338
    %340 = vmatprep.mubr.f32.mxu0 0.0
    %341 = vmatmul.mubr.f32.gmra.mrb[0].mxu0 %v214
    %v342 = vpop.f32.mrb[0].mxu0
    %v343 = vadd.f32 %v185, %v342
    %v344 = vpop.f32.mrb[0].mxu0
    %v345 = vadd.f32 %v189, %v344
    %346 = vmatprep.mubr.f32.mxu0 0.0
    %347 = vmatmul.mubr.f32.gmra.mrb[0].mxu0 %v217
    %v348 = vpop.f32.mrb[0].mxu0
    %v349 = vadd.f32 %v185, %v348
    %v350 = vpop.f32.mrb[0].mxu0
    %v351 = vadd.f32 %v189, %v350
    %352 = vmatprep.mubr.f32.mxu0 0.0
    %353 = vmatmul.mubr.f32.gmra.mrb[0].mxu0 %v220
    %v354 = vpop.f32.mrb[0].mxu0
    %v355 = vadd.f32 %v185, %v354
    %v356 = vpop.f32.mrb[0].mxu0
    %v357 = vadd.f32 %v189, %v356
    %358 = vmatprep.mubr.f32.mxu0 0.0
    %359 = vmatmul.mubr.f32.gmra.mrb[0].mxu0 %v223
    %v360 = vpop.f32.mrb[0].mxu0
    %v361 = vadd.f32 %v185, %v360
    %v362 = vpop.f32.mrb[0].mxu0
    %v363 = vadd.f32 %v189, %v362
    %364 = vmatprep.mubr.f32.mxu0 0.0
    %365 = vmatmul.mubr.f32.gmra.mrb[0].mxu0 %v226
    %v366 = vpop.f32.mrb[0].mxu0
    %v367 = vadd.f32 %v185, %v366
    %v368 = vpop.f32.mrb[0].mxu0
    %v369 = vadd.f32 %v189, %v368
    %370 = vmatprep.mubr.f32.mxu0 0.0
    %371 = vmatmul.mubr.f32.gmra.mrb[0].mxu0 %v229
    %v372 = vpop.f32.mrb[0].mxu0
    %v373 = vadd.f32 %v185, %v372
    %v374 = vpop.f32.mrb[0].mxu0
    %v375 = vadd.f32 %v189, %v374
    %376 = vmatprep.mubr.f32.mxu0 0.0
    %377 = vmatmul.mubr.f32.gmra.mrb[0].mxu0 %v232
    %v378 = vpop.f32.mrb[0].mxu0
    %v379 = vadd.f32 %v185, %v378
    %v380 = vpop.f32.mrb[0].mxu0
    %v381 = vadd.f32 %v189, %v380
    %382 = vmatprep.mubr.f32.mxu0 0.0
    %383 = vmatmul.mubr.f32.gmra.mrb[0].mxu0 %v235
    %v384 = vpop.f32.mrb[0].mxu0
    %v385 = vadd.f32 %v185, %v384
    %v386 = vpop.f32.mrb[0].mxu0
    %v387 = vadd.f32 %v189, %v386
    %388 = vmatprep.mubr.f32.mxu0 0.0
    %389 = vmatmul.mubr.f32.gmra.mrb[0].mxu0 %v238
    %v390 = vpop.f32.mrb[0].mxu0
    %v391 = vadd.f32 %v185, %v390
    %v392 = vpop.f32.mrb[0].mxu0
    %v393 = vadd.f32 %v189, %v392
    %394 = vmatprep.mubr.f32.mxu0 0.0
    %395 = vmatmul.mubr.f32.gmra.mrb[0].mxu0 %v241
    %v396 = vpop.f32.mrb[0].mxu0
    %v397 = vadd.f32 %v185, %v396
    %v398 = vpop.f32.mrb[0].mxu0
    %v399 = vadd.f32 %v189, %v398
    %400 = vmatprep.mubr.f32.mxu0 0.0
    %401 = vmatmul.mubr.f32.gmra.mrb[0].mxu0 %v244
    %v402 = vpop.f32.mrb[0].mxu0
    %v403 = vadd.f32 %v185, %v402
    %v404 = vpop.f32.mrb[0].mxu0
    %v405 = vadd.f32 %v189, %v404
    %406 = vdwg.mxu0
    %407 = vmatprep.subr.mxu0 0.0
    %408 = vmatpush1.msra.mxu0 %v158
    %409 = vmatprep.subr.mxu0 0.0
    %410 = vmatpush1.msra.mxu0 %v161
    %411 = vmatprep.subr.mxu0 0.0
    %412 = vmatpush1.msra.mxu0 %v164
    %413 = vmatprep.subr.mxu0 0.0
    %414 = vmatpush1.msra.mxu0 %v167
    %415 = vmatprep.subr.mxu0 0.0
    %416 = vmatpush1.msra.mxu0 %v170
    %417 = vmatprep.subr.mxu0 0.0
    %418 = vmatpush1.msra.mxu0 %v173
    %419 = vmatprep.subr.mxu0 0.0
    %420 = vmatpush1.msra.mxu0 %v176
    %421 = vmatprep.subr.mxu0 0.0
    %422 = vmatpush1.msra.mxu0 %v179
    %423 = vmatprep.subr.mxu0 0.0
    %424 = vmatpush1.msra.mxu0 0.0
    %425 = vmatprep.subr.mxu0 0.0
    %426 = vmatpush1.msra.mxu0 0.0
    %427 = vmatprep.subr.mxu0 0.0
    %428 = vmatpush1.msra.mxu0 0.0
    %429 = vmatprep.subr.mxu0 0.0
    %430 = vmatpush1.msra.mxu0 0.0
    %431 = vmatprep.subr.mxu0 0.0
    %432 = vmatpush1.msra.mxu0 0.0
    %433 = vmatprep.subr.mxu0 0.0
    %434 = vmatpush1.msra.mxu0 0.0
    %435 = vmatprep.subr.mxu0 0.0
    %436 = vmatpush1.msra.mxu0 0.0
    %437 = vmatprep.subr.mxu0 0.0
    %438 = vmatpush1.msra.mxu0 0.0
    %439 = vmatprep.subr.mxu0 0.0
    %440 = vmatpush1.msra.mxu0 0.0
    %441 = vmatprep.subr.mxu0 0.0
    %442 = vmatpush1.msra.mxu0 0.0
    %443 = vmatprep.subr.mxu0 0.0
    %444 = vmatpush1.msra.mxu0 0.0
    %445 = vmatprep.subr.mxu0 0.0
    %446 = vmatpush1.msra.mxu0 0.0
    %447 = vmatprep.subr.mxu0 0.0
    %448 = vmatpush1.msra.mxu0 0.0
    %449 = vmatprep.subr.mxu0 0.0
    %450 = vmatpush1.msra.mxu0 0.0
    %451 = vmatprep.subr.mxu0 0.0
    %452 = vmatpush1.msra.mxu0 0.0
    %453 = vmatprep.subr.mxu0 0.0
    %454 = vmatpush1.msra.mxu0 0.0
    %455 = vmatprep.subr.mxu0 0.0
    %456 = vmatpush1.msra.mxu0 0.0
    %457 = vmatprep.subr.mxu0 0.0
    %458 = vmatpush1.msra.mxu0 0.0
    %459 = vmatprep.subr.mxu0 0.0
    %460 = vmatpush1.msra.mxu0 0.0
    %461 = vmatprep.subr.mxu0 0.0
    %462 = vmatpush1.msra.mxu0 0.0
    %463 = vmatprep.subr.mxu0 0.0
    %464 = vmatpush1.msra.mxu0 0.0
    %465 = vmatprep.subr.mxu0 0.0
    %466 = vmatpush1.msra.mxu0 0.0
    %467 = vmatprep.subr.mxu0 0.0
    %468 = vmatpush1.msra.mxu0 0.0
    %469 = vmatprep.subr.mxu0 0.0
    %470 = vmatpush1.msra.mxu0 0.0
    %471 = vmatprep.mubr.f32.mxu0 0.0
    %472 = vmatmul.mubr.f32.gmra.mrb[0].mxu0 %v199
    %v473 = vpop.f32.mrb[0].mxu0
    %v474 = vadd.f32 %v193, %v473
    %v475 = vpop.f32.mrb[0].mxu0
    %476 = vmatprep.mubr.f32.mxu0 0.0
    %477 = vmatmul.mubr.f32.gmra.mrb[0].mxu0 %v202
    %v478 = vpop.f32.mrb[0].mxu0
    %v479 = vadd.f32 %v193, %v478
    %v480 = vpop.f32.mrb[0].mxu0
    %481 = vmatprep.mubr.f32.mxu0 0.0
    %482 = vmatmul.mubr.f32.gmra.mrb[0].mxu0 %v205
    %v483 = vpop.f32.mrb[0].mxu0
    %v484 = vadd.f32 %v193, %v483
    %v485 = vpop.f32.mrb[0].mxu0
    %486 = vmatprep.mubr.f32.mxu0 0.0
    %487 = vmatmul.mubr.f32.gmra.mrb[0].mxu0 %v208
    %v488 = vpop.f32.mrb[0].mxu0
    %v489 = vadd.f32 %v193, %v488
    %v490 = vpop.f32.mrb[0].mxu0
    %491 = vmatprep.mubr.f32.mxu0 0.0
    %492 = vmatmul.mubr.f32.gmra.mrb[0].mxu0 %v211
    %v493 = vpop.f32.mrb[0].mxu0
    %v494 = vadd.f32 %v193, %v493
    %v495 = vpop.f32.mrb[0].mxu0
    %496 = vmatprep.mubr.f32.mxu0 0.0
    %497 = vmatmul.mubr.f32.gmra.mrb[0].mxu0 %v214
    %v498 = vpop.f32.mrb[0].mxu0
    %v499 = vadd.f32 %v193, %v498
    %v500 = vpop.f32.mrb[0].mxu0
    %501 = vmatprep.mubr.f32.mxu0 0.0
    %502 = vmatmul.mubr.f32.gmra.mrb[0].mxu0 %v217
    %v503 = vpop.f32.mrb[0].mxu0
    %v504 = vadd.f32 %v193, %v503
    %v505 = vpop.f32.mrb[0].mxu0
    %506 = vmatprep.mubr.f32.mxu0 0.0
    %507 = vmatmul.mubr.f32.gmra.mrb[0].mxu0 %v220
    %v508 = vpop.f32.mrb[0].mxu0
    %v509 = vadd.f32 %v193, %v508
    %v510 = vpop.f32.mrb[0].mxu0
    %511 = vmatprep.mubr.f32.mxu0 0.0
    %512 = vmatmul.mubr.f32.gmra.mrb[0].mxu0 %v223
    %v513 = vpop.f32.mrb[0].mxu0
    %v514 = vadd.f32 %v193, %v513
    %v515 = vpop.f32.mrb[0].mxu0
    %516 = vmatprep.mubr.f32.mxu0 0.0
    %517 = vmatmul.mubr.f32.gmra.mrb[0].mxu0 %v226
    %v518 = vpop.f32.mrb[0].mxu0
    %v519 = vadd.f32 %v193, %v518
    %v520 = vpop.f32.mrb[0].mxu0
    %521 = vmatprep.mubr.f32.mxu0 0.0
    %522 = vmatmul.mubr.f32.gmra.mrb[0].mxu0 %v229
    %v523 = vpop.f32.mrb[0].mxu0
    %v524 = vadd.f32 %v193, %v523
    %v525 = vpop.f32.mrb[0].mxu0
    %526 = vmatprep.mubr.f32.mxu0 0.0
    %527 = vmatmul.mubr.f32.gmra.mrb[0].mxu0 %v232
    %v528 = vpop.f32.mrb[0].mxu0
    %v529 = vadd.f32 %v193, %v528
    %v530 = vpop.f32.mrb[0].mxu0
    %531 = vmatprep.mubr.f32.mxu0 0.0
    %532 = vmatmul.mubr.f32.gmra.mrb[0].mxu0 %v235
    %v533 = vpop.f32.mrb[0].mxu0
    %v534 = vadd.f32 %v193, %v533
    %v535 = vpop.f32.mrb[0].mxu0
    %536 = vmatprep.mubr.f32.mxu0 0.0
    %537 = vmatmul.mubr.f32.gmra.mrb[0].mxu0 %v238
    %v538 = vpop.f32.mrb[0].mxu0
    %v539 = vadd.f32 %v193, %v538
    %v540 = vpop.f32.mrb[0].mxu0
    %541 = vmatprep.mubr.f32.mxu0 0.0
    %542 = vmatmul.mubr.f32.gmra.mrb[0].mxu0 %v241
    %v543 = vpop.f32.mrb[0].mxu0
    %v544 = vadd.f32 %v193, %v543
    %v545 = vpop.f32.mrb[0].mxu0
    %546 = vmatprep.mubr.f32.mxu0 0.0
    %547 = vmatmul.mubr.f32.gmra.mrb[0].mxu0 %v244
    %v548 = vpop.f32.mrb[0].mxu0
    %v549 = vadd.f32 %v193, %v548
    %v550 = vpop.f32.mrb[0].mxu0
    %551 = vdwg.mxu0
    %552 = vmatprep.subr.mxu0 %v92
    %553 = vmatpush1.msra.mxu0 %v91
    %554 = vmatprep.subr.mxu0 %v95
    %555 = vmatpush1.msra.mxu0 %v94
    %556 = vmatprep.subr.mxu0 %v98
    %557 = vmatpush1.msra.mxu0 %v97
    %558 = vmatprep.subr.mxu0 %v101
    %559 = vmatpush1.msra.mxu0 %v100
    %560 = vmatprep.subr.mxu0 %v104
    %561 = vmatpush1.msra.mxu0 %v103
    %562 = vmatprep.subr.mxu0 %v107
    %563 = vmatpush1.msra.mxu0 %v106
    %564 = vmatprep.subr.mxu0 %v110
    %565 = vmatpush1.msra.mxu0 %v109
    %566 = vmatprep.subr.mxu0 %v113
    %567 = vmatpush1.msra.mxu0 %v112
    %568 = vmatprep.subr.mxu0 %v116
    %569 = vmatpush1.msra.mxu0 %v115
    %570 = vmatprep.subr.mxu0 %v119
    %571 = vmatpush1.msra.mxu0 %v118
    %572 = vmatprep.subr.mxu0 %v122
    %573 = vmatpush1.msra.mxu0 %v121
    %574 = vmatprep.subr.mxu0 %v125
    %575 = vmatpush1.msra.mxu0 %v124
    %576 = vmatprep.subr.mxu0 %v128
    %577 = vmatpush1.msra.mxu0 %v127
    %578 = vmatprep.subr.mxu0 %v131
    %579 = vmatpush1.msra.mxu0 %v130
    %580 = vmatprep.subr.mxu0 %v134
    %581 = vmatpush1.msra.mxu0 %v133
    %582 = vmatprep.subr.mxu0 %v137
    %583 = vmatpush1.msra.mxu0 %v136
    %584 = vmatprep.subr.mxu0 0.0
    %585 = vmatpush1.msra.mxu0 0.0
    %586 = vmatprep.subr.mxu0 0.0
    %587 = vmatpush1.msra.mxu0 0.0
    %588 = vmatprep.subr.mxu0 0.0
    %589 = vmatpush1.msra.mxu0 0.0
    %590 = vmatprep.subr.mxu0 0.0
    %591 = vmatpush1.msra.mxu0 0.0
    %592 = vmatprep.subr.mxu0 0.0
    %593 = vmatpush1.msra.mxu0 0.0
    %594 = vmatprep.subr.mxu0 0.0
    %595 = vmatpush1.msra.mxu0 0.0
    %596 = vmatprep.subr.mxu0 0.0
    %597 = vmatpush1.msra.mxu0 0.0
    %598 = vmatprep.subr.mxu0 0.0
    %599 = vmatpush1.msra.mxu0 0.0
    %600 = vmatprep.subr.mxu0 0.0
    %601 = vmatpush1.msra.mxu0 0.0
    %602 = vmatprep.subr.mxu0 0.0
    %603 = vmatpush1.msra.mxu0 0.0
    %604 = vmatprep.subr.mxu0 0.0
    %605 = vmatpush1.msra.mxu0 0.0
    %606 = vmatprep.subr.mxu0 0.0
    %607 = vmatpush1.msra.mxu0 0.0
    %608 = vmatprep.subr.mxu0 0.0
    %609 = vmatpush1.msra.mxu0 0.0
    %610 = vmatprep.subr.mxu0 0.0
    %611 = vmatpush1.msra.mxu0 0.0
    %612 = vmatprep.subr.mxu0 0.0
    %613 = vmatpush1.msra.mxu0 0.0
    %614 = vmatprep.subr.mxu0 0.0
    %615 = vmatpush1.msra.mxu0 0.0
    %616 = vmatprep.mubr.f32.mxu0 0.0
    %617 = vmatmul.mubr.f32.gmra.mrb[0].mxu0 0.0
    %v618 = vpop.f32.mrb[0].mxu0
    %v619 = vadd.f32 0.0, %v618
    %v620 = vpop.f32.mrb[0].mxu0
    %v621 = vadd.f32 0.0, %v620
    %622 = vmatprep.mubr.f32.mxu0 0.0
    %623 = vmatmul.mubr.f32.gmra.mrb[0].mxu0 0.0
    %v624 = vpop.f32.mrb[0].mxu0
    %v625 = vadd.f32 0.0, %v624
    %v626 = vpop.f32.mrb[0].mxu0
    %v627 = vadd.f32 0.0, %v626
    %628 = vdwg.mxu0
    %629 = vmatprep.subr.mxu0 0.0
    %630 = vmatpush1.msra.mxu0 %v93
    %631 = vmatprep.subr.mxu0 0.0
    %632 = vmatpush1.msra.mxu0 %v96
    %633 = vmatprep.subr.mxu0 0.0
    %634 = vmatpush1.msra.mxu0 %v99
    %635 = vmatprep.subr.mxu0 0.0
    %636 = vmatpush1.msra.mxu0 %v102
    %637 = vmatprep.subr.mxu0 0.0
    %638 = vmatpush1.msra.mxu0 %v105
    %639 = vmatprep.subr.mxu0 0.0
    %640 = vmatpush1.msra.mxu0 %v108
    %641 = vmatprep.subr.mxu0 0.0
    %642 = vmatpush1.msra.mxu0 %v111
    %643 = vmatprep.subr.mxu0 0.0
    %644 = vmatpush1.msra.mxu0 %v114
    %645 = vmatprep.subr.mxu0 0.0
    %646 = vmatpush1.msra.mxu0 %v117
    %647 = vmatprep.subr.mxu0 0.0
    %648 = vmatpush1.msra.mxu0 %v120
    %649 = vmatprep.subr.mxu0 0.0
    %650 = vmatpush1.msra.mxu0 %v123
    %651 = vmatprep.subr.mxu0 0.0
    %652 = vmatpush1.msra.mxu0 %v126
    %653 = vmatprep.subr.mxu0 0.0
    %654 = vmatpush1.msra.mxu0 %v129
    %655 = vmatprep.subr.mxu0 0.0
    %656 = vmatpush1.msra.mxu0 %v132
    %657 = vmatprep.subr.mxu0 0.0
    %658 = vmatpush1.msra.mxu0 %v135
    %659 = vmatprep.subr.mxu0 0.0
    %660 = vmatpush1.msra.mxu0 %v138
    %661 = vmatprep.subr.mxu0 0.0
    %662 = vmatpush1.msra.mxu0 0.0
    %663 = vmatprep.subr.mxu0 0.0
    %664 = vmatpush1.msra.mxu0 0.0
    %665 = vmatprep.subr.mxu0 0.0
    %666 = vmatpush1.msra.mxu0 0.0
    %667 = vmatprep.subr.mxu0 0.0
    %668 = vmatpush1.msra.mxu0 0.0
    %669 = vmatprep.subr.mxu0 0.0
    %670 = vmatpush1.msra.mxu0 0.0
    %671 = vmatprep.subr.mxu0 0.0
    %672 = vmatpush1.msra.mxu0 0.0
    %673 = vmatprep.subr.mxu0 0.0
    %674 = vmatpush1.msra.mxu0 0.0
    %675 = vmatprep.subr.mxu0 0.0
    %676 = vmatpush1.msra.mxu0 0.0
    %677 = vmatprep.subr.mxu0 0.0
    %678 = vmatpush1.msra.mxu0 0.0
    %679 = vmatprep.subr.mxu0 0.0
    %680 = vmatpush1.msra.mxu0 0.0
    %681 = vmatprep.subr.mxu0 0.0
    %682 = vmatpush1.msra.mxu0 0.0
    %683 = vmatprep.subr.mxu0 0.0
    %684 = vmatpush1.msra.mxu0 0.0
    %685 = vmatprep.subr.mxu0 0.0
    %686 = vmatpush1.msra.mxu0 0.0
    %687 = vmatprep.subr.mxu0 0.0
    %688 = vmatpush1.msra.mxu0 0.0
    %689 = vmatprep.subr.mxu0 0.0
    %690 = vmatpush1.msra.mxu0 0.0
    %691 = vmatprep.subr.mxu0 0.0
    %692 = vmatpush1.msra.mxu0 0.0
    %693 = vmatprep.mubr.f32.mxu0 0.0
    %694 = vmatmul.mubr.f32.gmra.mrb[0].mxu0 0.0
    %v695 = vpop.f32.mrb[0].mxu0
    %v696 = vadd.f32 0.0, %v695
    %v697 = vpop.f32.mrb[0].mxu0
    %698 = vmatprep.mubr.f32.mxu0 0.0
    %699 = vmatmul.mubr.f32.gmra.mrb[0].mxu0 0.0
    %v700 = vpop.f32.mrb[0].mxu0
    %v701 = vadd.f32 0.0, %v700
    %v702 = vpop.f32.mrb[0].mxu0
    %703 = vdwg.mxu0
    %v704 = vadd.f32 %v313, %v619
    %v705 = vadd.f32 %v319, %v625
    %v706 = vxor.u32 %v704, 2147483648
    %v707 = vxor.u32 %v705, 2147483648
    %v708 = vmul.f32 %v706, 1.442695
    %v709 = vpow.pop %v708
    %v710 = vmul.f32 %v707, 1.442695
    %v711 = vpow.pop %v710
    %v712 = vadd.f32 %v709, 1.0
    %v713 = vadd.f32 %v711, 1.0
    %v714 = vrcp.pop %v712
    %v715 = vmul.f32 1.0, %v714
    %v716 = vrcp.pop %v713
    %v717 = vmul.f32 1.0, %v716
    %v718 = vadd.f32 %v315, %v621
    %v719 = vadd.f32 %v321, %v627
    %v720 = vxor.u32 %v718, 2147483648
    %v721 = vxor.u32 %v719, 2147483648
    %v722 = vmul.f32 %v720, 1.442695
    %v723 = vpow.pop %v722
    %v724 = vmul.f32 %v721, 1.442695
    %v725 = vpow.pop %v724
    %v726 = vadd.f32 %v723, 1.0
    %v727 = vadd.f32 %v725, 1.0
    %v728 = vrcp.pop %v726
    %v729 = vmul.f32 1.0, %v728
    %v730 = vrcp.pop %v727
    %v731 = vmul.f32 1.0, %v730
    %v733 = vlaneseq
    %v734 = vshrl.u32 %v733, 7
    %v735 = vsub.s32 0, %v734
    %v736 = vrot.slane %v139, %v735
    %v738 = vadd.f32 %v696, %v736
    %v739 = vadd.f32 %v701, %v736
    %v740 = vmul.f32 %v715, %v738
    %v741 = vmul.f32 %v717, %v739
    %v742 = vadd.f32 %v474, %v740
    %v743 = vadd.f32 %v479, %v741
    %v744 = vtanh.pop %v742
    %v745 = vtanh.pop %v743
    %v746 = vsub.f32 1.0, %v729
    %v747 = vsub.f32 1.0, %v731
    %v748 = vmul.f32 %v746, %v744
    %v749 = vmul.f32 %v747, %v745
    %v750 = vmul.f32 %v729, 0.0
    %v751 = vmul.f32 %v731, 0.0
    %v752 = vadd.f32 %v748, %v750
    %v753 = vadd.f32 %v749, %v751
    %754 = vst [vmem:[#allocation2] sm:$0xff] %v752
    %755 = vst [vmem:[#allocation2 + $0x8] sm:$0xff] %v753
    %756 = vmatprep.subr.mxu0 %v92
    %757 = vmatpush1.msra.mxu0 %v91
    %758 = vmatprep.subr.mxu0 %v95
    %759 = vmatpush1.msra.mxu0 %v94
    %760 = vmatprep.subr.mxu0 %v98
    %761 = vmatpush1.msra.mxu0 %v97
    %762 = vmatprep.subr.mxu0 %v101
    %763 = vmatpush1.msra.mxu0 %v100
    %764 = vmatprep.subr.mxu0 %v104
    %765 = vmatpush1.msra.mxu0 %v103
    %766 = vmatprep.subr.mxu0 %v107
    %767 = vmatpush1.msra.mxu0 %v106
    %768 = vmatprep.subr.mxu0 %v110
    %769 = vmatpush1.msra.mxu0 %v109
    %770 = vmatprep.subr.mxu0 %v113
    %771 = vmatpush1.msra.mxu0 %v112
    %772 = vmatprep.subr.mxu0 %v116
    %773 = vmatpush1.msra.mxu0 %v115
    %774 = vmatprep.subr.mxu0 %v119
    %775 = vmatpush1.msra.mxu0 %v118
    %776 = vmatprep.subr.mxu0 %v122
    %777 = vmatpush1.msra.mxu0 %v121
    %778 = vmatprep.subr.mxu0 %v125
    %779 = vmatpush1.msra.mxu0 %v124
    %780 = vmatprep.subr.mxu0 %v128
    %781 = vmatpush1.msra.mxu0 %v127
    %782 = vmatprep.subr.mxu0 %v131
    %783 = vmatpush1.msra.mxu0 %v130
    %784 = vmatprep.subr.mxu0 %v134
    %785 = vmatpush1.msra.mxu0 %v133
    %786 = vmatprep.subr.mxu0 %v137
    %787 = vmatpush1.msra.mxu0 %v136
    %788 = vmatprep.subr.mxu0 0.0
    %789 = vmatpush1.msra.mxu0 0.0
    %790 = vmatprep.subr.mxu0 0.0
    %791 = vmatpush1.msra.mxu0 0.0
    %792 = vmatprep.subr.mxu0 0.0
    %793 = vmatpush1.msra.mxu0 0.0
    %794 = vmatprep.subr.mxu0 0.0
    %795 = vmatpush1.msra.mxu0 0.0
    %796 = vmatprep.subr.mxu0 0.0
    %797 = vmatpush1.msra.mxu0 0.0
    %798 = vmatprep.subr.mxu0 0.0
    %799 = vmatpush1.msra.mxu0 0.0
    %800 = vmatprep.subr.mxu0 0.0
    %801 = vmatpush1.msra.mxu0 0.0
    %802 = vmatprep.subr.mxu0 0.0
    %803 = vmatpush1.msra.mxu0 0.0
    %804 = vmatprep.subr.mxu0 0.0
    %805 = vmatpush1.msra.mxu0 0.0
    %806 = vmatprep.subr.mxu0 0.0
    %807 = vmatpush1.msra.mxu0 0.0
    %808 = vmatprep.subr.mxu0 0.0
    %809 = vmatpush1.msra.mxu0 0.0
    %810 = vmatprep.subr.mxu0 0.0
    %811 = vmatpush1.msra.mxu0 0.0
    %812 = vmatprep.subr.mxu0 0.0
    %813 = vmatpush1.msra.mxu0 0.0
    %814 = vmatprep.subr.mxu0 0.0
    %815 = vmatpush1.msra.mxu0 0.0
    %816 = vmatprep.subr.mxu0 0.0
    %817 = vmatpush1.msra.mxu0 0.0
    %818 = vmatprep.subr.mxu0 0.0
    %819 = vmatpush1.msra.mxu0 0.0
    %820 = vmatprep.mubr.f32.mxu0 0.0
    %821 = vmatmul.mubr.f32.gmra.mrb[0].mxu0 %v752
    %v822 = vpop.f32.mrb[0].mxu0
    %v823 = vadd.f32 0.0, %v822
    %v824 = vpop.f32.mrb[0].mxu0
    %v825 = vadd.f32 0.0, %v824
    %826 = vmatprep.mubr.f32.mxu0 0.0
    %827 = vmatmul.mubr.f32.gmra.mrb[0].mxu0 %v753
    %v828 = vpop.f32.mrb[0].mxu0
    %v829 = vadd.f32 0.0, %v828
    %v830 = vpop.f32.mrb[0].mxu0
    %v831 = vadd.f32 0.0, %v830
    %832 = vdwg.mxu0
    %833 = vmatprep.subr.mxu0 0.0
    %834 = vmatpush1.msra.mxu0 %v93
    %835 = vmatprep.subr.mxu0 0.0
    %836 = vmatpush1.msra.mxu0 %v96
    %837 = vmatprep.subr.mxu0 0.0
    %838 = vmatpush1.msra.mxu0 %v99
    %839 = vmatprep.subr.mxu0 0.0
    %840 = vmatpush1.msra.mxu0 %v102
    %841 = vmatprep.subr.mxu0 0.0
    %842 = vmatpush1.msra.mxu0 %v105
    %843 = vmatprep.subr.mxu0 0.0
    %844 = vmatpush1.msra.mxu0 %v108
    %845 = vmatprep.subr.mxu0 0.0
    %846 = vmatpush1.msra.mxu0 %v111
    %847 = vmatprep.subr.mxu0 0.0
    %848 = vmatpush1.msra.mxu0 %v114
    %849 = vmatprep.subr.mxu0 0.0
    %850 = vmatpush1.msra.mxu0 %v117
    %851 = vmatprep.subr.mxu0 0.0
    %852 = vmatpush1.msra.mxu0 %v120
    %853 = vmatprep.subr.mxu0 0.0
    %854 = vmatpush1.msra.mxu0 %v123
    %855 = vmatprep.subr.mxu0 0.0
    %856 = vmatpush1.msra.mxu0 %v126
    %857 = vmatprep.subr.mxu0 0.0
    %858 = vmatpush1.msra.mxu0 %v129
    %859 = vmatprep.subr.mxu0 0.0
    %860 = vmatpush1.msra.mxu0 %v132
    %861 = vmatprep.subr.mxu0 0.0
    %862 = vmatpush1.msra.mxu0 %v135
    %863 = vmatprep.subr.mxu0 0.0
    %864 = vmatpush1.msra.mxu0 %v138
    %865 = vmatprep.subr.mxu0 0.0
    %866 = vmatpush1.msra.mxu0 0.0
    %867 = vmatprep.subr.mxu0 0.0
    %868 = vmatpush1.msra.mxu0 0.0
    %869 = vmatprep.subr.mxu0 0.0
    %870 = vmatpush1.msra.mxu0 0.0
    %871 = vmatprep.subr.mxu0 0.0
    %872 = vmatpush1.msra.mxu0 0.0
    %873 = vmatprep.subr.mxu0 0.0
    %874 = vmatpush1.msra.mxu0 0.0
    %875 = vmatprep.subr.mxu0 0.0
    %876 = vmatpush1.msra.mxu0 0.0
    %877 = vmatprep.subr.mxu0 0.0
    %878 = vmatpush1.msra.mxu0 0.0
    %879 = vmatprep.subr.mxu0 0.0
    %880 = vmatpush1.msra.mxu0 0.0
    %881 = vmatprep.subr.mxu0 0.0
    %882 = vmatpush1.msra.mxu0 0.0
    %883 = vmatprep.subr.mxu0 0.0
    %884 = vmatpush1.msra.mxu0 0.0
    %885 = vmatprep.subr.mxu0 0.0
    %886 = vmatpush1.msra.mxu0 0.0
    %887 = vmatprep.subr.mxu0 0.0
    %888 = vmatpush1.msra.mxu0 0.0
    %889 = vmatprep.subr.mxu0 0.0
    %890 = vmatpush1.msra.mxu0 0.0
    %891 = vmatprep.subr.mxu0 0.0
    %892 = vmatpush1.msra.mxu0 0.0
    %893 = vmatprep.subr.mxu0 0.0
    %894 = vmatpush1.msra.mxu0 0.0
    %895 = vmatprep.subr.mxu0 0.0
    %896 = vmatpush1.msra.mxu0 0.0
    %897 = vmatprep.mubr.f32.mxu0 0.0
    %898 = vmatmul.mubr.f32.gmra.mrb[0].mxu0 %v752
    %v899 = vpop.f32.mrb[0].mxu0
    %v900 = vadd.f32 0.0, %v899
    %v901 = vpop.f32.mrb[0].mxu0
    %902 = vmatprep.mubr.f32.mxu0 0.0
    %903 = vmatmul.mubr.f32.gmra.mrb[0].mxu0 %v753
    %v904 = vpop.f32.mrb[0].mxu0
    %v905 = vadd.f32 0.0, %v904
    %v906 = vpop.f32.mrb[0].mxu0
    %907 = vdwg.mxu0
    %v908 = vadd.f32 %v325, %v823
    %v909 = vadd.f32 %v331, %v829
    %v910 = vxor.u32 %v908, 2147483648
    %v911 = vxor.u32 %v909, 2147483648
    %v912 = vmul.f32 %v910, 1.442695
    %v913 = vpow.pop %v912
    %v914 = vmul.f32 %v911, 1.442695
    %v915 = vpow.pop %v914
    %v916 = vadd.f32 %v913, 1.0
    %v917 = vadd.f32 %v915, 1.0
    %v918 = vrcp.pop %v916
    %v919 = vmul.f32 1.0, %v918
    %v920 = vrcp.pop %v917
    %v921 = vmul.f32 1.0, %v920
    %v922 = vadd.f32 %v327, %v825
    %v923 = vadd.f32 %v333, %v831
    %v924 = vxor.u32 %v922, 2147483648
    %v925 = vxor.u32 %v923, 2147483648
    %v926 = vmul.f32 %v924, 1.442695
    %v927 = vpow.pop %v926
    %v928 = vmul.f32 %v925, 1.442695
    %v929 = vpow.pop %v928
    %v930 = vadd.f32 %v927, 1.0
    %v931 = vadd.f32 %v929, 1.0
    %v932 = vrcp.pop %v930
    %v933 = vmul.f32 1.0, %v932
    %v934 = vrcp.pop %v931
    %v935 = vmul.f32 1.0, %v934
    %v936 = vadd.f32 %v900, %v736
    %v937 = vadd.f32 %v905, %v736
    %v938 = vmul.f32 %v919, %v936
    %v939 = vmul.f32 %v921, %v937
    %v940 = vadd.f32 %v484, %v938
    %v941 = vadd.f32 %v489, %v939
    %v942 = vtanh.pop %v940
    %v943 = vtanh.pop %v941
    %v944 = vsub.f32 1.0, %v933
    %v945 = vsub.f32 1.0, %v935
    %v946 = vmul.f32 %v944, %v942
    %v947 = vmul.f32 %v945, %v943
    %v948 = vmul.f32 %v933, %v752
    %v949 = vmul.f32 %v935, %v753
    %v950 = vadd.f32 %v946, %v948
    %v951 = vadd.f32 %v947, %v949
    %s952 = scalar_lea.vmem [#allocation2], 16
    %953 = vst [vmem:[%s952] sm:$0xff] %v950
    %954 = vst [vmem:[%s952 + $0x8] sm:$0xff] %v951
    %955 = vmatprep.subr.mxu0 %v92
    %956 = vmatpush1.msra.mxu0 %v91
    %957 = vmatprep.subr.mxu0 %v95
    %958 = vmatpush1.msra.mxu0 %v94
    %959 = vmatprep.subr.mxu0 %v98
    %960 = vmatpush1.msra.mxu0 %v97
    %961 = vmatprep.subr.mxu0 %v101
    %962 = vmatpush1.msra.mxu0 %v100
    %963 = vmatprep.subr.mxu0 %v104
    %964 = vmatpush1.msra.mxu0 %v103
    %965 = vmatprep.subr.mxu0 %v107
    %966 = vmatpush1.msra.mxu0 %v106
    %967 = vmatprep.subr.mxu0 %v110
    %968 = vmatpush1.msra.mxu0 %v109
    %969 = vmatprep.subr.mxu0 %v113
    %970 = vmatpush1.msra.mxu0 %v112
    %971 = vmatprep.subr.mxu0 %v116
    %972 = vmatpush1.msra.mxu0 %v115
    %973 = vmatprep.subr.mxu0 %v119
    %974 = vmatpush1.msra.mxu0 %v118
    %975 = vmatprep.subr.mxu0 %v122
    %976 = vmatpush1.msra.mxu0 %v121
    %977 = vmatprep.subr.mxu0 %v125
    %978 = vmatpush1.msra.mxu0 %v124
    %979 = vmatprep.subr.mxu0 %v128
    %980 = vmatpush1.msra.mxu0 %v127
    %981 = vmatprep.subr.mxu0 %v131
    %982 = vmatpush1.msra.mxu0 %v130
    %983 = vmatprep.subr.mxu0 %v134
    %984 = vmatpush1.msra.mxu0 %v133
    %985 = vmatprep.subr.mxu0 %v137
    %986 = vmatpush1.msra.mxu0 %v136
    %987 = vmatprep.subr.mxu0 0.0
    %988 = vmatpush1.msra.mxu0 0.0
    %989 = vmatprep.subr.mxu0 0.0
    %990 = vmatpush1.msra.mxu0 0.0
    %991 = vmatprep.subr.mxu0 0.0
    %992 = vmatpush1.msra.mxu0 0.0
    %993 = vmatprep.subr.mxu0 0.0
    %994 = vmatpush1.msra.mxu0 0.0
    %995 = vmatprep.subr.mxu0 0.0
    %996 = vmatpush1.msra.mxu0 0.0
    %997 = vmatprep.subr.mxu0 0.0
    %998 = vmatpush1.msra.mxu0 0.0
    %999 = vmatprep.subr.mxu0 0.0
    %1000 = vmatpush1.msra.mxu0 0.0
    %1001 = vmatprep.subr.mxu0 0.0
    %1002 = vmatpush1.msra.mxu0 0.0
    %1003 = vmatprep.subr.mxu0 0.0
    %1004 = vmatpush1.msra.mxu0 0.0
    %1005 = vmatprep.subr.mxu0 0.0
    %1006 = vmatpush1.msra.mxu0 0.0
    %1007 = vmatprep.subr.mxu0 0.0
    %1008 = vmatpush1.msra.mxu0 0.0
    %1009 = vmatprep.subr.mxu0 0.0
    %1010 = vmatpush1.msra.mxu0 0.0
    %1011 = vmatprep.subr.mxu0 0.0
    %1012 = vmatpush1.msra.mxu0 0.0
    %1013 = vmatprep.subr.mxu0 0.0
    %1014 = vmatpush1.msra.mxu0 0.0
    %1015 = vmatprep.subr.mxu0 0.0
    %1016 = vmatpush1.msra.mxu0 0.0
    %1017 = vmatprep.subr.mxu0 0.0
    %1018 = vmatpush1.msra.mxu0 0.0
    %1019 = vmatprep.mubr.f32.mxu0 0.0
    %1020 = vmatmul.mubr.f32.gmra.mrb[0].mxu0 %v950
    %v1021 = vpop.f32.mrb[0].mxu0
    %v1022 = vadd.f32 0.0, %v1021
    %v1023 = vpop.f32.mrb[0].mxu0
    %v1024 = vadd.f32 0.0, %v1023
    %1025 = vmatprep.mubr.f32.mxu0 0.0
    %1026 = vmatmul.mubr.f32.gmra.mrb[0].mxu0 %v951
    %v1027 = vpop.f32.mrb[0].mxu0
    %v1028 = vadd.f32 0.0, %v1027
    %v1029 = vpop.f32.mrb[0].mxu0
    %v1030 = vadd.f32 0.0, %v1029
    %1031 = vdwg.mxu0
    %1032 = vmatprep.subr.mxu0 0.0
    %1033 = vmatpush1.msra.mxu0 %v93
    %1034 = vmatprep.subr.mxu0 0.0
    %1035 = vmatpush1.msra.mxu0 %v96
    %1036 = vmatprep.subr.mxu0 0.0
    %1037 = vmatpush1.msra.mxu0 %v99
    %1038 = vmatprep.subr.mxu0 0.0
    %1039 = vmatpush1.msra.mxu0 %v102
    %1040 = vmatprep.subr.mxu0 0.0
    %1041 = vmatpush1.msra.mxu0 %v105
    %1042 = vmatprep.subr.mxu0 0.0
    %1043 = vmatpush1.msra.mxu0 %v108
    %1044 = vmatprep.subr.mxu0 0.0
    %1045 = vmatpush1.msra.mxu0 %v111
    %1046 = vmatprep.subr.mxu0 0.0
    %1047 = vmatpush1.msra.mxu0 %v114
    %1048 = vmatprep.subr.mxu0 0.0
    %1049 = vmatpush1.msra.mxu0 %v117
    %1050 = vmatprep.subr.mxu0 0.0
    %1051 = vmatpush1.msra.mxu0 %v120
    %1052 = vmatprep.subr.mxu0 0.0
    %1053 = vmatpush1.msra.mxu0 %v123
    %1054 = vmatprep.subr.mxu0 0.0
    %1055 = vmatpush1.msra.mxu0 %v126
    %1056 = vmatprep.subr.mxu0 0.0
    %1057 = vmatpush1.msra.mxu0 %v129
    %1058 = vmatprep.subr.mxu0 0.0
    %1059 = vmatpush1.msra.mxu0 %v132
    %1060 = vmatprep.subr.mxu0 0.0
    %1061 = vmatpush1.msra.mxu0 %v135
    %1062 = vmatprep.subr.mxu0 0.0
    %1063 = vmatpush1.msra.mxu0 %v138
    %1064 = vmatprep.subr.mxu0 0.0
    %1065 = vmatpush1.msra.mxu0 0.0
    %1066 = vmatprep.subr.mxu0 0.0
    %1067 = vmatpush1.msra.mxu0 0.0
    %1068 = vmatprep.subr.mxu0 0.0
    %1069 = vmatpush1.msra.mxu0 0.0
    %1070 = vmatprep.subr.mxu0 0.0
    %1071 = vmatpush1.msra.mxu0 0.0
    %1072 = vmatprep.subr.mxu0 0.0
    %1073 = vmatpush1.msra.mxu0 0.0
    %1074 = vmatprep.subr.mxu0 0.0
    %1075 = vmatpush1.msra.mxu0 0.0
    %1076 = vmatprep.subr.mxu0 0.0
    %1077 = vmatpush1.msra.mxu0 0.0
    %1078 = vmatprep.subr.mxu0 0.0
    %1079 = vmatpush1.msra.mxu0 0.0
    %1080 = vmatprep.subr.mxu0 0.0
    %1081 = vmatpush1.msra.mxu0 0.0
    %1082 = vmatprep.subr.mxu0 0.0
    %1083 = vmatpush1.msra.mxu0 0.0
    %1084 = vmatprep.subr.mxu0 0.0
    %1085 = vmatpush1.msra.mxu0 0.0
    %1086 = vmatprep.subr.mxu0 0.0
    %1087 = vmatpush1.msra.mxu0 0.0
    %1088 = vmatprep.subr.mxu0 0.0
    %1089 = vmatpush1.msra.mxu0 0.0
    %1090 = vmatprep.subr.mxu0 0.0
    %1091 = vmatpush1.msra.mxu0 0.0
    %1092 = vmatprep.subr.mxu0 0.0
    %1093 = vmatpush1.msra.mxu0 0.0
    %1094 = vmatprep.subr.mxu0 0.0
    %1095 = vmatpush1.msra.mxu0 0.0
    %1096 = vmatprep.mubr.f32.mxu0 0.0
    %1097 = vmatmul.mubr.f32.gmra.mrb[0].mxu0 %v950
    %v1098 = vpop.f32.mrb[0].mxu0
    %v1099 = vadd.f32 0.0, %v1098
    %v1100 = vpop.f32.mrb[0].mxu0
    %1101 = vmatprep.mubr.f32.mxu0 0.0
    %1102 = vmatmul.mubr.f32.gmra.mrb[0].mxu0 %v951
    %v1103 = vpop.f32.mrb[0].mxu0
    %v1104 = vadd.f32 0.0, %v1103
    %v1105 = vpop.f32.mrb[0].mxu0
    %1106 = vdwg.mxu0
    %v1107 = vadd.f32 %v337, %v1022
    %v1108 = vadd.f32 %v343, %v1028
    %v1109 = vxor.u32 %v1107, 2147483648
    %v1110 = vxor.u32 %v1108, 2147483648
    %v1111 = vmul.f32 %v1109, 1.442695
    %v1112 = vpow.pop %v1111
    %v1113 = vmul.f32 %v1110, 1.442695
    %v1114 = vpow.pop %v1113
    %v1115 = vadd.f32 %v1112, 1.0
    %v1116 = vadd.f32 %v1114, 1.0
    %v1117 = vrcp.pop %v1115
    %v1118 = vmul.f32 1.0, %v1117
    %v1119 = vrcp.pop %v1116
    %v1120 = vmul.f32 1.0, %v1119
    %v1121 = vadd.f32 %v339, %v1024
    %v1122 = vadd.f32 %v345, %v1030
    %v1123 = vxor.u32 %v1121, 2147483648
    %v1124 = vxor.u32 %v1122, 2147483648
    %v1125 = vmul.f32 %v1123, 1.442695
    %v1126 = vpow.pop %v1125
    %v1127 = vmul.f32 %v1124, 1.442695
    %v1128 = vpow.pop %v1127
    %v1129 = vadd.f32 %v1126, 1.0
    %v1130 = vadd.f32 %v1128, 1.0
    %v1131 = vrcp.pop %v1129
    %v1132 = vmul.f32 1.0, %v1131
    %v1133 = vrcp.pop %v1130
    %v1134 = vmul.f32 1.0, %v1133
    %v1135 = vadd.f32 %v1099, %v736
    %v1136 = vadd.f32 %v1104, %v736
    %v1137 = vmul.f32 %v1118, %v1135
    %v1138 = vmul.f32 %v1120, %v1136
    %v1139 = vadd.f32 %v494, %v1137
    %v1140 = vadd.f32 %v499, %v1138
    %v1141 = vtanh.pop %v1139
    %v1142 = vtanh.pop %v1140
    %v1143 = vsub.f32 1.0, %v1132
    %v1144 = vsub.f32 1.0, %v1134
    %v1145 = vmul.f32 %v1143, %v1141
    %v1146 = vmul.f32 %v1144, %v1142
    %v1147 = vmul.f32 %v1132, %v950
    %v1148 = vmul.f32 %v1134, %v951
    %v1149 = vadd.f32 %v1145, %v1147
    %v1150 = vadd.f32 %v1146, %v1148
    %s1151 = scalar_lea.vmem [#allocation2], 32
    %1152 = vst [vmem:[%s1151] sm:$0xff] %v1149
    %1153 = vst [vmem:[%s1151 + $0x8] sm:$0xff] %v1150
    %1154 = vmatprep.subr.mxu0 %v92
    %1155 = vmatpush1.msra.mxu0 %v91
    %1156 = vmatprep.subr.mxu0 %v95
    %1157 = vmatpush1.msra.mxu0 %v94
    %1158 = vmatprep.subr.mxu0 %v98
    %1159 = vmatpush1.msra.mxu0 %v97
    %1160 = vmatprep.subr.mxu0 %v101
    %1161 = vmatpush1.msra.mxu0 %v100
    %1162 = vmatprep.subr.mxu0 %v104
    %1163 = vmatpush1.msra.mxu0 %v103
    %1164 = vmatprep.subr.mxu0 %v107
    %1165 = vmatpush1.msra.mxu0 %v106
    %1166 = vmatprep.subr.mxu0 %v110
    %1167 = vmatpush1.msra.mxu0 %v109
    %1168 = vmatprep.subr.mxu0 %v113
    %1169 = vmatpush1.msra.mxu0 %v112
    %1170 = vmatprep.subr.mxu0 %v116
    %1171 = vmatpush1.msra.mxu0 %v115
    %1172 = vmatprep.subr.mxu0 %v119
    %1173 = vmatpush1.msra.mxu0 %v118
    %1174 = vmatprep.subr.mxu0 %v122
    %1175 = vmatpush1.msra.mxu0 %v121
    %1176 = vmatprep.subr.mxu0 %v125
    %1177 = vmatpush1.msra.mxu0 %v124
    %1178 = vmatprep.subr.mxu0 %v128
    %1179 = vmatpush1.msra.mxu0 %v127
    %1180 = vmatprep.subr.mxu0 %v131
    %1181 = vmatpush1.msra.mxu0 %v130
    %1182 = vmatprep.subr.mxu0 %v134
    %1183 = vmatpush1.msra.mxu0 %v133
    %1184 = vmatprep.subr.mxu0 %v137
    %1185 = vmatpush1.msra.mxu0 %v136
    %1186 = vmatprep.subr.mxu0 0.0
    %1187 = vmatpush1.msra.mxu0 0.0
    %1188 = vmatprep.subr.mxu0 0.0
    %1189 = vmatpush1.msra.mxu0 0.0
    %1190 = vmatprep.subr.mxu0 0.0
    %1191 = vmatpush1.msra.mxu0 0.0
    %1192 = vmatprep.subr.mxu0 0.0
    %1193 = vmatpush1.msra.mxu0 0.0
    %1194 = vmatprep.subr.mxu0 0.0
    %1195 = vmatpush1.msra.mxu0 0.0
    %1196 = vmatprep.subr.mxu0 0.0
    %1197 = vmatpush1.msra.mxu0 0.0
    %1198 = vmatprep.subr.mxu0 0.0
    %1199 = vmatpush1.msra.mxu0 0.0
    %1200 = vmatprep.subr.mxu0 0.0
    %1201 = vmatpush1.msra.mxu0 0.0
    %1202 = vmatprep.subr.mxu0 0.0
    %1203 = vmatpush1.msra.mxu0 0.0
    %1204 = vmatprep.subr.mxu0 0.0
    %1205 = vmatpush1.msra.mxu0 0.0
    %1206 = vmatprep.subr.mxu0 0.0
    %1207 = vmatpush1.msra.mxu0 0.0
    %1208 = vmatprep.subr.mxu0 0.0
    %1209 = vmatpush1.msra.mxu0 0.0
    %1210 = vmatprep.subr.mxu0 0.0
    %1211 = vmatpush1.msra.mxu0 0.0
    %1212 = vmatprep.subr.mxu0 0.0
    %1213 = vmatpush1.msra.mxu0 0.0
    %1214 = vmatprep.subr.mxu0 0.0
    %1215 = vmatpush1.msra.mxu0 0.0
    %1216 = vmatprep.subr.mxu0 0.0
    %1217 = vmatpush1.msra.mxu0 0.0
    %1218 = vmatprep.mubr.f32.mxu0 0.0
    %1219 = vmatmul.mubr.f32.gmra.mrb[0].mxu0 %v1149
    %v1220 = vpop.f32.mrb[0].mxu0
    %v1221 = vadd.f32 0.0, %v1220
    %v1222 = vpop.f32.mrb[0].mxu0
    %v1223 = vadd.f32 0.0, %v1222
    %1224 = vmatprep.mubr.f32.mxu0 0.0
    %1225 = vmatmul.mubr.f32.gmra.mrb[0].mxu0 %v1150
    %v1226 = vpop.f32.mrb[0].mxu0
    %v1227 = vadd.f32 0.0, %v1226
    %v1228 = vpop.f32.mrb[0].mxu0
    %v1229 = vadd.f32 0.0, %v1228
    %1230 = vdwg.mxu0
    %1231 = vmatprep.subr.mxu0 0.0
    %1232 = vmatpush1.msra.mxu0 %v93
    %1233 = vmatprep.subr.mxu0 0.0
    %1234 = vmatpush1.msra.mxu0 %v96
    %1235 = vmatprep.subr.mxu0 0.0
    %1236 = vmatpush1.msra.mxu0 %v99
    %1237 = vmatprep.subr.mxu0 0.0
    %1238 = vmatpush1.msra.mxu0 %v102
    %1239 = vmatprep.subr.mxu0 0.0
    %1240 = vmatpush1.msra.mxu0 %v105
    %1241 = vmatprep.subr.mxu0 0.0
    %1242 = vmatpush1.msra.mxu0 %v108
    %1243 = vmatprep.subr.mxu0 0.0
    %1244 = vmatpush1.msra.mxu0 %v111
    %1245 = vmatprep.subr.mxu0 0.0
    %1246 = vmatpush1.msra.mxu0 %v114
    %1247 = vmatprep.subr.mxu0 0.0
    %1248 = vmatpush1.msra.mxu0 %v117
    %1249 = vmatprep.subr.mxu0 0.0
    %1250 = vmatpush1.msra.mxu0 %v120
    %1251 = vmatprep.subr.mxu0 0.0
    %1252 = vmatpush1.msra.mxu0 %v123
    %1253 = vmatprep.subr.mxu0 0.0
    %1254 = vmatpush1.msra.mxu0 %v126
    %1255 = vmatprep.subr.mxu0 0.0
    %1256 = vmatpush1.msra.mxu0 %v129
    %1257 = vmatprep.subr.mxu0 0.0
    %1258 = vmatpush1.msra.mxu0 %v132
    %1259 = vmatprep.subr.mxu0 0.0
    %1260 = vmatpush1.msra.mxu0 %v135
    %1261 = vmatprep.subr.mxu0 0.0
    %1262 = vmatpush1.msra.mxu0 %v138
    %1263 = vmatprep.subr.mxu0 0.0
    %1264 = vmatpush1.msra.mxu0 0.0
    %1265 = vmatprep.subr.mxu0 0.0
    %1266 = vmatpush1.msra.mxu0 0.0
    %1267 = vmatprep.subr.mxu0 0.0
    %1268 = vmatpush1.msra.mxu0 0.0
    %1269 = vmatprep.subr.mxu0 0.0
    %1270 = vmatpush1.msra.mxu0 0.0
    %1271 = vmatprep.subr.mxu0 0.0
    %1272 = vmatpush1.msra.mxu0 0.0
    %1273 = vmatprep.subr.mxu0 0.0
    %1274 = vmatpush1.msra.mxu0 0.0
    %1275 = vmatprep.subr.mxu0 0.0
    %1276 = vmatpush1.msra.mxu0 0.0
    %1277 = vmatprep.subr.mxu0 0.0
    %1278 = vmatpush1.msra.mxu0 0.0
    %1279 = vmatprep.subr.mxu0 0.0
    %1280 = vmatpush1.msra.mxu0 0.0
    %1281 = vmatprep.subr.mxu0 0.0
    %1282 = vmatpush1.msra.mxu0 0.0
    %1283 = vmatprep.subr.mxu0 0.0
    %1284 = vmatpush1.msra.mxu0 0.0
    %1285 = vmatprep.subr.mxu0 0.0
    %1286 = vmatpush1.msra.mxu0 0.0
    %1287 = vmatprep.subr.mxu0 0.0
    %1288 = vmatpush1.msra.mxu0 0.0
    %1289 = vmatprep.subr.mxu0 0.0
    %1290 = vmatpush1.msra.mxu0 0.0
    %1291 = vmatprep.subr.mxu0 0.0
    %1292 = vmatpush1.msra.mxu0 0.0
    %1293 = vmatprep.subr.mxu0 0.0
    %1294 = vmatpush1.msra.mxu0 0.0
    %1295 = vmatprep.mubr.f32.mxu0 0.0
    %1296 = vmatmul.mubr.f32.gmra.mrb[0].mxu0 %v1149
    %v1297 = vpop.f32.mrb[0].mxu0
    %v1298 = vadd.f32 0.0, %v1297
    %v1299 = vpop.f32.mrb[0].mxu0
    %1300 = vmatprep.mubr.f32.mxu0 0.0
    %1301 = vmatmul.mubr.f32.gmra.mrb[0].mxu0 %v1150
    %v1302 = vpop.f32.mrb[0].mxu0
    %v1303 = vadd.f32 0.0, %v1302
    %v1304 = vpop.f32.mrb[0].mxu0
    %1305 = vdwg.mxu0
    %v1306 = vadd.f32 %v349, %v1221
    %v1307 = vadd.f32 %v355, %v1227
    %v1308 = vxor.u32 %v1306, 2147483648
    %v1309 = vxor.u32 %v1307, 2147483648
    %v1310 = vmul.f32 %v1308, 1.442695
    %v1311 = vpow.pop %v1310
    %v1312 = vmul.f32 %v1309, 1.442695
    %v1313 = vpow.pop %v1312
    %v1314 = vadd.f32 %v1311, 1.0
    %v1315 = vadd.f32 %v1313, 1.0
    %v1316 = vrcp.pop %v1314
    %v1317 = vmul.f32 1.0, %v1316
    %v1318 = vrcp.pop %v1315
    %v1319 = vmul.f32 1.0, %v1318
    %v1320 = vadd.f32 %v351, %v1223
    %v1321 = vadd.f32 %v357, %v1229
    %v1322 = vxor.u32 %v1320, 2147483648
    %v1323 = vxor.u32 %v1321, 2147483648
    %v1324 = vmul.f32 %v1322, 1.442695
    %v1325 = vpow.pop %v1324
    %v1326 = vmul.f32 %v1323, 1.442695
    %v1327 = vpow.pop %v1326
    %v1328 = vadd.f32 %v1325, 1.0
    %v1329 = vadd.f32 %v1327, 1.0
    %v1330 = vrcp.pop %v1328
    %v1331 = vmul.f32 1.0, %v1330
    %v1332 = vrcp.pop %v1329
    %v1333 = vmul.f32 1.0, %v1332
    %v1334 = vadd.f32 %v1298, %v736
    %v1335 = vadd.f32 %v1303, %v736
    %v1336 = vmul.f32 %v1317, %v1334
    %v1337 = vmul.f32 %v1319, %v1335
    %v1338 = vadd.f32 %v504, %v1336
    %v1339 = vadd.f32 %v509, %v1337
    %v1340 = vtanh.pop %v1338
    %v1341 = vtanh.pop %v1339
    %v1342 = vsub.f32 1.0, %v1331
    %v1343 = vsub.f32 1.0, %v1333
    %v1344 = vmul.f32 %v1342, %v1340
    %v1345 = vmul.f32 %v1343, %v1341
    %v1346 = vmul.f32 %v1331, %v1149
    %v1347 = vmul.f32 %v1333, %v1150
    %v1348 = vadd.f32 %v1344, %v1346
    %v1349 = vadd.f32 %v1345, %v1347
    %s1350 = scalar_lea.vmem [#allocation2], 48
    %1351 = vst [vmem:[%s1350] sm:$0xff] %v1348
    %1352 = vst [vmem:[%s1350 + $0x8] sm:$0xff] %v1349
    %1353 = vmatprep.subr.mxu0 %v92
    %1354 = vmatpush1.msra.mxu0 %v91
    %1355 = vmatprep.subr.mxu0 %v95
    %1356 = vmatpush1.msra.mxu0 %v94
    %1357 = vmatprep.subr.mxu0 %v98
    %1358 = vmatpush1.msra.mxu0 %v97
    %1359 = vmatprep.subr.mxu0 %v101
    %1360 = vmatpush1.msra.mxu0 %v100
    %1361 = vmatprep.subr.mxu0 %v104
    %1362 = vmatpush1.msra.mxu0 %v103
    %1363 = vmatprep.subr.mxu0 %v107
    %1364 = vmatpush1.msra.mxu0 %v106
    %1365 = vmatprep.subr.mxu0 %v110
    %1366 = vmatpush1.msra.mxu0 %v109
    %1367 = vmatprep.subr.mxu0 %v113
    %1368 = vmatpush1.msra.mxu0 %v112
    %1369 = vmatprep.subr.mxu0 %v116
    %1370 = vmatpush1.msra.mxu0 %v115
    %1371 = vmatprep.subr.mxu0 %v119
    %1372 = vmatpush1.msra.mxu0 %v118
    %1373 = vmatprep.subr.mxu0 %v122
    %1374 = vmatpush1.msra.mxu0 %v121
    %1375 = vmatprep.subr.mxu0 %v125
    %1376 = vmatpush1.msra.mxu0 %v124
    %1377 = vmatprep.subr.mxu0 %v128
    %1378 = vmatpush1.msra.mxu0 %v127
    %1379 = vmatprep.subr.mxu0 %v131
    %1380 = vmatpush1.msra.mxu0 %v130
    %1381 = vmatprep.subr.mxu0 %v134
    %1382 = vmatpush1.msra.mxu0 %v133
    %1383 = vmatprep.subr.mxu0 %v137
    %1384 = vmatpush1.msra.mxu0 %v136
    %1385 = vmatprep.subr.mxu0 0.0
    %1386 = vmatpush1.msra.mxu0 0.0
    %1387 = vmatprep.subr.mxu0 0.0
    %1388 = vmatpush1.msra.mxu0 0.0
    %1389 = vmatprep.subr.mxu0 0.0
    %1390 = vmatpush1.msra.mxu0 0.0
    %1391 = vmatprep.subr.mxu0 0.0
    %1392 = vmatpush1.msra.mxu0 0.0
    %1393 = vmatprep.subr.mxu0 0.0
    %1394 = vmatpush1.msra.mxu0 0.0
    %1395 = vmatprep.subr.mxu0 0.0
    %1396 = vmatpush1.msra.mxu0 0.0
    %1397 = vmatprep.subr.mxu0 0.0
    %1398 = vmatpush1.msra.mxu0 0.0
    %1399 = vmatprep.subr.mxu0 0.0
    %1400 = vmatpush1.msra.mxu0 0.0
    %1401 = vmatprep.subr.mxu0 0.0
    %1402 = vmatpush1.msra.mxu0 0.0
    %1403 = vmatprep.subr.mxu0 0.0
    %1404 = vmatpush1.msra.mxu0 0.0
    %1405 = vmatprep.subr.mxu0 0.0
    %1406 = vmatpush1.msra.mxu0 0.0
    %1407 = vmatprep.subr.mxu0 0.0
    %1408 = vmatpush1.msra.mxu0 0.0
    %1409 = vmatprep.subr.mxu0 0.0
    %1410 = vmatpush1.msra.mxu0 0.0
    %1411 = vmatprep.subr.mxu0 0.0
    %1412 = vmatpush1.msra.mxu0 0.0
    %1413 = vmatprep.subr.mxu0 0.0
    %1414 = vmatpush1.msra.mxu0 0.0
    %1415 = vmatprep.subr.mxu0 0.0
    %1416 = vmatpush1.msra.mxu0 0.0
    %1417 = vmatprep.mubr.f32.mxu0 0.0
    %1418 = vmatmul.mubr.f32.gmra.mrb[0].mxu0 %v1348
    %v1419 = vpop.f32.mrb[0].mxu0
    %v1420 = vadd.f32 0.0, %v1419
    %v1421 = vpop.f32.mrb[0].mxu0
    %v1422 = vadd.f32 0.0, %v1421
    %1423 = vmatprep.mubr.f32.mxu0 0.0
    %1424 = vmatmul.mubr.f32.gmra.mrb[0].mxu0 %v1349
    %v1425 = vpop.f32.mrb[0].mxu0
    %v1426 = vadd.f32 0.0, %v1425
    %v1427 = vpop.f32.mrb[0].mxu0
    %v1428 = vadd.f32 0.0, %v1427
    %1429 = vdwg.mxu0
    %1430 = vmatprep.subr.mxu0 0.0
    %1431 = vmatpush1.msra.mxu0 %v93
    %1432 = vmatprep.subr.mxu0 0.0
    %1433 = vmatpush1.msra.mxu0 %v96
    %1434 = vmatprep.subr.mxu0 0.0
    %1435 = vmatpush1.msra.mxu0 %v99
    %1436 = vmatprep.subr.mxu0 0.0
    %1437 = vmatpush1.msra.mxu0 %v102
    %1438 = vmatprep.subr.mxu0 0.0
    %1439 = vmatpush1.msra.mxu0 %v105
    %1440 = vmatprep.subr.mxu0 0.0
    %1441 = vmatpush1.msra.mxu0 %v108
    %1442 = vmatprep.subr.mxu0 0.0
    %1443 = vmatpush1.msra.mxu0 %v111
    %1444 = vmatprep.subr.mxu0 0.0
    %1445 = vmatpush1.msra.mxu0 %v114
    %1446 = vmatprep.subr.mxu0 0.0
    %1447 = vmatpush1.msra.mxu0 %v117
    %1448 = vmatprep.subr.mxu0 0.0
    %1449 = vmatpush1.msra.mxu0 %v120
    %1450 = vmatprep.subr.mxu0 0.0
    %1451 = vmatpush1.msra.mxu0 %v123
    %1452 = vmatprep.subr.mxu0 0.0
    %1453 = vmatpush1.msra.mxu0 %v126
    %1454 = vmatprep.subr.mxu0 0.0
    %1455 = vmatpush1.msra.mxu0 %v129
    %1456 = vmatprep.subr.mxu0 0.0
    %1457 = vmatpush1.msra.mxu0 %v132
    %1458 = vmatprep.subr.mxu0 0.0
    %1459 = vmatpush1.msra.mxu0 %v135
    %1460 = vmatprep.subr.mxu0 0.0
    %1461 = vmatpush1.msra.mxu0 %v138
    %1462 = vmatprep.subr.mxu0 0.0
    %1463 = vmatpush1.msra.mxu0 0.0
    %1464 = vmatprep.subr.mxu0 0.0
    %1465 = vmatpush1.msra.mxu0 0.0
    %1466 = vmatprep.subr.mxu0 0.0
    %1467 = vmatpush1.msra.mxu0 0.0
    %1468 = vmatprep.subr.mxu0 0.0
    %1469 = vmatpush1.msra.mxu0 0.0
    %1470 = vmatprep.subr.mxu0 0.0
    %1471 = vmatpush1.msra.mxu0 0.0
    %1472 = vmatprep.subr.mxu0 0.0
    %1473 = vmatpush1.msra.mxu0 0.0
    %1474 = vmatprep.subr.mxu0 0.0
    %1475 = vmatpush1.msra.mxu0 0.0
    %1476 = vmatprep.subr.mxu0 0.0
    %1477 = vmatpush1.msra.mxu0 0.0
    %1478 = vmatprep.subr.mxu0 0.0
    %1479 = vmatpush1.msra.mxu0 0.0
    %1480 = vmatprep.subr.mxu0 0.0
    %1481 = vmatpush1.msra.mxu0 0.0
    %1482 = vmatprep.subr.mxu0 0.0
    %1483 = vmatpush1.msra.mxu0 0.0
    %1484 = vmatprep.subr.mxu0 0.0
    %1485 = vmatpush1.msra.mxu0 0.0
    %1486 = vmatprep.subr.mxu0 0.0
    %1487 = vmatpush1.msra.mxu0 0.0
    %1488 = vmatprep.subr.mxu0 0.0
    %1489 = vmatpush1.msra.mxu0 0.0
    %1490 = vmatprep.subr.mxu0 0.0
    %1491 = vmatpush1.msra.mxu0 0.0
    %1492 = vmatprep.subr.mxu0 0.0
    %1493 = vmatpush1.msra.mxu0 0.0
    %1494 = vmatprep.mubr.f32.mxu0 0.0
    %1495 = vmatmul.mubr.f32.gmra.mrb[0].mxu0 %v1348
    %v1496 = vpop.f32.mrb[0].mxu0
    %v1497 = vadd.f32 0.0, %v1496
    %v1498 = vpop.f32.mrb[0].mxu0
    %1499 = vmatprep.mubr.f32.mxu0 0.0
    %1500 = vmatmul.mubr.f32.gmra.mrb[0].mxu0 %v1349
    %v1501 = vpop.f32.mrb[0].mxu0
    %v1502 = vadd.f32 0.0, %v1501
    %v1503 = vpop.f32.mrb[0].mxu0
    %1504 = vdwg.mxu0
    %v1505 = vadd.f32 %v361, %v1420
    %v1506 = vadd.f32 %v367, %v1426
    %v1507 = vxor.u32 %v1505, 2147483648
    %v1508 = vxor.u32 %v1506, 2147483648
    %v1509 = vmul.f32 %v1507, 1.442695
    %v1510 = vpow.pop %v1509
    %v1511 = vmul.f32 %v1508, 1.442695
    %v1512 = vpow.pop %v1511
    %v1513 = vadd.f32 %v1510, 1.0
    %v1514 = vadd.f32 %v1512, 1.0
    %v1515 = vrcp.pop %v1513
    %v1516 = vmul.f32 1.0, %v1515
    %v1517 = vrcp.pop %v1514
    %v1518 = vmul.f32 1.0, %v1517
    %v1519 = vadd.f32 %v363, %v1422
    %v1520 = vadd.f32 %v369, %v1428
    %v1521 = vxor.u32 %v1519, 2147483648
    %v1522 = vxor.u32 %v1520, 2147483648
    %v1523 = vmul.f32 %v1521, 1.442695
    %v1524 = vpow.pop %v1523
    %v1525 = vmul.f32 %v1522, 1.442695
    %v1526 = vpow.pop %v1525
    %v1527 = vadd.f32 %v1524, 1.0
    %v1528 = vadd.f32 %v1526, 1.0
    %v1529 = vrcp.pop %v1527
    %v1530 = vmul.f32 1.0, %v1529
    %v1531 = vrcp.pop %v1528
    %v1532 = vmul.f32 1.0, %v1531
    %v1533 = vadd.f32 %v1497, %v736
    %v1534 = vadd.f32 %v1502, %v736
    %v1535 = vmul.f32 %v1516, %v1533
    %v1536 = vmul.f32 %v1518, %v1534
    %v1537 = vadd.f32 %v514, %v1535
    %v1538 = vadd.f32 %v519, %v1536
    %v1539 = vtanh.pop %v1537
    %v1540 = vtanh.pop %v1538
    %v1541 = vsub.f32 1.0, %v1530
    %v1542 = vsub.f32 1.0, %v1532
    %v1543 = vmul.f32 %v1541, %v1539
    %v1544 = vmul.f32 %v1542, %v1540
    %v1545 = vmul.f32 %v1530, %v1348
    %v1546 = vmul.f32 %v1532, %v1349
    %v1547 = vadd.f32 %v1543, %v1545
    %v1548 = vadd.f32 %v1544, %v1546
    %s1549 = scalar_lea.vmem [#allocation2], 64
    %1550 = vst [vmem:[%s1549] sm:$0xff] %v1547
    %1551 = vst [vmem:[%s1549 + $0x8] sm:$0xff] %v1548
    %1552 = vmatprep.subr.mxu0 %v92
    %1553 = vmatpush1.msra.mxu0 %v91
    %1554 = vmatprep.subr.mxu0 %v95
    %1555 = vmatpush1.msra.mxu0 %v94
    %1556 = vmatprep.subr.mxu0 %v98
    %1557 = vmatpush1.msra.mxu0 %v97
    %1558 = vmatprep.subr.mxu0 %v101
    %1559 = vmatpush1.msra.mxu0 %v100
    %1560 = vmatprep.subr.mxu0 %v104
    %1561 = vmatpush1.msra.mxu0 %v103
    %1562 = vmatprep.subr.mxu0 %v107
    %1563 = vmatpush1.msra.mxu0 %v106
    %1564 = vmatprep.subr.mxu0 %v110
    %1565 = vmatpush1.msra.mxu0 %v109
    %1566 = vmatprep.subr.mxu0 %v113
    %1567 = vmatpush1.msra.mxu0 %v112
    %1568 = vmatprep.subr.mxu0 %v116
    %1569 = vmatpush1.msra.mxu0 %v115
    %1570 = vmatprep.subr.mxu0 %v119
    %1571 = vmatpush1.msra.mxu0 %v118
    %1572 = vmatprep.subr.mxu0 %v122
    %1573 = vmatpush1.msra.mxu0 %v121
    %1574 = vmatprep.subr.mxu0 %v125
    %1575 = vmatpush1.msra.mxu0 %v124
    %1576 = vmatprep.subr.mxu0 %v128
    %1577 = vmatpush1.msra.mxu0 %v127
    %1578 = vmatprep.subr.mxu0 %v131
    %1579 = vmatpush1.msra.mxu0 %v130
    %1580 = vmatprep.subr.mxu0 %v134
    %1581 = vmatpush1.msra.mxu0 %v133
    %1582 = vmatprep.subr.mxu0 %v137
    %1583 = vmatpush1.msra.mxu0 %v136
    %1584 = vmatprep.subr.mxu0 0.0
    %1585 = vmatpush1.msra.mxu0 0.0
    %1586 = vmatprep.subr.mxu0 0.0
    %1587 = vmatpush1.msra.mxu0 0.0
    %1588 = vmatprep.subr.mxu0 0.0
    %1589 = vmatpush1.msra.mxu0 0.0
    %1590 = vmatprep.subr.mxu0 0.0
    %1591 = vmatpush1.msra.mxu0 0.0
    %1592 = vmatprep.subr.mxu0 0.0
    %1593 = vmatpush1.msra.mxu0 0.0
    %1594 = vmatprep.subr.mxu0 0.0
    %1595 = vmatpush1.msra.mxu0 0.0
    %1596 = vmatprep.subr.mxu0 0.0
    %1597 = vmatpush1.msra.mxu0 0.0
    %1598 = vmatprep.subr.mxu0 0.0
    %1599 = vmatpush1.msra.mxu0 0.0
    %1600 = vmatprep.subr.mxu0 0.0
    %1601 = vmatpush1.msra.mxu0 0.0
    %1602 = vmatprep.subr.mxu0 0.0
    %1603 = vmatpush1.msra.mxu0 0.0
    %1604 = vmatprep.subr.mxu0 0.0
    %1605 = vmatpush1.msra.mxu0 0.0
    %1606 = vmatprep.subr.mxu0 0.0
    %1607 = vmatpush1.msra.mxu0 0.0
    %1608 = vmatprep.subr.mxu0 0.0
    %1609 = vmatpush1.msra.mxu0 0.0
    %1610 = vmatprep.subr.mxu0 0.0
    %1611 = vmatpush1.msra.mxu0 0.0
    %1612 = vmatprep.subr.mxu0 0.0
    %1613 = vmatpush1.msra.mxu0 0.0
    %1614 = vmatprep.subr.mxu0 0.0
    %1615 = vmatpush1.msra.mxu0 0.0
    %1616 = vmatprep.mubr.f32.mxu0 0.0
    %1617 = vmatmul.mubr.f32.gmra.mrb[0].mxu0 %v1547
    %v1618 = vpop.f32.mrb[0].mxu0
    %v1619 = vadd.f32 0.0, %v1618
    %v1620 = vpop.f32.mrb[0].mxu0
    %v1621 = vadd.f32 0.0, %v1620
    %1622 = vmatprep.mubr.f32.mxu0 0.0
    %1623 = vmatmul.mubr.f32.gmra.mrb[0].mxu0 %v1548
    %v1624 = vpop.f32.mrb[0].mxu0
    %v1625 = vadd.f32 0.0, %v1624
    %v1626 = vpop.f32.mrb[0].mxu0
    %v1627 = vadd.f32 0.0, %v1626
    %1628 = vdwg.mxu0
    %1629 = vmatprep.subr.mxu0 0.0
    %1630 = vmatpush1.msra.mxu0 %v93
    %1631 = vmatprep.subr.mxu0 0.0
    %1632 = vmatpush1.msra.mxu0 %v96
    %1633 = vmatprep.subr.mxu0 0.0
    %1634 = vmatpush1.msra.mxu0 %v99
    %1635 = vmatprep.subr.mxu0 0.0
    %1636 = vmatpush1.msra.mxu0 %v102
    %1637 = vmatprep.subr.mxu0 0.0
    %1638 = vmatpush1.msra.mxu0 %v105
    %1639 = vmatprep.subr.mxu0 0.0
    %1640 = vmatpush1.msra.mxu0 %v108
    %1641 = vmatprep.subr.mxu0 0.0
    %1642 = vmatpush1.msra.mxu0 %v111
    %1643 = vmatprep.subr.mxu0 0.0
    %1644 = vmatpush1.msra.mxu0 %v114
    %1645 = vmatprep.subr.mxu0 0.0
    %1646 = vmatpush1.msra.mxu0 %v117
    %1647 = vmatprep.subr.mxu0 0.0
    %1648 = vmatpush1.msra.mxu0 %v120
    %1649 = vmatprep.subr.mxu0 0.0
    %1650 = vmatpush1.msra.mxu0 %v123
    %1651 = vmatprep.subr.mxu0 0.0
    %1652 = vmatpush1.msra.mxu0 %v126
    %1653 = vmatprep.subr.mxu0 0.0
    %1654 = vmatpush1.msra.mxu0 %v129
    %1655 = vmatprep.subr.mxu0 0.0
    %1656 = vmatpush1.msra.mxu0 %v132
    %1657 = vmatprep.subr.mxu0 0.0
    %1658 = vmatpush1.msra.mxu0 %v135
    %1659 = vmatprep.subr.mxu0 0.0
    %1660 = vmatpush1.msra.mxu0 %v138
    %1661 = vmatprep.subr.mxu0 0.0
    %1662 = vmatpush1.msra.mxu0 0.0
    %1663 = vmatprep.subr.mxu0 0.0
    %1664 = vmatpush1.msra.mxu0 0.0
    %1665 = vmatprep.subr.mxu0 0.0
    %1666 = vmatpush1.msra.mxu0 0.0
    %1667 = vmatprep.subr.mxu0 0.0
    %1668 = vmatpush1.msra.mxu0 0.0
    %1669 = vmatprep.subr.mxu0 0.0
    %1670 = vmatpush1.msra.mxu0 0.0
    %1671 = vmatprep.subr.mxu0 0.0
    %1672 = vmatpush1.msra.mxu0 0.0
    %1673 = vmatprep.subr.mxu0 0.0
    %1674 = vmatpush1.msra.mxu0 0.0
    %1675 = vmatprep.subr.mxu0 0.0
    %1676 = vmatpush1.msra.mxu0 0.0
    %1677 = vmatprep.subr.mxu0 0.0
    %1678 = vmatpush1.msra.mxu0 0.0
    %1679 = vmatprep.subr.mxu0 0.0
    %1680 = vmatpush1.msra.mxu0 0.0
    %1681 = vmatprep.subr.mxu0 0.0
    %1682 = vmatpush1.msra.mxu0 0.0
    %1683 = vmatprep.subr.mxu0 0.0
    %1684 = vmatpush1.msra.mxu0 0.0
    %1685 = vmatprep.subr.mxu0 0.0
    %1686 = vmatpush1.msra.mxu0 0.0
    %1687 = vmatprep.subr.mxu0 0.0
    %1688 = vmatpush1.msra.mxu0 0.0
    %1689 = vmatprep.subr.mxu0 0.0
    %1690 = vmatpush1.msra.mxu0 0.0
    %1691 = vmatprep.subr.mxu0 0.0
    %1692 = vmatpush1.msra.mxu0 0.0
    %1693 = vmatprep.mubr.f32.mxu0 0.0
    %1694 = vmatmul.mubr.f32.gmra.mrb[0].mxu0 %v1547
    %v1695 = vpop.f32.mrb[0].mxu0
    %v1696 = vadd.f32 0.0, %v1695
    %v1697 = vpop.f32.mrb[0].mxu0
    %1698 = vmatprep.mubr.f32.mxu0 0.0
    %1699 = vmatmul.mubr.f32.gmra.mrb[0].mxu0 %v1548
    %v1700 = vpop.f32.mrb[0].mxu0
    %v1701 = vadd.f32 0.0, %v1700
    %v1702 = vpop.f32.mrb[0].mxu0
    %1703 = vdwg.mxu0
    %v1704 = vadd.f32 %v373, %v1619
    %v1705 = vadd.f32 %v379, %v1625
    %v1706 = vxor.u32 %v1704, 2147483648
    %v1707 = vxor.u32 %v1705, 2147483648
    %v1708 = vmul.f32 %v1706, 1.442695
    %v1709 = vpow.pop %v1708
    %v1710 = vmul.f32 %v1707, 1.442695
    %v1711 = vpow.pop %v1710
    %v1712 = vadd.f32 %v1709, 1.0
    %v1713 = vadd.f32 %v1711, 1.0
    %v1714 = vrcp.pop %v1712
    %v1715 = vmul.f32 1.0, %v1714
    %v1716 = vrcp.pop %v1713
    %v1717 = vmul.f32 1.0, %v1716
    %v1718 = vadd.f32 %v375, %v1621
    %v1719 = vadd.f32 %v381, %v1627
    %v1720 = vxor.u32 %v1718, 2147483648
    %v1721 = vxor.u32 %v1719, 2147483648
    %v1722 = vmul.f32 %v1720, 1.442695
    %v1723 = vpow.pop %v1722
    %v1724 = vmul.f32 %v1721, 1.442695
    %v1725 = vpow.pop %v1724
    %v1726 = vadd.f32 %v1723, 1.0
    %v1727 = vadd.f32 %v1725, 1.0
    %v1728 = vrcp.pop %v1726
    %v1729 = vmul.f32 1.0, %v1728
    %v1730 = vrcp.pop %v1727
    %v1731 = vmul.f32 1.0, %v1730
    %v1732 = vadd.f32 %v1696, %v736
    %v1733 = vadd.f32 %v1701, %v736
    %v1734 = vmul.f32 %v1715, %v1732
    %v1735 = vmul.f32 %v1717, %v1733
    %v1736 = vadd.f32 %v524, %v1734
    %v1737 = vadd.f32 %v529, %v1735
    %v1738 = vtanh.pop %v1736
    %v1739 = vtanh.pop %v1737
    %v1740 = vsub.f32 1.0, %v1729
    %v1741 = vsub.f32 1.0, %v1731
    %v1742 = vmul.f32 %v1740, %v1738
    %v1743 = vmul.f32 %v1741, %v1739
    %v1744 = vmul.f32 %v1729, %v1547
    %v1745 = vmul.f32 %v1731, %v1548
    %v1746 = vadd.f32 %v1742, %v1744
    %v1747 = vadd.f32 %v1743, %v1745
    %s1748 = scalar_lea.vmem [#allocation2], 80
    %1749 = vst [vmem:[%s1748] sm:$0xff] %v1746
    %1750 = vst [vmem:[%s1748 + $0x8] sm:$0xff] %v1747
    %1751 = vmatprep.subr.mxu0 %v92
    %1752 = vmatpush1.msra.mxu0 %v91
    %1753 = vmatprep.subr.mxu0 %v95
    %1754 = vmatpush1.msra.mxu0 %v94
    %1755 = vmatprep.subr.mxu0 %v98
    %1756 = vmatpush1.msra.mxu0 %v97
    %1757 = vmatprep.subr.mxu0 %v101
    %1758 = vmatpush1.msra.mxu0 %v100
    %1759 = vmatprep.subr.mxu0 %v104
    %1760 = vmatpush1.msra.mxu0 %v103
    %1761 = vmatprep.subr.mxu0 %v107
    %1762 = vmatpush1.msra.mxu0 %v106
    %1763 = vmatprep.subr.mxu0 %v110
    %1764 = vmatpush1.msra.mxu0 %v109
    %1765 = vmatprep.subr.mxu0 %v113
    %1766 = vmatpush1.msra.mxu0 %v112
    %1767 = vmatprep.subr.mxu0 %v116
    %1768 = vmatpush1.msra.mxu0 %v115
    %1769 = vmatprep.subr.mxu0 %v119
    %1770 = vmatpush1.msra.mxu0 %v118
    %1771 = vmatprep.subr.mxu0 %v122
    %1772 = vmatpush1.msra.mxu0 %v121
    %1773 = vmatprep.subr.mxu0 %v125
    %1774 = vmatpush1.msra.mxu0 %v124
    %1775 = vmatprep.subr.mxu0 %v128
    %1776 = vmatpush1.msra.mxu0 %v127
    %1777 = vmatprep.subr.mxu0 %v131
    %1778 = vmatpush1.msra.mxu0 %v130
    %1779 = vmatprep.subr.mxu0 %v134
    %1780 = vmatpush1.msra.mxu0 %v133
    %1781 = vmatprep.subr.mxu0 %v137
    %1782 = vmatpush1.msra.mxu0 %v136
    %1783 = vmatprep.subr.mxu0 0.0
    %1784 = vmatpush1.msra.mxu0 0.0
    %1785 = vmatprep.subr.mxu0 0.0
    %1786 = vmatpush1.msra.mxu0 0.0
    %1787 = vmatprep.subr.mxu0 0.0
    %1788 = vmatpush1.msra.mxu0 0.0
    %1789 = vmatprep.subr.mxu0 0.0
    %1790 = vmatpush1.msra.mxu0 0.0
    %1791 = vmatprep.subr.mxu0 0.0
    %1792 = vmatpush1.msra.mxu0 0.0
    %1793 = vmatprep.subr.mxu0 0.0
    %1794 = vmatpush1.msra.mxu0 0.0
    %1795 = vmatprep.subr.mxu0 0.0
    %1796 = vmatpush1.msra.mxu0 0.0
    %1797 = vmatprep.subr.mxu0 0.0
    %1798 = vmatpush1.msra.mxu0 0.0
    %1799 = vmatprep.subr.mxu0 0.0
    %1800 = vmatpush1.msra.mxu0 0.0
    %1801 = vmatprep.subr.mxu0 0.0
    %1802 = vmatpush1.msra.mxu0 0.0
    %1803 = vmatprep.subr.mxu0 0.0
    %1804 = vmatpush1.msra.mxu0 0.0
    %1805 = vmatprep.subr.mxu0 0.0
    %1806 = vmatpush1.msra.mxu0 0.0
    %1807 = vmatprep.subr.mxu0 0.0
    %1808 = vmatpush1.msra.mxu0 0.0
    %1809 = vmatprep.subr.mxu0 0.0
    %1810 = vmatpush1.msra.mxu0 0.0
    %1811 = vmatprep.subr.mxu0 0.0
    %1812 = vmatpush1.msra.mxu0 0.0
    %1813 = vmatprep.subr.mxu0 0.0
    %1814 = vmatpush1.msra.mxu0 0.0
    %1815 = vmatprep.mubr.f32.mxu0 0.0
    %1816 = vmatmul.mubr.f32.gmra.mrb[0].mxu0 %v1746
    %v1817 = vpop.f32.mrb[0].mxu0
    %v1818 = vadd.f32 0.0, %v1817
    %v1819 = vpop.f32.mrb[0].mxu0
    %v1820 = vadd.f32 0.0, %v1819
    %1821 = vmatprep.mubr.f32.mxu0 0.0
    %1822 = vmatmul.mubr.f32.gmra.mrb[0].mxu0 %v1747
    %v1823 = vpop.f32.mrb[0].mxu0
    %v1824 = vadd.f32 0.0, %v1823
    %v1825 = vpop.f32.mrb[0].mxu0
    %v1826 = vadd.f32 0.0, %v1825
    %1827 = vdwg.mxu0
    %1828 = vmatprep.subr.mxu0 0.0
    %1829 = vmatpush1.msra.mxu0 %v93
    %1830 = vmatprep.subr.mxu0 0.0
    %1831 = vmatpush1.msra.mxu0 %v96
    %1832 = vmatprep.subr.mxu0 0.0
    %1833 = vmatpush1.msra.mxu0 %v99
    %1834 = vmatprep.subr.mxu0 0.0
    %1835 = vmatpush1.msra.mxu0 %v102
    %1836 = vmatprep.subr.mxu0 0.0
    %1837 = vmatpush1.msra.mxu0 %v105
    %1838 = vmatprep.subr.mxu0 0.0
    %1839 = vmatpush1.msra.mxu0 %v108
    %1840 = vmatprep.subr.mxu0 0.0
    %1841 = vmatpush1.msra.mxu0 %v111
    %1842 = vmatprep.subr.mxu0 0.0
    %1843 = vmatpush1.msra.mxu0 %v114
    %1844 = vmatprep.subr.mxu0 0.0
    %1845 = vmatpush1.msra.mxu0 %v117
    %1846 = vmatprep.subr.mxu0 0.0
    %1847 = vmatpush1.msra.mxu0 %v120
    %1848 = vmatprep.subr.mxu0 0.0
    %1849 = vmatpush1.msra.mxu0 %v123
    %1850 = vmatprep.subr.mxu0 0.0
    %1851 = vmatpush1.msra.mxu0 %v126
    %1852 = vmatprep.subr.mxu0 0.0
    %1853 = vmatpush1.msra.mxu0 %v129
    %1854 = vmatprep.subr.mxu0 0.0
    %1855 = vmatpush1.msra.mxu0 %v132
    %1856 = vmatprep.subr.mxu0 0.0
    %1857 = vmatpush1.msra.mxu0 %v135
    %1858 = vmatprep.subr.mxu0 0.0
    %1859 = vmatpush1.msra.mxu0 %v138
    %1860 = vmatprep.subr.mxu0 0.0
    %1861 = vmatpush1.msra.mxu0 0.0
    %1862 = vmatprep.subr.mxu0 0.0
    %1863 = vmatpush1.msra.mxu0 0.0
    %1864 = vmatprep.subr.mxu0 0.0
    %1865 = vmatpush1.msra.mxu0 0.0
    %1866 = vmatprep.subr.mxu0 0.0
    %1867 = vmatpush1.msra.mxu0 0.0
    %1868 = vmatprep.subr.mxu0 0.0
    %1869 = vmatpush1.msra.mxu0 0.0
    %1870 = vmatprep.subr.mxu0 0.0
    %1871 = vmatpush1.msra.mxu0 0.0
    %1872 = vmatprep.subr.mxu0 0.0
    %1873 = vmatpush1.msra.mxu0 0.0
    %1874 = vmatprep.subr.mxu0 0.0
    %1875 = vmatpush1.msra.mxu0 0.0
    %1876 = vmatprep.subr.mxu0 0.0
    %1877 = vmatpush1.msra.mxu0 0.0
    %1878 = vmatprep.subr.mxu0 0.0
    %1879 = vmatpush1.msra.mxu0 0.0
    %1880 = vmatprep.subr.mxu0 0.0
    %1881 = vmatpush1.msra.mxu0 0.0
    %1882 = vmatprep.subr.mxu0 0.0
    %1883 = vmatpush1.msra.mxu0 0.0
    %1884 = vmatprep.subr.mxu0 0.0
    %1885 = vmatpush1.msra.mxu0 0.0
    %1886 = vmatprep.subr.mxu0 0.0
    %1887 = vmatpush1.msra.mxu0 0.0
    %1888 = vmatprep.subr.mxu0 0.0
    %1889 = vmatpush1.msra.mxu0 0.0
    %1890 = vmatprep.subr.mxu0 0.0
    %1891 = vmatpush1.msra.mxu0 0.0
    %1892 = vmatprep.mubr.f32.mxu0 0.0
    %1893 = vmatmul.mubr.f32.gmra.mrb[0].mxu0 %v1746
    %v1894 = vpop.f32.mrb[0].mxu0
    %v1895 = vadd.f32 0.0, %v1894
    %v1896 = vpop.f32.mrb[0].mxu0
    %1897 = vmatprep.mubr.f32.mxu0 0.0
    %1898 = vmatmul.mubr.f32.gmra.mrb[0].mxu0 %v1747
    %v1899 = vpop.f32.mrb[0].mxu0
    %v1900 = vadd.f32 0.0, %v1899
    %v1901 = vpop.f32.mrb[0].mxu0
    %1902 = vdwg.mxu0
    %v1903 = vadd.f32 %v385, %v1818
    %v1904 = vadd.f32 %v391, %v1824
    %v1905 = vxor.u32 %v1903, 2147483648
    %v1906 = vxor.u32 %v1904, 2147483648
    %v1907 = vmul.f32 %v1905, 1.442695
    %v1908 = vpow.pop %v1907
    %v1909 = vmul.f32 %v1906, 1.442695
    %v1910 = vpow.pop %v1909
    %v1911 = vadd.f32 %v1908, 1.0
    %v1912 = vadd.f32 %v1910, 1.0
    %v1913 = vrcp.pop %v1911
    %v1914 = vmul.f32 1.0, %v1913
    %v1915 = vrcp.pop %v1912
    %v1916 = vmul.f32 1.0, %v1915
    %v1917 = vadd.f32 %v387, %v1820
    %v1918 = vadd.f32 %v393, %v1826
    %v1919 = vxor.u32 %v1917, 2147483648
    %v1920 = vxor.u32 %v1918, 2147483648
    %v1921 = vmul.f32 %v1919, 1.442695
    %v1922 = vpow.pop %v1921
    %v1923 = vmul.f32 %v1920, 1.442695
    %v1924 = vpow.pop %v1923
    %v1925 = vadd.f32 %v1922, 1.0
    %v1926 = vadd.f32 %v1924, 1.0
    %v1927 = vrcp.pop %v1925
    %v1928 = vmul.f32 1.0, %v1927
    %v1929 = vrcp.pop %v1926
    %v1930 = vmul.f32 1.0, %v1929
    %v1931 = vadd.f32 %v1895, %v736
    %v1932 = vadd.f32 %v1900, %v736
    %v1933 = vmul.f32 %v1914, %v1931
    %v1934 = vmul.f32 %v1916, %v1932
    %v1935 = vadd.f32 %v534, %v1933
    %v1936 = vadd.f32 %v539, %v1934
    %v1937 = vtanh.pop %v1935
    %v1938 = vtanh.pop %v1936
    %v1939 = vsub.f32 1.0, %v1928
    %v1940 = vsub.f32 1.0, %v1930
    %v1941 = vmul.f32 %v1939, %v1937
    %v1942 = vmul.f32 %v1940, %v1938
    %v1943 = vmul.f32 %v1928, %v1746
    %v1944 = vmul.f32 %v1930, %v1747
    %v1945 = vadd.f32 %v1941, %v1943
    %v1946 = vadd.f32 %v1942, %v1944
    %s1947 = scalar_lea.vmem [#allocation2], 96
    %1948 = vst [vmem:[%s1947] sm:$0xff] %v1945
    %1949 = vst [vmem:[%s1947 + $0x8] sm:$0xff] %v1946
    %1950 = vmatprep.subr.mxu0 %v92
    %1951 = vmatpush1.msra.mxu0 %v91
    %1952 = vmatprep.subr.mxu0 %v95
    %1953 = vmatpush1.msra.mxu0 %v94
    %1954 = vmatprep.subr.mxu0 %v98
    %1955 = vmatpush1.msra.mxu0 %v97
    %1956 = vmatprep.subr.mxu0 %v101
    %1957 = vmatpush1.msra.mxu0 %v100
    %1958 = vmatprep.subr.mxu0 %v104
    %1959 = vmatpush1.msra.mxu0 %v103
    %1960 = vmatprep.subr.mxu0 %v107
    %1961 = vmatpush1.msra.mxu0 %v106
    %1962 = vmatprep.subr.mxu0 %v110
    %1963 = vmatpush1.msra.mxu0 %v109
    %1964 = vmatprep.subr.mxu0 %v113
    %1965 = vmatpush1.msra.mxu0 %v112
    %1966 = vmatprep.subr.mxu0 %v116
    %1967 = vmatpush1.msra.mxu0 %v115
    %1968 = vmatprep.subr.mxu0 %v119
    %1969 = vmatpush1.msra.mxu0 %v118
    %1970 = vmatprep.subr.mxu0 %v122
    %1971 = vmatpush1.msra.mxu0 %v121
    %1972 = vmatprep.subr.mxu0 %v125
    %1973 = vmatpush1.msra.mxu0 %v124
    %1974 = vmatprep.subr.mxu0 %v128
    %1975 = vmatpush1.msra.mxu0 %v127
    %1976 = vmatprep.subr.mxu0 %v131
    %1977 = vmatpush1.msra.mxu0 %v130
    %1978 = vmatprep.subr.mxu0 %v134
    %1979 = vmatpush1.msra.mxu0 %v133
    %1980 = vmatprep.subr.mxu0 %v137
    %1981 = vmatpush1.msra.mxu0 %v136
    %1982 = vmatprep.subr.mxu0 0.0
    %1983 = vmatpush1.msra.mxu0 0.0
    %1984 = vmatprep.subr.mxu0 0.0
    %1985 = vmatpush1.msra.mxu0 0.0
    %1986 = vmatprep.subr.mxu0 0.0
    %1987 = vmatpush1.msra.mxu0 0.0
    %1988 = vmatprep.subr.mxu0 0.0
    %1989 = vmatpush1.msra.mxu0 0.0
    %1990 = vmatprep.subr.mxu0 0.0
    %1991 = vmatpush1.msra.mxu0 0.0
    %1992 = vmatprep.subr.mxu0 0.0
    %1993 = vmatpush1.msra.mxu0 0.0
    %1994 = vmatprep.subr.mxu0 0.0
    %1995 = vmatpush1.msra.mxu0 0.0
    %1996 = vmatprep.subr.mxu0 0.0
    %1997 = vmatpush1.msra.mxu0 0.0
    %1998 = vmatprep.subr.mxu0 0.0
    %1999 = vmatpush1.msra.mxu0 0.0
    %2000 = vmatprep.subr.mxu0 0.0
    %2001 = vmatpush1.msra.mxu0 0.0
    %2002 = vmatprep.subr.mxu0 0.0
    %2003 = vmatpush1.msra.mxu0 0.0
    %2004 = vmatprep.subr.mxu0 0.0
    %2005 = vmatpush1.msra.mxu0 0.0
    %2006 = vmatprep.subr.mxu0 0.0
    %2007 = vmatpush1.msra.mxu0 0.0
    %2008 = vmatprep.subr.mxu0 0.0
    %2009 = vmatpush1.msra.mxu0 0.0
    %2010 = vmatprep.subr.mxu0 0.0
    %2011 = vmatpush1.msra.mxu0 0.0
    %2012 = vmatprep.subr.mxu0 0.0
    %2013 = vmatpush1.msra.mxu0 0.0
    %2014 = vmatprep.mubr.f32.mxu0 0.0
    %2015 = vmatmul.mubr.f32.gmra.mrb[0].mxu0 %v1945
    %v2016 = vpop.f32.mrb[0].mxu0
    %v2017 = vadd.f32 0.0, %v2016
    %v2018 = vpop.f32.mrb[0].mxu0
    %v2019 = vadd.f32 0.0, %v2018
    %2020 = vmatprep.mubr.f32.mxu0 0.0
    %2021 = vmatmul.mubr.f32.gmra.mrb[0].mxu0 %v1946
    %v2022 = vpop.f32.mrb[0].mxu0
    %v2023 = vadd.f32 0.0, %v2022
    %v2024 = vpop.f32.mrb[0].mxu0
    %v2025 = vadd.f32 0.0, %v2024
    %2026 = vdwg.mxu0
    %2027 = vmatprep.subr.mxu0 0.0
    %2028 = vmatpush1.msra.mxu0 %v93
    %2029 = vmatprep.subr.mxu0 0.0
    %2030 = vmatpush1.msra.mxu0 %v96
    %2031 = vmatprep.subr.mxu0 0.0
    %2032 = vmatpush1.msra.mxu0 %v99
    %2033 = vmatprep.subr.mxu0 0.0
    %2034 = vmatpush1.msra.mxu0 %v102
    %2035 = vmatprep.subr.mxu0 0.0
    %2036 = vmatpush1.msra.mxu0 %v105
    %2037 = vmatprep.subr.mxu0 0.0
    %2038 = vmatpush1.msra.mxu0 %v108
    %2039 = vmatprep.subr.mxu0 0.0
    %2040 = vmatpush1.msra.mxu0 %v111
    %2041 = vmatprep.subr.mxu0 0.0
    %2042 = vmatpush1.msra.mxu0 %v114
    %2043 = vmatprep.subr.mxu0 0.0
    %2044 = vmatpush1.msra.mxu0 %v117
    %2045 = vmatprep.subr.mxu0 0.0
    %2046 = vmatpush1.msra.mxu0 %v120
    %2047 = vmatprep.subr.mxu0 0.0
    %2048 = vmatpush1.msra.mxu0 %v123
    %2049 = vmatprep.subr.mxu0 0.0
    %2050 = vmatpush1.msra.mxu0 %v126
    %2051 = vmatprep.subr.mxu0 0.0
    %2052 = vmatpush1.msra.mxu0 %v129
    %2053 = vmatprep.subr.mxu0 0.0
    %2054 = vmatpush1.msra.mxu0 %v132
    %2055 = vmatprep.subr.mxu0 0.0
    %2056 = vmatpush1.msra.mxu0 %v135
    %2057 = vmatprep.subr.mxu0 0.0
    %2058 = vmatpush1.msra.mxu0 %v138
    %2059 = vmatprep.subr.mxu0 0.0
    %2060 = vmatpush1.msra.mxu0 0.0
    %2061 = vmatprep.subr.mxu0 0.0
    %2062 = vmatpush1.msra.mxu0 0.0
    %2063 = vmatprep.subr.mxu0 0.0
    %2064 = vmatpush1.msra.mxu0 0.0
    %2065 = vmatprep.subr.mxu0 0.0
    %2066 = vmatpush1.msra.mxu0 0.0
    %2067 = vmatprep.subr.mxu0 0.0
    %2068 = vmatpush1.msra.mxu0 0.0
    %2069 = vmatprep.subr.mxu0 0.0
    %2070 = vmatpush1.msra.mxu0 0.0
    %2071 = vmatprep.subr.mxu0 0.0
    %2072 = vmatpush1.msra.mxu0 0.0
    %2073 = vmatprep.subr.mxu0 0.0
    %2074 = vmatpush1.msra.mxu0 0.0
    %2075 = vmatprep.subr.mxu0 0.0
    %2076 = vmatpush1.msra.mxu0 0.0
    %2077 = vmatprep.subr.mxu0 0.0
    %2078 = vmatpush1.msra.mxu0 0.0
    %2079 = vmatprep.subr.mxu0 0.0
    %2080 = vmatpush1.msra.mxu0 0.0
    %2081 = vmatprep.subr.mxu0 0.0
    %2082 = vmatpush1.msra.mxu0 0.0
    %2083 = vmatprep.subr.mxu0 0.0
    %2084 = vmatpush1.msra.mxu0 0.0
    %2085 = vmatprep.subr.mxu0 0.0
    %2086 = vmatpush1.msra.mxu0 0.0
    %2087 = vmatprep.subr.mxu0 0.0
    %2088 = vmatpush1.msra.mxu0 0.0
    %2089 = vmatprep.subr.mxu0 0.0
    %2090 = vmatpush1.msra.mxu0 0.0
    %2091 = vmatprep.mubr.f32.mxu0 0.0
    %2092 = vmatmul.mubr.f32.gmra.mrb[0].mxu0 %v1945
    %v2093 = vpop.f32.mrb[0].mxu0
    %v2094 = vadd.f32 0.0, %v2093
    %v2095 = vpop.f32.mrb[0].mxu0
    %2096 = vmatprep.mubr.f32.mxu0 0.0
    %2097 = vmatmul.mubr.f32.gmra.mrb[0].mxu0 %v1946
    %v2098 = vpop.f32.mrb[0].mxu0
    %v2099 = vadd.f32 0.0, %v2098
    %v2100 = vpop.f32.mrb[0].mxu0
    %2101 = vdwg.mxu0
    %v2102 = vadd.f32 %v397, %v2017
    %v2103 = vadd.f32 %v403, %v2023
    %v2104 = vxor.u32 %v2102, 2147483648
    %v2105 = vxor.u32 %v2103, 2147483648
    %v2106 = vmul.f32 %v2104, 1.442695
    %v2107 = vpow.pop %v2106
    %v2108 = vmul.f32 %v2105, 1.442695
    %v2109 = vpow.pop %v2108
    %v2110 = vadd.f32 %v2107, 1.0
    %v2111 = vadd.f32 %v2109, 1.0
    %v2112 = vrcp.pop %v2110
    %v2113 = vmul.f32 1.0, %v2112
    %v2114 = vrcp.pop %v2111
    %v2115 = vmul.f32 1.0, %v2114
    %v2116 = vadd.f32 %v399, %v2019
    %v2117 = vadd.f32 %v405, %v2025
    %v2118 = vxor.u32 %v2116, 2147483648
    %v2119 = vxor.u32 %v2117, 2147483648
    %v2120 = vmul.f32 %v2118, 1.442695
    %v2121 = vpow.pop %v2120
    %v2122 = vmul.f32 %v2119, 1.442695
    %v2123 = vpow.pop %v2122
    %v2124 = vadd.f32 %v2121, 1.0
    %v2125 = vadd.f32 %v2123, 1.0
    %v2126 = vrcp.pop %v2124
    %v2127 = vmul.f32 1.0, %v2126
    %v2128 = vrcp.pop %v2125
    %v2129 = vmul.f32 1.0, %v2128
    %v2130 = vadd.f32 %v2094, %v736
    %v2131 = vadd.f32 %v2099, %v736
    %v2132 = vmul.f32 %v2113, %v2130
    %v2133 = vmul.f32 %v2115, %v2131
    %v2134 = vadd.f32 %v544, %v2132
    %v2135 = vadd.f32 %v549, %v2133
    %v2136 = vtanh.pop %v2134
    %v2137 = vtanh.pop %v2135
    %v2138 = vsub.f32 1.0, %v2127
    %v2139 = vsub.f32 1.0, %v2129
    %v2140 = vmul.f32 %v2138, %v2136
    %v2141 = vmul.f32 %v2139, %v2137
    %v2142 = vmul.f32 %v2127, %v1945
    %v2143 = vmul.f32 %v2129, %v1946
    %v2144 = vadd.f32 %v2140, %v2142
    %v2145 = vadd.f32 %v2141, %v2143
    %s2146 = scalar_lea.vmem [#allocation2], 112
    %2147 = vst [vmem:[%s2146] sm:$0xff] %v2144
    %2148 = vst [vmem:[%s2146 + $0x8] sm:$0xff] %v2145
    %v2149 = vld [vmem:[#allocation2] sm:$0xff]
    %v2150 = vld [vmem:[#allocation2 + $0x8] sm:$0xff]
    %v2151 = vld [vmem:[#allocation2 + $0x10] sm:$0xff]
    %v2152 = vld [vmem:[#allocation2 + $0x18] sm:$0xff]
    %v2153 = vld [vmem:[#allocation2 + $0x20] sm:$0xff]
    %v2154 = vld [vmem:[#allocation2 + $0x28] sm:$0xff]
    %v2155 = vld [vmem:[#allocation2 + $0x30] sm:$0xff]
    %v2156 = vld [vmem:[#allocation2 + $0x38] sm:$0xff]
    %v2157 = vld [vmem:[#allocation2 + $0x40] sm:$0xff]
    %v2158 = vld [vmem:[#allocation2 + $0x48] sm:$0xff]
    %v2159 = vld [vmem:[#allocation2 + $0x50] sm:$0xff]
    %v2160 = vld [vmem:[#allocation2 + $0x58] sm:$0xff]
    %v2161 = vld [vmem:[#allocation2 + $0x60] sm:$0xff]
    %v2162 = vld [vmem:[#allocation2 + $0x68] sm:$0xff]
    %v2163 = vld [vmem:[#allocation2 + $0x70] sm:$0xff]
    %v2164 = vld [vmem:[#allocation2 + $0x78] sm:$0xff]
    %v2165 = vld [vmem:[%s6] sm:$0x1]
    %v2166 = vld [vmem:[%s5] sm:$0x1]
    %v2167 = vlaneseq
    %v2168 = vshrl.u32 %v2167, 7
    %v2169 = vsub.s32 0, %v2168
    %v2170 = vrot.slane %v2166, %v2169
    %v2171 = vmul.f32 %v2149, %v2170
    %v2172 = vmul.f32 %v2150, %v2170
    %v2173 = vmul.f32 %v2151, %v2170
    %v2174 = vmul.f32 %v2152, %v2170
    %v2175 = vmul.f32 %v2153, %v2170
    %v2176 = vmul.f32 %v2154, %v2170
    %v2177 = vmul.f32 %v2155, %v2170
    %v2178 = vmul.f32 %v2156, %v2170
    %v2179 = vmul.f32 %v2157, %v2170
    %v2180 = vmul.f32 %v2158, %v2170
    %v2181 = vmul.f32 %v2159, %v2170
    %v2182 = vmul.f32 %v2160, %v2170
    %v2183 = vmul.f32 %v2161, %v2170
    %v2184 = vmul.f32 %v2162, %v2170
    %v2185 = vmul.f32 %v2163, %v2170
    %v2186 = vmul.f32 %v2164, %v2170
    %2187 = vadd.xlane.f32.xlu0 %v2171
    %v2188 = vpop.xlane.xlu0 %2187
    %2189 = vadd.xlane.f32.xlu0 %v2172
    %v2190 = vpop.xlane.xlu0 %2189
    %2191 = vadd.xlane.f32.xlu0 %v2173
    %v2192 = vpop.xlane.xlu0 %2191
    %2193 = vadd.xlane.f32.xlu0 %v2174
    %v2194 = vpop.xlane.xlu0 %2193
    %2195 = vadd.xlane.f32.xlu0 %v2175
    %v2196 = vpop.xlane.xlu0 %2195
    %2197 = vadd.xlane.f32.xlu0 %v2176
    %v2198 = vpop.xlane.xlu0 %2197
    %2199 = vadd.xlane.f32.xlu0 %v2177
    %v2200 = vpop.xlane.xlu0 %2199
    %2201 = vadd.xlane.f32.xlu0 %v2178
    %v2202 = vpop.xlane.xlu0 %2201
    %2203 = vadd.xlane.f32.xlu0 %v2179
    %v2204 = vpop.xlane.xlu0 %2203
    %2205 = vadd.xlane.f32.xlu0 %v2180
    %v2206 = vpop.xlane.xlu0 %2205
    %2207 = vadd.xlane.f32.xlu0 %v2181
    %v2208 = vpop.xlane.xlu0 %2207
    %2209 = vadd.xlane.f32.xlu0 %v2182
    %v2210 = vpop.xlane.xlu0 %2209
    %2211 = vadd.xlane.f32.xlu0 %v2183
    %v2212 = vpop.xlane.xlu0 %2211
    %2213 = vadd.xlane.f32.xlu0 %v2184
    %v2214 = vpop.xlane.xlu0 %2213
    %2215 = vadd.xlane.f32.xlu0 %v2185
    %v2216 = vpop.xlane.xlu0 %2215
    %2217 = vadd.xlane.f32.xlu0 %v2186
    %v2218 = vpop.xlane.xlu0 %2217
    %v2220 = vlaneseq
    %v2221 = vshrl.u32 %v2220, 7
    %v2222 = vsub.s32 0, %v2221
    %v2223 = vrot.slane %v2165, %v2222
    %v2225 = vadd.f32 %v2188, %v2223
    %v2226 = vadd.f32 %v2190, %v2223
    %v2227 = vadd.f32 %v2192, %v2223
    %v2228 = vadd.f32 %v2194, %v2223
    %v2229 = vadd.f32 %v2196, %v2223
    %v2230 = vadd.f32 %v2198, %v2223
    %v2231 = vadd.f32 %v2200, %v2223
    %v2232 = vadd.f32 %v2202, %v2223
    %v2233 = vadd.f32 %v2204, %v2223
    %v2234 = vadd.f32 %v2206, %v2223
    %v2235 = vadd.f32 %v2208, %v2223
    %v2236 = vadd.f32 %v2210, %v2223
    %v2237 = vadd.f32 %v2212, %v2223
    %v2238 = vadd.f32 %v2214, %v2223
    %v2239 = vadd.f32 %v2216, %v2223
    %v2240 = vadd.f32 %v2218, %v2223
    %v2241 = vld [vmem:[%s5 + $0x1] sm:$0x1]
    %v2242 = vlaneseq
    %v2243 = vshrl.u32 %v2242, 7
    %v2244 = vsub.s32 0, %v2243
    %v2245 = vrot.slane %v2241, %v2244
    %v2246 = vmul.f32 %v2149, %v2245
    %v2247 = vmul.f32 %v2150, %v2245
    %v2248 = vmul.f32 %v2151, %v2245
    %v2249 = vmul.f32 %v2152, %v2245
    %v2250 = vmul.f32 %v2153, %v2245
    %v2251 = vmul.f32 %v2154, %v2245
    %v2252 = vmul.f32 %v2155, %v2245
    %v2253 = vmul.f32 %v2156, %v2245
    %v2254 = vmul.f32 %v2157, %v2245
    %v2255 = vmul.f32 %v2158, %v2245
    %v2256 = vmul.f32 %v2159, %v2245
    %v2257 = vmul.f32 %v2160, %v2245
    %v2258 = vmul.f32 %v2161, %v2245
    %v2259 = vmul.f32 %v2162, %v2245
    %v2260 = vmul.f32 %v2163, %v2245
    %v2261 = vmul.f32 %v2164, %v2245
    %2262 = vadd.xlane.f32.xlu0 %v2246
    %v2263 = vpop.xlane.xlu0 %2262
    %2264 = vadd.xlane.f32.xlu0 %v2247
    %v2265 = vpop.xlane.xlu0 %2264
    %2266 = vadd.xlane.f32.xlu0 %v2248
    %v2267 = vpop.xlane.xlu0 %2266
    %2268 = vadd.xlane.f32.xlu0 %v2249
    %v2269 = vpop.xlane.xlu0 %2268
    %2270 = vadd.xlane.f32.xlu0 %v2250
    %v2271 = vpop.xlane.xlu0 %2270
    %2272 = vadd.xlane.f32.xlu0 %v2251
    %v2273 = vpop.xlane.xlu0 %2272
    %2274 = vadd.xlane.f32.xlu0 %v2252
    %v2275 = vpop.xlane.xlu0 %2274
    %2276 = vadd.xlane.f32.xlu0 %v2253
    %v2277 = vpop.xlane.xlu0 %2276
    %2278 = vadd.xlane.f32.xlu0 %v2254
    %v2279 = vpop.xlane.xlu0 %2278
    %2280 = vadd.xlane.f32.xlu0 %v2255
    %v2281 = vpop.xlane.xlu0 %2280
    %2282 = vadd.xlane.f32.xlu0 %v2256
    %v2283 = vpop.xlane.xlu0 %2282
    %2284 = vadd.xlane.f32.xlu0 %v2257
    %v2285 = vpop.xlane.xlu0 %2284
    %2286 = vadd.xlane.f32.xlu0 %v2258
    %v2287 = vpop.xlane.xlu0 %2286
    %2288 = vadd.xlane.f32.xlu0 %v2259
    %v2289 = vpop.xlane.xlu0 %2288
    %2290 = vadd.xlane.f32.xlu0 %v2260
    %v2291 = vpop.xlane.xlu0 %2290
    %2292 = vadd.xlane.f32.xlu0 %v2261
    %v2293 = vpop.xlane.xlu0 %2292
    %v2294 = vadd.f32 %v2263, %v2223
    %v2295 = vadd.f32 %v2265, %v2223
    %v2296 = vadd.f32 %v2267, %v2223
    %v2297 = vadd.f32 %v2269, %v2223
    %v2298 = vadd.f32 %v2271, %v2223
    %v2299 = vadd.f32 %v2273, %v2223
    %v2300 = vadd.f32 %v2275, %v2223
    %v2301 = vadd.f32 %v2277, %v2223
    %v2302 = vadd.f32 %v2279, %v2223
    %v2303 = vadd.f32 %v2281, %v2223
    %v2304 = vadd.f32 %v2283, %v2223
    %v2305 = vadd.f32 %v2285, %v2223
    %v2306 = vadd.f32 %v2287, %v2223
    %v2307 = vadd.f32 %v2289, %v2223
    %v2308 = vadd.f32 %v2291, %v2223
    %v2309 = vadd.f32 %v2293, %v2223
    %vm2310 = vcmask 7168
    %v2311 = vsel %vm2310, %v2225, -inf
    %v2312 = vsel %vm2310, %v2227, -inf
    %v2313 = vsel %vm2310, %v2229, -inf
    %v2314 = vmax.f32 %v2311, %v2313
    %v2315 = vsel %vm2310, %v2231, -inf
    %v2316 = vmax.f32 %v2312, %v2315
    %v2317 = vsel %vm2310, %v2233, -inf
    %v2318 = vmax.f32 %v2314, %v2317
    %v2319 = vsel %vm2310, %v2235, -inf
    %v2320 = vmax.f32 %v2316, %v2319
    %v2321 = vsel %vm2310, %v2237, -inf
    %v2322 = vmax.f32 %v2318, %v2321
    %v2323 = vsel %vm2310, %v2239, -inf
    %v2324 = vmax.f32 %v2320, %v2323
    %v2325 = vmax.f32 %v2322, %v2324
    %v2326 = vsel %vm2310, %v2226, -inf
    %v2327 = vsel %vm2310, %v2228, -inf
    %v2328 = vsel %vm2310, %v2230, -inf
    %v2329 = vmax.f32 %v2326, %v2328
    %v2330 = vsel %vm2310, %v2232, -inf
    %v2331 = vmax.f32 %v2327, %v2330
    %v2332 = vsel %vm2310, %v2234, -inf
    %v2333 = vmax.f32 %v2329, %v2332
    %v2334 = vsel %vm2310, %v2236, -inf
    %v2335 = vmax.f32 %v2331, %v2334
    %v2336 = vsel %vm2310, %v2238, -inf
    %v2337 = vmax.f32 %v2333, %v2336
    %v2338 = vsel %vm2310, %v2240, -inf
    %v2339 = vmax.f32 %v2335, %v2338
    %v2340 = vmax.f32 %v2337, %v2339
    %v2341 = vsub.f32 %v2225, %v2325
    %v2342 = vsub.f32 %v2226, %v2340
    %v2343 = vsub.f32 %v2227, %v2325
    %v2344 = vsub.f32 %v2228, %v2340
    %v2345 = vsub.f32 %v2229, %v2325
    %v2346 = vsub.f32 %v2230, %v2340
    %v2347 = vsub.f32 %v2231, %v2325
    %v2348 = vsub.f32 %v2232, %v2340
    %v2349 = vsub.f32 %v2233, %v2325
    %v2350 = vsub.f32 %v2234, %v2340
    %v2351 = vsub.f32 %v2235, %v2325
    %v2352 = vsub.f32 %v2236, %v2340
    %v2353 = vsub.f32 %v2237, %v2325
    %v2354 = vsub.f32 %v2238, %v2340
    %v2355 = vsub.f32 %v2239, %v2325
    %v2356 = vsub.f32 %v2240, %v2340
    %v2357 = vmul.f32 %v2341, 1.442695
    %v2358 = vpow.pop %v2357
    %v2359 = vmul.f32 %v2342, 1.442695
    %v2360 = vpow.pop %v2359
    %v2361 = vmul.f32 %v2343, 1.442695
    %v2362 = vpow.pop %v2361
    %v2363 = vmul.f32 %v2344, 1.442695
    %v2364 = vpow.pop %v2363
    %v2365 = vmul.f32 %v2345, 1.442695
    %v2366 = vpow.pop %v2365
    %v2367 = vmul.f32 %v2346, 1.442695
    %v2368 = vpow.pop %v2367
    %v2369 = vmul.f32 %v2347, 1.442695
    %v2370 = vpow.pop %v2369
    %v2371 = vmul.f32 %v2348, 1.442695
    %v2372 = vpow.pop %v2371
    %v2373 = vmul.f32 %v2349, 1.442695
    %v2374 = vpow.pop %v2373
    %v2375 = vmul.f32 %v2350, 1.442695
    %v2376 = vpow.pop %v2375
    %v2377 = vmul.f32 %v2351, 1.442695
    %v2378 = vpow.pop %v2377
    %v2379 = vmul.f32 %v2352, 1.442695
    %v2380 = vpow.pop %v2379
    %v2381 = vmul.f32 %v2353, 1.442695
    %v2382 = vpow.pop %v2381
    %v2383 = vmul.f32 %v2354, 1.442695
    %v2384 = vpow.pop %v2383
    %v2385 = vmul.f32 %v2355, 1.442695
    %v2386 = vpow.pop %v2385
    %v2387 = vmul.f32 %v2356, 1.442695
    %v2388 = vpow.pop %v2387
    %v2389 = vsel %vm2310, %v2358, 0.0
    %v2390 = vsel %vm2310, %v2362, 0.0
    %v2391 = vadd.f32 %v2389, %v2390
    %v2392 = vsel %vm2310, %v2366, 0.0
    %v2393 = vadd.f32 %v2391, %v2392
    %v2394 = vsel %vm2310, %v2370, 0.0
    %v2395 = vadd.f32 %v2393, %v2394
    %v2396 = vsel %vm2310, %v2374, 0.0
    %v2397 = vadd.f32 %v2395, %v2396
    %v2398 = vsel %vm2310, %v2378, 0.0
    %v2399 = vadd.f32 %v2397, %v2398
    %v2400 = vsel %vm2310, %v2382, 0.0
    %v2401 = vadd.f32 %v2399, %v2400
    %v2402 = vsel %vm2310, %v2386, 0.0
    %v2403 = vadd.f32 %v2401, %v2402
    %v2404 = vsel %vm2310, %v2360, 0.0
    %v2405 = vsel %vm2310, %v2364, 0.0
    %v2406 = vadd.f32 %v2404, %v2405
    %v2407 = vsel %vm2310, %v2368, 0.0
    %v2408 = vadd.f32 %v2406, %v2407
    %v2409 = vsel %vm2310, %v2372, 0.0
    %v2410 = vadd.f32 %v2408, %v2409
    %v2411 = vsel %vm2310, %v2376, 0.0
    %v2412 = vadd.f32 %v2410, %v2411
    %v2413 = vsel %vm2310, %v2380, 0.0
    %v2414 = vadd.f32 %v2412, %v2413
    %v2415 = vsel %vm2310, %v2384, 0.0
    %v2416 = vadd.f32 %v2414, %v2415
    %v2417 = vsel %vm2310, %v2388, 0.0
    %v2418 = vadd.f32 %v2416, %v2417
    %v2419 = vrcp.pop %v2403
    %v2420 = vrcp.pop %v2418
    %v2421 = vmul.f32 %v2403, %v2419
    %v2422 = vmul.f32 %v2418, %v2420
    %v2423 = vsub.f32 2.0, %v2421
    %v2424 = vsub.f32 2.0, %v2422
    %v2425 = vmul.f32 %v2419, %v2423
    %v2426 = vmul.f32 %v2420, %v2424
    %v2427 = vmul.f32 %v2358, %v2425
    %v2428 = vmul.f32 %v2360, %v2426
    %v2429 = vmul.f32 %v2362, %v2425
    %v2430 = vmul.f32 %v2364, %v2426
    %v2431 = vmul.f32 %v2366, %v2425
    %v2432 = vmul.f32 %v2368, %v2426
    %v2433 = vmul.f32 %v2370, %v2425
    %v2434 = vmul.f32 %v2372, %v2426
    %v2435 = vmul.f32 %v2374, %v2425
    %v2436 = vmul.f32 %v2376, %v2426
    %v2437 = vmul.f32 %v2378, %v2425
    %v2438 = vmul.f32 %v2380, %v2426
    %v2439 = vmul.f32 %v2382, %v2425
    %v2440 = vmul.f32 %v2384, %v2426
    %v2441 = vmul.f32 %v2386, %v2425
    %v2442 = vmul.f32 %v2388, %v2426
    %vm2443 = vcmask 15368
    %v2444 = vsel %vm2443, %v2294, -inf
    %v2445 = vsel %vm2443, %v2296, -inf
    %v2446 = vsel %vm2443, %v2298, -inf
    %v2447 = vmax.f32 %v2444, %v2446
    %v2448 = vsel %vm2443, %v2300, -inf
    %v2449 = vmax.f32 %v2445, %v2448
    %v2450 = vsel %vm2443, %v2302, -inf
    %v2451 = vmax.f32 %v2447, %v2450
    %v2452 = vsel %vm2443, %v2304, -inf
    %v2453 = vmax.f32 %v2449, %v2452
    %v2454 = vsel %vm2443, %v2306, -inf
    %v2455 = vmax.f32 %v2451, %v2454
    %v2456 = vsel %vm2443, %v2308, -inf
    %v2457 = vmax.f32 %v2453, %v2456
    %v2458 = vmax.f32 %v2455, %v2457
    %v2459 = vsel %vm2443, %v2295, -inf
    %v2460 = vsel %vm2443, %v2297, -inf
    %v2461 = vsel %vm2443, %v2299, -inf
    %v2462 = vmax.f32 %v2459, %v2461
    %v2463 = vsel %vm2443, %v2301, -inf
    %v2464 = vmax.f32 %v2460, %v2463
    %v2465 = vsel %vm2443, %v2303, -inf
    %v2466 = vmax.f32 %v2462, %v2465
    %v2467 = vsel %vm2443, %v2305, -inf
    %v2468 = vmax.f32 %v2464, %v2467
    %v2469 = vsel %vm2443, %v2307, -inf
    %v2470 = vmax.f32 %v2466, %v2469
    %v2471 = vsel %vm2443, %v2309, -inf
    %v2472 = vmax.f32 %v2468, %v2471
    %v2473 = vmax.f32 %v2470, %v2472
    %v2474 = vsub.f32 %v2294, %v2458
    %v2475 = vsub.f32 %v2295, %v2473
    %v2476 = vsub.f32 %v2296, %v2458
    %v2477 = vsub.f32 %v2297, %v2473
    %v2478 = vsub.f32 %v2298, %v2458
    %v2479 = vsub.f32 %v2299, %v2473
    %v2480 = vsub.f32 %v2300, %v2458
    %v2481 = vsub.f32 %v2301, %v2473
    %v2482 = vsub.f32 %v2302, %v2458
    %v2483 = vsub.f32 %v2303, %v2473
    %v2484 = vsub.f32 %v2304, %v2458
    %v2485 = vsub.f32 %v2305, %v2473
    %v2486 = vsub.f32 %v2306, %v2458
    %v2487 = vsub.f32 %v2307, %v2473
    %v2488 = vsub.f32 %v2308, %v2458
    %v2489 = vsub.f32 %v2309, %v2473
    %v2490 = vmul.f32 %v2474, 1.442695
    %v2491 = vpow.pop %v2490
    %v2492 = vmul.f32 %v2475, 1.442695
    %v2493 = vpow.pop %v2492
    %v2494 = vmul.f32 %v2476, 1.442695
    %v2495 = vpow.pop %v2494
    %v2496 = vmul.f32 %v2477, 1.442695
    %v2497 = vpow.pop %v2496
    %v2498 = vmul.f32 %v2478, 1.442695
    %v2499 = vpow.pop %v2498
    %v2500 = vmul.f32 %v2479, 1.442695
    %v2501 = vpow.pop %v2500
    %v2502 = vmul.f32 %v2480, 1.442695
    %v2503 = vpow.pop %v2502
    %v2504 = vmul.f32 %v2481, 1.442695
    %v2505 = vpow.pop %v2504
    %v2506 = vmul.f32 %v2482, 1.442695
    %v2507 = vpow.pop %v2506
    %v2508 = vmul.f32 %v2483, 1.442695
    %v2509 = vpow.pop %v2508
    %v2510 = vmul.f32 %v2484, 1.442695
    %v2511 = vpow.pop %v2510
    %v2512 = vmul.f32 %v2485, 1.442695
    %v2513 = vpow.pop %v2512
    %v2514 = vmul.f32 %v2486, 1.442695
    %v2515 = vpow.pop %v2514
    %v2516 = vmul.f32 %v2487, 1.442695
    %v2517 = vpow.pop %v2516
    %v2518 = vmul.f32 %v2488, 1.442695
    %v2519 = vpow.pop %v2518
    %v2520 = vmul.f32 %v2489, 1.442695
    %v2521 = vpow.pop %v2520
    %v2522 = vsel %vm2443, %v2491, 0.0
    %v2523 = vsel %vm2443, %v2495, 0.0
    %v2524 = vadd.f32 %v2522, %v2523
    %v2525 = vsel %vm2443, %v2499, 0.0
    %v2526 = vadd.f32 %v2524, %v2525
    %v2527 = vsel %vm2443, %v2503, 0.0
    %v2528 = vadd.f32 %v2526, %v2527
    %v2529 = vsel %vm2443, %v2507, 0.0
    %v2530 = vadd.f32 %v2528, %v2529
    %v2531 = vsel %vm2443, %v2511, 0.0
    %v2532 = vadd.f32 %v2530, %v2531
    %v2533 = vsel %vm2443, %v2515, 0.0
    %v2534 = vadd.f32 %v2532, %v2533
    %v2535 = vsel %vm2443, %v2519, 0.0
    %v2536 = vadd.f32 %v2534, %v2535
    %v2537 = vsel %vm2443, %v2493, 0.0
    %v2538 = vsel %vm2443, %v2497, 0.0
    %v2539 = vadd.f32 %v2537, %v2538
    %v2540 = vsel %vm2443, %v2501, 0.0
    %v2541 = vadd.f32 %v2539, %v2540
    %v2542 = vsel %vm2443, %v2505, 0.0
    %v2543 = vadd.f32 %v2541, %v2542
    %v2544 = vsel %vm2443, %v2509, 0.0
    %v2545 = vadd.f32 %v2543, %v2544
    %v2546 = vsel %vm2443, %v2513, 0.0
    %v2547 = vadd.f32 %v2545, %v2546
    %v2548 = vsel %vm2443, %v2517, 0.0
    %v2549 = vadd.f32 %v2547, %v2548
    %v2550 = vsel %vm2443, %v2521, 0.0
    %v2551 = vadd.f32 %v2549, %v2550
    %v2552 = vrcp.pop %v2536
    %v2553 = vrcp.pop %v2551
    %v2554 = vmul.f32 %v2536, %v2552
    %v2555 = vmul.f32 %v2551, %v2553
    %v2556 = vsub.f32 2.0, %v2554
    %v2557 = vsub.f32 2.0, %v2555
    %v2558 = vmul.f32 %v2552, %v2556
    %v2559 = vmul.f32 %v2553, %v2557
    %v2560 = vmul.f32 %v2491, %v2558
    %v2561 = vmul.f32 %v2493, %v2559
    %v2562 = vmul.f32 %v2495, %v2558
    %v2563 = vmul.f32 %v2497, %v2559
    %v2564 = vmul.f32 %v2499, %v2558
    %v2565 = vmul.f32 %v2501, %v2559
    %v2566 = vmul.f32 %v2503, %v2558
    %v2567 = vmul.f32 %v2505, %v2559
    %v2568 = vmul.f32 %v2507, %v2558
    %v2569 = vmul.f32 %v2509, %v2559
    %v2570 = vmul.f32 %v2511, %v2558
    %v2571 = vmul.f32 %v2513, %v2559
    %v2572 = vmul.f32 %v2515, %v2558
    %v2573 = vmul.f32 %v2517, %v2559
    %v2574 = vmul.f32 %v2519, %v2558
    %v2575 = vmul.f32 %v2521, %v2559
    %v2576 = vld [vmem:[%s7] sm:$0x1]
    %2593 = vrot.lane.b32.xlu0 %v2560, 127
    %v2594 = vpop.permute.xlu0 %2593
    %2595 = vrot.lane.b32.xlu0 %v2561, 127
    %v2596 = vpop.permute.xlu0 %2595
    %2597 = vrot.lane.b32.xlu0 %v2562, 127
    %v2598 = vpop.permute.xlu0 %2597
    %2599 = vrot.lane.b32.xlu0 %v2563, 127
    %v2600 = vpop.permute.xlu0 %2599
    %2601 = vrot.lane.b32.xlu0 %v2564, 127
    %v2602 = vpop.permute.xlu0 %2601
    %2603 = vrot.lane.b32.xlu0 %v2565, 127
    %v2604 = vpop.permute.xlu0 %2603
    %2605 = vrot.lane.b32.xlu0 %v2566, 127
    %v2606 = vpop.permute.xlu0 %2605
    %2607 = vrot.lane.b32.xlu0 %v2567, 127
    %v2608 = vpop.permute.xlu0 %2607
    %2609 = vrot.lane.b32.xlu0 %v2568, 127
    %v2610 = vpop.permute.xlu0 %2609
    %2611 = vrot.lane.b32.xlu0 %v2569, 127
    %v2612 = vpop.permute.xlu0 %2611
    %2613 = vrot.lane.b32.xlu0 %v2570, 127
    %v2614 = vpop.permute.xlu0 %2613
    %2615 = vrot.lane.b32.xlu0 %v2571, 127
    %v2616 = vpop.permute.xlu0 %2615
    %2617 = vrot.lane.b32.xlu0 %v2572, 127
    %v2618 = vpop.permute.xlu0 %2617
    %2619 = vrot.lane.b32.xlu0 %v2573, 127
    %v2620 = vpop.permute.xlu0 %2619
    %2621 = vrot.lane.b32.xlu0 %v2574, 127
    %v2622 = vpop.permute.xlu0 %2621
    %2623 = vrot.lane.b32.xlu0 %v2575, 127
    %v2624 = vpop.permute.xlu0 %2623
    %v2641 = vsub.f32 %v2427, %v2594
    %v2642 = vsub.f32 %v2428, %v2596
    %v2643 = vsub.f32 %v2429, %v2598
    %v2644 = vsub.f32 %v2430, %v2600
    %v2645 = vsub.f32 %v2431, %v2602
    %v2646 = vsub.f32 %v2432, %v2604
    %v2647 = vsub.f32 %v2433, %v2606
    %v2648 = vsub.f32 %v2434, %v2608
    %v2649 = vsub.f32 %v2435, %v2610
    %v2650 = vsub.f32 %v2436, %v2612
    %v2651 = vsub.f32 %v2437, %v2614
    %v2652 = vsub.f32 %v2438, %v2616
    %v2653 = vsub.f32 %v2439, %v2618
    %v2654 = vsub.f32 %v2440, %v2620
    %v2655 = vsub.f32 %v2441, %v2622
    %v2656 = vsub.f32 %v2442, %v2624
    %2658 = vset.pattern.permute.xlu0 0
    %2659 = vperm.xlu0 %2658, %v2641
    %v2660 = vpop.permute.xlu0 %2659
    %2663 = vset.pattern.permute.xlu0 0
    %2664 = vperm.xlu0 %2663, %v2642
    %v2665 = vpop.permute.xlu0 %2664
    %2668 = vset.pattern.permute.xlu0 0
    %2669 = vperm.xlu0 %2668, %v2643
    %v2670 = vpop.permute.xlu0 %2669
    %2673 = vset.pattern.permute.xlu0 0
    %2674 = vperm.xlu0 %2673, %v2644
    %v2675 = vpop.permute.xlu0 %2674
    %2678 = vset.pattern.permute.xlu0 0
    %2679 = vperm.xlu0 %2678, %v2645
    %v2680 = vpop.permute.xlu0 %2679
    %2683 = vset.pattern.permute.xlu0 0
    %2684 = vperm.xlu0 %2683, %v2646
    %v2685 = vpop.permute.xlu0 %2684
    %2688 = vset.pattern.permute.xlu0 0
    %2689 = vperm.xlu0 %2688, %v2647
    %v2690 = vpop.permute.xlu0 %2689
    %2693 = vset.pattern.permute.xlu0 0
    %2694 = vperm.xlu0 %2693, %v2648
    %v2695 = vpop.permute.xlu0 %2694
    %2698 = vset.pattern.permute.xlu0 0
    %2699 = vperm.xlu0 %2698, %v2649
    %v2700 = vpop.permute.xlu0 %2699
    %2703 = vset.pattern.permute.xlu0 0
    %2704 = vperm.xlu0 %2703, %v2650
    %v2705 = vpop.permute.xlu0 %2704
    %2708 = vset.pattern.permute.xlu0 0
    %2709 = vperm.xlu0 %2708, %v2651
    %v2710 = vpop.permute.xlu0 %2709
    %2713 = vset.pattern.permute.xlu0 0
    %2714 = vperm.xlu0 %2713, %v2652
    %v2715 = vpop.permute.xlu0 %2714
    %2718 = vset.pattern.permute.xlu0 0
    %2719 = vperm.xlu0 %2718, %v2653
    %v2720 = vpop.permute.xlu0 %2719
    %2723 = vset.pattern.permute.xlu0 0
    %2724 = vperm.xlu0 %2723, %v2654
    %v2725 = vpop.permute.xlu0 %2724
    %2728 = vset.pattern.permute.xlu0 0
    %2729 = vperm.xlu0 %2728, %v2655
    %v2730 = vpop.permute.xlu0 %2729
    %2733 = vset.pattern.permute.xlu0 0
    %2734 = vperm.xlu0 %2733, %v2656
    %v2735 = vpop.permute.xlu0 %2734
    %v2738 = vlaneseq
    %v2739 = vshrl.u32 %v2738, 7
    %v2740 = vsub.s32 0, %v2739
    %v2741 = vrot.slane %v2576, %v2740
    %v2743 = vmul.f32 %v2660, %v2741
    %v2744 = vmul.f32 %v2665, %v2741
    %v2745 = vmul.f32 %v2670, %v2741
    %v2746 = vmul.f32 %v2675, %v2741
    %v2747 = vmul.f32 %v2680, %v2741
    %v2748 = vmul.f32 %v2685, %v2741
    %v2749 = vmul.f32 %v2690, %v2741
    %v2750 = vmul.f32 %v2695, %v2741
    %v2751 = vmul.f32 %v2700, %v2741
    %v2752 = vmul.f32 %v2705, %v2741
    %v2753 = vmul.f32 %v2710, %v2741
    %v2754 = vmul.f32 %v2715, %v2741
    %v2755 = vmul.f32 %v2720, %v2741
    %v2756 = vmul.f32 %v2725, %v2741
    %v2757 = vmul.f32 %v2730, %v2741
    %v2758 = vmul.f32 %v2735, %v2741
    %2759 = vset.pattern.permute.xlu0 1
    %2760 = vperm.xlu0 %2759, %v2560
    %v2761 = vpop.permute.xlu0 %2760
    %2763 = vset.pattern.permute.xlu0 1
    %2764 = vperm.xlu0 %2763, %v2561
    %v2765 = vpop.permute.xlu0 %2764
    %2767 = vset.pattern.permute.xlu0 1
    %2768 = vperm.xlu0 %2767, %v2562
    %v2769 = vpop.permute.xlu0 %2768
    %2771 = vset.pattern.permute.xlu0 1
    %2772 = vperm.xlu0 %2771, %v2563
    %v2773 = vpop.permute.xlu0 %2772
    %2775 = vset.pattern.permute.xlu0 1
    %2776 = vperm.xlu0 %2775, %v2564
    %v2777 = vpop.permute.xlu0 %2776
    %2779 = vset.pattern.permute.xlu0 1
    %2780 = vperm.xlu0 %2779, %v2565
    %v2781 = vpop.permute.xlu0 %2780
    %2783 = vset.pattern.permute.xlu0 1
    %2784 = vperm.xlu0 %2783, %v2566
    %v2785 = vpop.permute.xlu0 %2784
    %2787 = vset.pattern.permute.xlu0 1
    %2788 = vperm.xlu0 %2787, %v2567
    %v2789 = vpop.permute.xlu0 %2788
    %2791 = vset.pattern.permute.xlu0 1
    %2792 = vperm.xlu0 %2791, %v2568
    %v2793 = vpop.permute.xlu0 %2792
    %2795 = vset.pattern.permute.xlu0 1
    %2796 = vperm.xlu0 %2795, %v2569
    %v2797 = vpop.permute.xlu0 %2796
    %2799 = vset.pattern.permute.xlu0 1
    %2800 = vperm.xlu0 %2799, %v2570
    %v2801 = vpop.permute.xlu0 %2800
    %2803 = vset.pattern.permute.xlu0 1
    %2804 = vperm.xlu0 %2803, %v2571
    %v2805 = vpop.permute.xlu0 %2804
    %2807 = vset.pattern.permute.xlu0 1
    %2808 = vperm.xlu0 %2807, %v2572
    %v2809 = vpop.permute.xlu0 %2808
    %2811 = vset.pattern.permute.xlu0 1
    %2812 = vperm.xlu0 %2811, %v2573
    %v2813 = vpop.permute.xlu0 %2812
    %2815 = vset.pattern.permute.xlu0 1
    %2816 = vperm.xlu0 %2815, %v2574
    %v2817 = vpop.permute.xlu0 %2816
    %2819 = vset.pattern.permute.xlu0 1
    %2820 = vperm.xlu0 %2819, %v2575
    %v2821 = vpop.permute.xlu0 %2820
    %v2823 = vadd.f32 %v2761, %v2743
    %v2824 = vadd.f32 %v2765, %v2744
    %v2825 = vadd.f32 %v2769, %v2745
    %v2826 = vadd.f32 %v2773, %v2746
    %v2827 = vadd.f32 %v2777, %v2747
    %v2828 = vadd.f32 %v2781, %v2748
    %v2829 = vadd.f32 %v2785, %v2749
    %v2830 = vadd.f32 %v2789, %v2750
    %v2831 = vadd.f32 %v2793, %v2751
    %v2832 = vadd.f32 %v2797, %v2752
    %v2833 = vadd.f32 %v2801, %v2753
    %v2834 = vadd.f32 %v2805, %v2754
    %v2835 = vadd.f32 %v2809, %v2755
    %v2836 = vadd.f32 %v2813, %v2756
    %v2837 = vadd.f32 %v2817, %v2757
    %v2838 = vadd.f32 %v2821, %v2758
    %v2839 = vmul.f32 %v2149, %v2823
    %v2840 = vmul.f32 %v2150, %v2824
    %v2841 = vmul.f32 %v2151, %v2825
    %v2842 = vmul.f32 %v2152, %v2826
    %v2843 = vmul.f32 %v2153, %v2827
    %v2844 = vmul.f32 %v2154, %v2828
    %v2845 = vmul.f32 %v2155, %v2829
    %v2846 = vmul.f32 %v2156, %v2830
    %v2847 = vmul.f32 %v2157, %v2831
    %v2848 = vmul.f32 %v2158, %v2832
    %v2849 = vmul.f32 %v2159, %v2833
    %v2850 = vmul.f32 %v2160, %v2834
    %v2851 = vmul.f32 %v2161, %v2835
    %v2852 = vmul.f32 %v2162, %v2836
    %v2853 = vmul.f32 %v2163, %v2837
    %v2854 = vmul.f32 %v2164, %v2838
    %v2855 = vadd.f32 %v2839, %v2841
    %v2856 = vadd.f32 %v2855, %v2843
    %v2857 = vadd.f32 %v2856, %v2845
    %v2858 = vadd.f32 %v2857, %v2847
    %v2859 = vadd.f32 %v2858, %v2849
    %v2860 = vadd.f32 %v2859, %v2851
    %v2861 = vadd.f32 %v2860, %v2853
    %v2862 = vadd.f32 %v2840, %v2842
    %v2863 = vadd.f32 %v2862, %v2844
    %v2864 = vadd.f32 %v2863, %v2846
    %v2865 = vadd.f32 %v2864, %v2848
    %v2866 = vadd.f32 %v2865, %v2850
    %v2867 = vadd.f32 %v2866, %v2852
    %v2868 = vadd.f32 %v2867, %v2854
    %v2869 = vmax.f32 %v2861, 0.0
    %v2870 = vmax.f32 %v2868, 0.0
    %v2871 = vld [vmem:[#allocation9] sm:$0xff]
    %v2872 = vld [vmem:[#allocation9 + $0x8] sm:$0xff]
    %v2873 = vld [vmem:[#allocation9 + $0x10] sm:$0xff]
    %v2874 = vld [vmem:[#allocation9 + $0x18] sm:$0xff]
    %v2875 = vld [vmem:[#allocation9 + $0x20] sm:$0xff]
    %v2876 = vld [vmem:[#allocation9 + $0x28] sm:$0xff]
    %v2877 = vld [vmem:[#allocation9 + $0x30] sm:$0xff]
    %v2878 = vld [vmem:[#allocation9 + $0x38] sm:$0xff]
    %v2879 = vld [vmem:[#allocation9 + $0x40] sm:$0xff]
    %v2880 = vld [vmem:[#allocation9 + $0x48] sm:$0xff]
    %v2881 = vld [vmem:[#allocation9 + $0x50] sm:$0xff]
    %v2882 = vld [vmem:[#allocation9 + $0x58] sm:$0xff]
    %v2883 = vld [vmem:[#allocation9 + $0x60] sm:$0xff]
    %v2884 = vld [vmem:[#allocation9 + $0x68] sm:$0xff]
    %v2885 = vld [vmem:[#allocation9 + $0x70] sm:$0xff]
    %v2886 = vld [vmem:[#allocation9 + $0x78] sm:$0xff]
    %v2887 = vld [vmem:[%s9] sm:$0x1]
    %v2889 = vlaneseq
    %v2890 = vshrl.u32 %v2889, 7
    %v2891 = vsub.s32 0, %v2890
    %v2892 = vrot.slane %v2887, %v2891
    %2894 = vmatprep.subr.mxu0 0.0
    %2895 = vmatpush1.msra.mxu0 %v2871
    %2896 = vmatprep.subr.mxu0 0.0
    %2897 = vmatpush1.msra.mxu0 %v2872
    %2898 = vmatprep.subr.mxu0 0.0
    %2899 = vmatpush1.msra.mxu0 %v2873
    %2900 = vmatprep.subr.mxu0 0.0
    %2901 = vmatpush1.msra.mxu0 %v2874
    %2902 = vmatprep.subr.mxu0 0.0
    %2903 = vmatpush1.msra.mxu0 %v2875
    %2904 = vmatprep.subr.mxu0 0.0
    %2905 = vmatpush1.msra.mxu0 %v2876
    %2906 = vmatprep.subr.mxu0 0.0
    %2907 = vmatpush1.msra.mxu0 %v2877
    %2908 = vmatprep.subr.mxu0 0.0
    %2909 = vmatpush1.msra.mxu0 %v2878
    %2910 = vmatprep.subr.mxu0 0.0
    %2911 = vmatpush1.msra.mxu0 %v2879
    %2912 = vmatprep.subr.mxu0 0.0
    %2913 = vmatpush1.msra.mxu0 %v2880
    %2914 = vmatprep.subr.mxu0 0.0
    %2915 = vmatpush1.msra.mxu0 %v2881
    %2916 = vmatprep.subr.mxu0 0.0
    %2917 = vmatpush1.msra.mxu0 %v2882
    %2918 = vmatprep.subr.mxu0 0.0
    %2919 = vmatpush1.msra.mxu0 %v2883
    %2920 = vmatprep.subr.mxu0 0.0
    %2921 = vmatpush1.msra.mxu0 %v2884
    %2922 = vmatprep.subr.mxu0 0.0
    %2923 = vmatpush1.msra.mxu0 %v2885
    %2924 = vmatprep.subr.mxu0 0.0
    %2925 = vmatpush1.msra.mxu0 %v2886
    %2926 = vmatprep.subr.mxu0 0.0
    %2927 = vmatpush1.msra.mxu0 0.0
    %2928 = vmatprep.subr.mxu0 0.0
    %2929 = vmatpush1.msra.mxu0 0.0
    %2930 = vmatprep.subr.mxu0 0.0
    %2931 = vmatpush1.msra.mxu0 0.0
    %2932 = vmatprep.subr.mxu0 0.0
    %2933 = vmatpush1.msra.mxu0 0.0
    %2934 = vmatprep.subr.mxu0 0.0
    %2935 = vmatpush1.msra.mxu0 0.0
    %2936 = vmatprep.subr.mxu0 0.0
    %2937 = vmatpush1.msra.mxu0 0.0
    %2938 = vmatprep.subr.mxu0 0.0
    %2939 = vmatpush1.msra.mxu0 0.0
    %2940 = vmatprep.subr.mxu0 0.0
    %2941 = vmatpush1.msra.mxu0 0.0
    %2942 = vmatprep.subr.mxu0 0.0
    %2943 = vmatpush1.msra.mxu0 0.0
    %2944 = vmatprep.subr.mxu0 0.0
    %2945 = vmatpush1.msra.mxu0 0.0
    %2946 = vmatprep.subr.mxu0 0.0
    %2947 = vmatpush1.msra.mxu0 0.0
    %2948 = vmatprep.subr.mxu0 0.0
    %2949 = vmatpush1.msra.mxu0 0.0
    %2950 = vmatprep.subr.mxu0 0.0
    %2951 = vmatpush1.msra.mxu0 0.0
    %2952 = vmatprep.subr.mxu0 0.0
    %2953 = vmatpush1.msra.mxu0 0.0
    %2954 = vmatprep.subr.mxu0 0.0
    %2955 = vmatpush1.msra.mxu0 0.0
    %2956 = vmatprep.subr.mxu0 0.0
    %2957 = vmatpush1.msra.mxu0 0.0
    %2958 = vmatprep.mubr.f32.mxu0 0.0
    %2959 = vmatmul.mubr.f32.gmra.mrb[0].mxu0 %v2869
    %v2960 = vpop.f32.mrb[0].mxu0
    %v2961 = vadd.f32 %v2892, %v2960
    %v2962 = vpop.f32.mrb[0].mxu0
    %2963 = vmatprep.mubr.f32.mxu0 0.0
    %2964 = vmatmul.mubr.f32.gmra.mrb[0].mxu0 %v2870
    %v2965 = vpop.f32.mrb[0].mxu0
    %v2966 = vadd.f32 %v2892, %v2965
    %v2967 = vpop.f32.mrb[0].mxu0
    %2968 = vdwg.mxu0
    %2969 = vst [vmem:[#allocation11] sm:$0xff] %v2961
    %2970 = vst [vmem:[#allocation11 + $0x8] sm:$0xff] %v2966
    // Predicated region
    $region58: #{tpu_custom_call.1} parent=1 // pred_check
      _
    $region59: #{tpu_custom_call.1} parent=1 // pred_check_branch
      %2972 = sbr.rel (0) target = $region61
    $region60: #{tpu_custom_call.1} parent=1 // pred_region
      %s2974 = ssub.s32 256, 256
      %2975 = vsyncadd [#allocation5], %s2974
      %s2976 = sshll.u32 [#allocation11], 4
      %s2977 = int_to_ptr.vmem [resolvable:$true] %s2976
      %2982 = dma.vmem_to_hbm [thread:$0]  %s2977, 256, %s10, [#allocation5], 128, 128, 8
    $region61: #{tpu_custom_call.1} parent=1 // pred_fallthru
      _
    // Predicated region
    $region62: #{tpu_custom_call.1} parent=1 // pred_check
      _
    $region63: #{tpu_custom_call.1} parent=1 // pred_check_branch
      %2984 = sbr.rel (0) target = $region65
    $region64: #{tpu_custom_call.1} parent=1 // pred_region
      %2985 = dma.done [#allocation5], 256
    $region65: #{tpu_custom_call.1} parent=1 // pred_fallthru
      _
    %2986 = vsyncpa [#allocation4], 1
    %2987 = vsyncpa [#allocation7], 1
    %2988 = vsyncpa [#allocation10], 1
    %2989 = vsyncpa [#allocation5], 1

</llo_original>
